<compile_context>
chip_gen: v6e
topology: v6e:2x2x1
jax: 0.10.0
libtpu: 0.0.40
codegen_flags: <defaults>
</compile_context>

<pallas_src>
import math

import jax
import jax.numpy as jnp
from jax.experimental import pallas as pl
from jax.experimental.pallas import tpu as pltpu


# ---------------------------------------------------------------------------
# Wrapper-side prep (pure layout / weight folding — no activation FLOPs)
# ---------------------------------------------------------------------------
def _fold_bn(bn):
    gamma, beta, mean, var, eps = bn
    scale = gamma * jax.lax.rsqrt(var + eps)
    bias = beta - mean * scale
    return scale.astype(jnp.float32), bias.astype(jnp.float32)


def _prep_conv_bn(w_oihw, bn):
    """torch (Co,Ci,kh,kw) conv weight + BN -> (kh*kw, Ci, Co) bf16 weight with
    the BN scale folded in, plus a (1, Co) f32 bias."""
    scale, bias = _fold_bn(bn)
    co, ci, kh, kw = w_oihw.shape
    wk = jnp.transpose(w_oihw, (2, 3, 1, 0)).reshape(kh * kw, ci, co)
    wk = (wk * scale[None, None, :]).astype(jnp.bfloat16)
    return wk, bias.reshape(1, co)


def _prepare_tap_sources(x_nhwc, stride):
    """Pad (and for stride 2, parity-split) the activation so that every 3x3
    tap is a contiguous, unstrided, static slice of one bf16 source array.

    Returns (srcs, taps, ho, wo) with taps[t] = (src_idx, row_off, col_off)
    for tap t = 3*kh + kw."""
    _, h, w, _ = x_nhwc.shape
    ho = (h + 2 - 3) // stride + 1
    wo = (w + 2 - 3) // stride + 1
    xp = jnp.pad(x_nhwc, ((0, 0), (1, 1), (1, 1), (0, 0)))
    if stride == 1:
        srcs = [xp.astype(jnp.bfloat16)]
        taps = [(0, kh, kw) for kh in range(3) for kw in range(3)]
    else:
        # stride 2: 4 parity phases of the padded input; a tap (kh,kw) reads
        # phase (kh%2, kw%2) at offset (kh//2, kw//2) — no strided slicing.
        hp, wp = h + 2, w + 2
        hp2, wp2 = (hp + 1) // 2, (wp + 1) // 2
        xp = jnp.pad(xp, ((0, 0), (0, 2 * hp2 - hp), (0, 2 * wp2 - wp), (0, 0)))
        xp = xp.astype(jnp.bfloat16)
        srcs = [xp[:, ph::2, pw::2, :] for ph in range(2) for pw in range(2)]
        taps = [(2 * (kh % 2) + (kw % 2), kh // 2, kw // 2)
                for kh in range(3) for kw in range(3)]
    return srcs, taps, ho, wo


# ---------------------------------------------------------------------------
# The fused SimpleBlock kernel
# ---------------------------------------------------------------------------
def _make_block_kernel(n_src, taps, ho, wo, ci, co, projection, out_dtype):
    n = ho * wo

    def kernel(*refs):
        src_refs = refs[:n_src]
        w1_ref, b1_ref, w2_ref, b2_ref = refs[n_src:n_src + 4]
        pos = n_src + 4
        if projection:
            wsc_ref, bsc_ref = refs[pos:pos + 2]
            pos += 2
        o_ref = refs[pos]
        out1p_ref = refs[pos + 1]          # VMEM scratch: padded conv1 output

        # ---- conv1 (3x3) + BN1 + ReLU: taps sliced straight from the padded
        #      activation (no im2col), bf16 MXU operands, f32 accumulation ----
        acc1 = jnp.zeros((n, co), jnp.float32)
        p_center = None
        for t, (si, ro, cof) in enumerate(taps):
            p = src_refs[si][0, ro:ro + ho, cof:cof + wo, :].reshape(n, ci)
            acc1 = acc1 + jnp.dot(p, w1_ref[t], preferred_element_type=jnp.float32)
            if t == 4:                      # centre tap also feeds the shortcut
                p_center = p
        out1 = jnp.maximum(acc1 + b1_ref[...], 0.0)

        # Stage conv1's output zero-padded in VMEM; conv2 reads it directly.
        out1p_ref[...] = jnp.zeros_like(out1p_ref)
        out1p_ref[1:1 + ho, 1:1 + wo, :] = (
            out1.astype(jnp.bfloat16).reshape(ho, wo, co))

        # ---- conv2 (3x3, stride 1) + BN2 ----
        acc2 = jnp.zeros((n, co), jnp.float32)
        for t in range(9):
            kh, kw = divmod(t, 3)
            p2 = out1p_ref[kh:kh + ho, kw:kw + wo, :].reshape(n, co)
            acc2 = acc2 + jnp.dot(p2, w2_ref[t], preferred_element_type=jnp.float32)
        out = acc2 + b2_ref[...]

        # ---- shortcut (identity or fused 1x1-conv+BN) + add + ReLU ----
        if projection:
            sc = (jnp.dot(p_center, wsc_ref[...],
                          preferred_element_type=jnp.float32) + bsc_ref[...])
        else:
            sc = p_center.astype(jnp.float32)
        o_ref[...] = (jnp.maximum(out + sc, 0.0)
                      .reshape(1, ho, wo, co).astype(out_dtype))

    return kernel


def _vmem_budget_bytes():
    try:
        cap = int(pltpu.get_tpu_info().vmem_capacity_bytes)
    except Exception:
        cap = 64 * 1024 * 1024   # conservative fallback: v7x physical per-core VMEM
    return (cap * 3) // 4


def _fused_block_call(srcs, taps, weights, *, ho, wo, ci, co, projection):
    bsz = srcs[0].shape[0]
    n = ho * wo
    args = list(srcs) + list(weights)

    def _per_step_spec(a):
        return pl.BlockSpec((1,) + a.shape[1:], lambda i: (i, 0, 0, 0))

    def _resident_spec(a):
        zeros = (0,) * a.ndim
        return pl.BlockSpec(a.shape, lambda i, _z=zeros: _z)

    in_specs = ([_per_step_spec(s) for s in srcs]
                + [_resident_spec(wgt) for wgt in weights])
    out_spec = pl.BlockSpec((1, ho, wo, co), lambda i: (i, 0, 0, 0))

    # Generation-aware VMEM sizing: double-buffered blocks + scratch + f32 accs.
    def _itemsize(a):
        return jnp.dtype(a.dtype).itemsize

    src_block = sum(math.prod(s.shape[1:]) * _itemsize(s) for s in srcs)
    w_bytes = sum(math.prod(wgt.shape) * _itemsize(wgt) for wgt in weights)
    out_block = n * co * 4
    scratch_bytes = (ho + 2) * (wo + 2) * co * 2
    acc_bytes = 2 * n * co * 4
    needed = (2 * (src_block + w_bytes + out_block)
              + scratch_bytes + acc_bytes + (4 << 20))
    budget = _vmem_budget_bytes()
    assert needed <= budget, (
        f"SimpleBlock per-image working set (~{needed >> 20} MiB) exceeds the "
        f"VMEM budget ({budget >> 20} MiB); halo-tiled spatial grid not implemented.")

    flops = 2 * bsz * n * (9 * ci * co + 9 * co * co
                           + (ci * co if projection else 0))
    bytes_accessed = (sum(math.prod(a.shape) * _itemsize(a) for a in args)
                      + bsz * n * co * 4)

    kernel = _make_block_kernel(len(srcs), taps, ho, wo, ci, co, projection,
                                jnp.float32)
    return pl.pallas_call(
        kernel,
        out_shape=jax.ShapeDtypeStruct((bsz, ho, wo, co), jnp.float32),
        grid=(bsz,),
        in_specs=in_specs,
        out_specs=out_spec,
        scratch_shapes=[pltpu.VMEM((ho + 2, wo + 2, co), jnp.bfloat16)],
        compiler_params=pltpu.CompilerParams(
            dimension_semantics=("parallel",),
            vmem_limit_bytes=int(budget)),
        cost_estimate=pl.CostEstimate(flops=flops, transcendentals=0,
                                      bytes_accessed=bytes_accessed),
    )(*args)


# ---------------------------------------------------------------------------
# SimpleBlock forward (x is NCHW, like the PyTorch module)
# ---------------------------------------------------------------------------
def simple_block_forward(x, params, half_res):
    bsz, ci, h, w = x.shape
    co = params["w1"].shape[0]
    stride = 2 if half_res else 1
    projection = "wsc" in params
    if not projection:
        assert ci == co, "identity shortcut requires indim == outdim"
        assert not half_res, ("identity shortcut with half_res=True would give a "
                              "residual shape mismatch (same constraint as the "
                              "PyTorch module)")

    x_nhwc = jnp.transpose(x, (0, 2, 3, 1))
    srcs, taps, ho, wo = _prepare_tap_sources(x_nhwc, stride)

    w1k, b1 = _prep_conv_bn(params["w1"], params["bn1"])
    w2k, b2 = _prep_conv_bn(params["w2"], params["bn2"])
    weights = [w1k, b1, w2k, b2]
    if projection:
        wsck, bsc = _prep_conv_bn(params["wsc"], params["bnsc"])
        weights += [wsck.reshape(ci, co), bsc]

    out_nhwc = _fused_block_call(srcs, taps, weights, ho=ho, wo=wo,
                                 ci=ci, co=co, projection=projection)
    return jnp.transpose(out_nhwc, (0, 3, 1, 2))


# ---------------------------------------------------------------------------
# Pure-JAX f32 reference (torch semantics) for correctness checking
# ---------------------------------------------------------------------------
def ref_forward(x, params, half_res):
    stride = 2 if half_res else 1

    def conv(inp, wgt, s, pad):
        return jax.lax.conv_general_dilated(
            inp, wgt, window_strides=(s, s), padding=((pad, pad), (pad, pad)),
            dimension_numbers=("NCHW", "OIHW", "NCHW"),
            precision=jax.lax.Precision.HIGHEST)

    def bn(inp, p):
        gamma, beta, mean, var, eps = p
        scale = gamma / jnp.sqrt(var + eps)
        shift = beta - mean * scale
        return inp * scale[None, :, None, None] + shift[None, :, None, None]

    out = jax.nn.relu(bn(conv(x, params["w1"], stride, 1), params["bn1"]))
    out = bn(conv(out, params["w2"], 1, 1), params["bn2"])
    if "wsc" in params:
        short = bn(conv(x, params["wsc"], stride, 0), params["bnsc"])
    else:
        short = x
    return jax.nn.relu(out + short)


def make_params(key, indim, outdim):
    def conv_init(k, cout, cin, ks):
        fan = ks * ks * cout
        return jax.random.normal(k, (cout, cin, ks, ks), jnp.float32) * math.sqrt(2.0 / fan)

    def bn_init(k, c):
        kg, kb, km, kv = jax.random.split(k, 4)
        gamma = 1.0 + 0.1 * jax.random.normal(kg, (c,), jnp.float32)
        beta = 0.1 * jax.random.normal(kb, (c,), jnp.float32)
        mean = 0.1 * jax.random.normal(km, (c,), jnp.float32)
        var = jnp.abs(jax.random.normal(kv, (c,), jnp.float32)) + 0.5
        return (gamma, beta, mean, var, 1e-5)

    k1, k2, k3, k4, k5, k6 = jax.random.split(key, 6)
    params = {
        "w1": conv_init(k1, outdim, indim, 3),
        "bn1": bn_init(k2, outdim),
        "w2": conv_init(k3, outdim, outdim, 3),
        "bn2": bn_init(k4, outdim),
    }
    if indim != outdim:
        params["wsc"] = conv_init(k5, outdim, indim, 1)
        params["bnsc"] = bn_init(k6, outdim)
    return params


if __name__ == "__main__":
    key = jax.random.PRNGKey(0)
    kx, kp1, kp2 = jax.random.split(key, 3)

    fwd = jax.jit(simple_block_forward, static_argnames=("half_res",))

    # Config 1: projection shortcut (indim=4 != outdim=8), half_res (stride 2).
    x1 = jax.random.normal(kx, (2, 4, 16, 16), jnp.float32)
    params1 = make_params(kp1, 4, 8)
    y1 = fwd(x1, params1, half_res=True)
    jax.block_until_ready(y1)
    r1 = ref_forward(x1, params1, True)
    assert y1.shape == (2, 8, 8, 8), y1.shape
    err1 = float(jnp.max(jnp.abs(y1 - r1)))
    # bf16 MXU operands with f32 accumulation => quantization-level tolerance.
    assert jnp.allclose(y1, r1, rtol=5e-2, atol=5e-2), err1

    # Config 2: identity shortcut (indim == outdim == 8), full resolution.
    x2 = jax.random.normal(jax.random.fold_in(kx, 1), (2, 8, 16, 16), jnp.float32)
    params2 = make_params(kp2, 8, 8)
    y2 = fwd(x2, params2, half_res=False)
    jax.block_until_ready(y2)
    r2 = ref_forward(x2, params2, False)
    assert y2.shape == (2, 8, 16, 16), y2.shape
    err2 = float(jnp.max(jnp.abs(y2 - r2)))
    assert jnp.allclose(y2, r2, rtol=5e-2, atol=5e-2), err2

    print("KERNEL_OK")
</pallas_src>

<mosaic_0001>
module attributes {stable_mosaic.version = 11 : i64} {
  func.func @kernel(%arg0: i32, %arg1: memref<1x9x9x4xbf16, #tpu.memory_space<vmem>>, %arg2: memref<1x9x9x4xbf16, #tpu.memory_space<vmem>>, %arg3: memref<1x9x9x4xbf16, #tpu.memory_space<vmem>>, %arg4: memref<1x9x9x4xbf16, #tpu.memory_space<vmem>>, %arg5: memref<9x4x8xbf16, #tpu.memory_space<vmem>>, %arg6: memref<1x8xf32, #tpu.memory_space<vmem>>, %arg7: memref<9x8x8xbf16, #tpu.memory_space<vmem>>, %arg8: memref<1x8xf32, #tpu.memory_space<vmem>>, %arg9: memref<4x8xbf16, #tpu.memory_space<vmem>>, %arg10: memref<1x8xf32, #tpu.memory_space<vmem>>, %arg11: memref<1x8x8x8xf32, #tpu.memory_space<vmem>>, %arg12: memref<10x10x8xbf16, #tpu.memory_space<vmem>>) attributes {dimension_semantics = [#tpu.dimension_semantics<parallel>], iteration_bounds = array<i64: 2>, scalar_prefetch = 0 : i64, scratch_operands = 1 : i64, tpu.core_type = #tpu.core_type<tc>, window_params = [{transform_indices = @transform_0, window_bounds = array<i64: 1, 9, 9, 4>}, {transform_indices = @transform_1, window_bounds = array<i64: 1, 9, 9, 4>}, {transform_indices = @transform_2, window_bounds = array<i64: 1, 9, 9, 4>}, {transform_indices = @transform_3, window_bounds = array<i64: 1, 9, 9, 4>}, {pipeline_mode = #tpu.pipeline_mode<synchronous>, transform_indices = @transform_4, window_bounds = array<i64: 9, 4, 8>}, {pipeline_mode = #tpu.pipeline_mode<synchronous>, transform_indices = @transform_5, window_bounds = array<i64: 1, 8>}, {pipeline_mode = #tpu.pipeline_mode<synchronous>, transform_indices = @transform_6, window_bounds = array<i64: 9, 8, 8>}, {pipeline_mode = #tpu.pipeline_mode<synchronous>, transform_indices = @transform_7, window_bounds = array<i64: 1, 8>}, {pipeline_mode = #tpu.pipeline_mode<synchronous>, transform_indices = @transform_8, window_bounds = array<i64: 4, 8>}, {pipeline_mode = #tpu.pipeline_mode<synchronous>, transform_indices = @transform_9, window_bounds = array<i64: 1, 8>}, {transform_indices = @transform_10, window_bounds = array<i64: 1, 8, 8, 8>}]} {
    %cst = arith.constant 0.000000e+00 : f32
    %0 = vector.broadcast %cst : f32 to vector<64x8xf32>
    %c0 = arith.constant 0 : index
    %c0_0 = arith.constant 0 : index
    %c0_1 = arith.constant 0 : index
    %c0_2 = arith.constant 0 : index
    %1 = vector.load %arg1[%c0, %c0_0, %c0_1, %c0_2] : memref<1x9x9x4xbf16, #tpu.memory_space<vmem>>, vector<1x8x8x4xbf16>
    %2 = vector.shape_cast %1 : vector<1x8x8x4xbf16> to vector<8x8x4xbf16>
    %3 = vector.shape_cast %2 : vector<8x8x4xbf16> to vector<64x4xbf16>
    %c0_3 = arith.constant 0 : index
    %c0_4 = arith.constant 0 : index
    %c0_5 = arith.constant 0 : index
    %4 = vector.load %arg5[%c0_3, %c0_4, %c0_5] : memref<9x4x8xbf16, #tpu.memory_space<vmem>>, vector<1x4x8xbf16>
    %5 = vector.shape_cast %4 : vector<1x4x8xbf16> to vector<4x8xbf16>
    %cst_6 = arith.constant dense<0.000000e+00> : vector<64x8xf32>
    %6 = tpu.matmul %3, %5, %cst_6 {dimension_numbers = #tpu.dot_dimension_numbers<[1], [0], [0], [1], [0, 0, 1, 1], [], []>} : vector<64x4xbf16>, vector<4x8xbf16>, vector<64x8xf32> -> vector<64x8xf32>
    %7 = arith.addf %0, %6 : vector<64x8xf32>
    %c0_7 = arith.constant 0 : index
    %c0_8 = arith.constant 0 : index
    %c0_9 = arith.constant 0 : index
    %c0_10 = arith.constant 0 : index
    %8 = vector.load %arg2[%c0_7, %c0_8, %c0_9, %c0_10] : memref<1x9x9x4xbf16, #tpu.memory_space<vmem>>, vector<1x8x8x4xbf16>
    %9 = vector.shape_cast %8 : vector<1x8x8x4xbf16> to vector<8x8x4xbf16>
    %10 = vector.shape_cast %9 : vector<8x8x4xbf16> to vector<64x4xbf16>
    %c1 = arith.constant 1 : index
    %c0_11 = arith.constant 0 : index
    %c0_12 = arith.constant 0 : index
    %11 = vector.load %arg5[%c1, %c0_11, %c0_12] : memref<9x4x8xbf16, #tpu.memory_space<vmem>>, vector<1x4x8xbf16>
    %12 = vector.shape_cast %11 : vector<1x4x8xbf16> to vector<4x8xbf16>
    %cst_13 = arith.constant dense<0.000000e+00> : vector<64x8xf32>
    %13 = tpu.matmul %10, %12, %cst_13 {dimension_numbers = #tpu.dot_dimension_numbers<[1], [0], [0], [1], [0, 0, 1, 1], [], []>} : vector<64x4xbf16>, vector<4x8xbf16>, vector<64x8xf32> -> vector<64x8xf32>
    %14 = arith.addf %7, %13 : vector<64x8xf32>
    %c0_14 = arith.constant 0 : index
    %c0_15 = arith.constant 0 : index
    %c1_16 = arith.constant 1 : index
    %c0_17 = arith.constant 0 : index
    %15 = vector.load %arg1[%c0_14, %c0_15, %c1_16, %c0_17] : memref<1x9x9x4xbf16, #tpu.memory_space<vmem>>, vector<1x8x8x4xbf16>
    %16 = vector.shape_cast %15 : vector<1x8x8x4xbf16> to vector<8x8x4xbf16>
    %17 = vector.shape_cast %16 : vector<8x8x4xbf16> to vector<64x4xbf16>
    %c2 = arith.constant 2 : index
    %c0_18 = arith.constant 0 : index
    %c0_19 = arith.constant 0 : index
    %18 = vector.load %arg5[%c2, %c0_18, %c0_19] : memref<9x4x8xbf16, #tpu.memory_space<vmem>>, vector<1x4x8xbf16>
    %19 = vector.shape_cast %18 : vector<1x4x8xbf16> to vector<4x8xbf16>
    %cst_20 = arith.constant dense<0.000000e+00> : vector<64x8xf32>
    %20 = tpu.matmul %17, %19, %cst_20 {dimension_numbers = #tpu.dot_dimension_numbers<[1], [0], [0], [1], [0, 0, 1, 1], [], []>} : vector<64x4xbf16>, vector<4x8xbf16>, vector<64x8xf32> -> vector<64x8xf32>
    %21 = arith.addf %14, %20 : vector<64x8xf32>
    %c0_21 = arith.constant 0 : index
    %c0_22 = arith.constant 0 : index
    %c0_23 = arith.constant 0 : index
    %c0_24 = arith.constant 0 : index
    %22 = vector.load %arg3[%c0_21, %c0_22, %c0_23, %c0_24] : memref<1x9x9x4xbf16, #tpu.memory_space<vmem>>, vector<1x8x8x4xbf16>
    %23 = vector.shape_cast %22 : vector<1x8x8x4xbf16> to vector<8x8x4xbf16>
    %24 = vector.shape_cast %23 : vector<8x8x4xbf16> to vector<64x4xbf16>
    %c3 = arith.constant 3 : index
    %c0_25 = arith.constant 0 : index
    %c0_26 = arith.constant 0 : index
    %25 = vector.load %arg5[%c3, %c0_25, %c0_26] : memref<9x4x8xbf16, #tpu.memory_space<vmem>>, vector<1x4x8xbf16>
    %26 = vector.shape_cast %25 : vector<1x4x8xbf16> to vector<4x8xbf16>
    %cst_27 = arith.constant dense<0.000000e+00> : vector<64x8xf32>
    %27 = tpu.matmul %24, %26, %cst_27 {dimension_numbers = #tpu.dot_dimension_numbers<[1], [0], [0], [1], [0, 0, 1, 1], [], []>} : vector<64x4xbf16>, vector<4x8xbf16>, vector<64x8xf32> -> vector<64x8xf32>
    %28 = arith.addf %21, %27 : vector<64x8xf32>
    %c0_28 = arith.constant 0 : index
    %c0_29 = arith.constant 0 : index
    %c0_30 = arith.constant 0 : index
    %c0_31 = arith.constant 0 : index
    %29 = vector.load %arg4[%c0_28, %c0_29, %c0_30, %c0_31] : memref<1x9x9x4xbf16, #tpu.memory_space<vmem>>, vector<1x8x8x4xbf16>
    %30 = vector.shape_cast %29 : vector<1x8x8x4xbf16> to vector<8x8x4xbf16>
    %31 = vector.shape_cast %30 : vector<8x8x4xbf16> to vector<64x4xbf16>
    %c4 = arith.constant 4 : index
    %c0_32 = arith.constant 0 : index
    %c0_33 = arith.constant 0 : index
    %32 = vector.load %arg5[%c4, %c0_32, %c0_33] : memref<9x4x8xbf16, #tpu.memory_space<vmem>>, vector<1x4x8xbf16>
    %33 = vector.shape_cast %32 : vector<1x4x8xbf16> to vector<4x8xbf16>
    %cst_34 = arith.constant dense<0.000000e+00> : vector<64x8xf32>
    %34 = tpu.matmul %31, %33, %cst_34 {dimension_numbers = #tpu.dot_dimension_numbers<[1], [0], [0], [1], [0, 0, 1, 1], [], []>} : vector<64x4xbf16>, vector<4x8xbf16>, vector<64x8xf32> -> vector<64x8xf32>
    %35 = arith.addf %28, %34 : vector<64x8xf32>
    %c0_35 = arith.constant 0 : index
    %c0_36 = arith.constant 0 : index
    %c1_37 = arith.constant 1 : index
    %c0_38 = arith.constant 0 : index
    %36 = vector.load %arg3[%c0_35, %c0_36, %c1_37, %c0_38] : memref<1x9x9x4xbf16, #tpu.memory_space<vmem>>, vector<1x8x8x4xbf16>
    %37 = vector.shape_cast %36 : vector<1x8x8x4xbf16> to vector<8x8x4xbf16>
    %38 = vector.shape_cast %37 : vector<8x8x4xbf16> to vector<64x4xbf16>
    %c5 = arith.constant 5 : index
    %c0_39 = arith.constant 0 : index
    %c0_40 = arith.constant 0 : index
    %39 = vector.load %arg5[%c5, %c0_39, %c0_40] : memref<9x4x8xbf16, #tpu.memory_space<vmem>>, vector<1x4x8xbf16>
    %40 = vector.shape_cast %39 : vector<1x4x8xbf16> to vector<4x8xbf16>
    %cst_41 = arith.constant dense<0.000000e+00> : vector<64x8xf32>
    %41 = tpu.matmul %38, %40, %cst_41 {dimension_numbers = #tpu.dot_dimension_numbers<[1], [0], [0], [1], [0, 0, 1, 1], [], []>} : vector<64x4xbf16>, vector<4x8xbf16>, vector<64x8xf32> -> vector<64x8xf32>
    %42 = arith.addf %35, %41 : vector<64x8xf32>
    %c0_42 = arith.constant 0 : index
    %c1_43 = arith.constant 1 : index
    %c0_44 = arith.constant 0 : index
    %c0_45 = arith.constant 0 : index
    %43 = vector.load %arg1[%c0_42, %c1_43, %c0_44, %c0_45] : memref<1x9x9x4xbf16, #tpu.memory_space<vmem>>, vector<1x8x8x4xbf16>
    %44 = vector.shape_cast %43 : vector<1x8x8x4xbf16> to vector<8x8x4xbf16>
    %45 = vector.shape_cast %44 : vector<8x8x4xbf16> to vector<64x4xbf16>
    %c6 = arith.constant 6 : index
    %c0_46 = arith.constant 0 : index
    %c0_47 = arith.constant 0 : index
    %46 = vector.load %arg5[%c6, %c0_46, %c0_47] : memref<9x4x8xbf16, #tpu.memory_space<vmem>>, vector<1x4x8xbf16>
    %47 = vector.shape_cast %46 : vector<1x4x8xbf16> to vector<4x8xbf16>
    %cst_48 = arith.constant dense<0.000000e+00> : vector<64x8xf32>
    %48 = tpu.matmul %45, %47, %cst_48 {dimension_numbers = #tpu.dot_dimension_numbers<[1], [0], [0], [1], [0, 0, 1, 1], [], []>} : vector<64x4xbf16>, vector<4x8xbf16>, vector<64x8xf32> -> vector<64x8xf32>
    %49 = arith.addf %42, %48 : vector<64x8xf32>
    %c0_49 = arith.constant 0 : index
    %c1_50 = arith.constant 1 : index
    %c0_51 = arith.constant 0 : index
    %c0_52 = arith.constant 0 : index
    %50 = vector.load %arg2[%c0_49, %c1_50, %c0_51, %c0_52] : memref<1x9x9x4xbf16, #tpu.memory_space<vmem>>, vector<1x8x8x4xbf16>
    %51 = vector.shape_cast %50 : vector<1x8x8x4xbf16> to vector<8x8x4xbf16>
    %52 = vector.shape_cast %51 : vector<8x8x4xbf16> to vector<64x4xbf16>
    %c7 = arith.constant 7 : index
    %c0_53 = arith.constant 0 : index
    %c0_54 = arith.constant 0 : index
    %53 = vector.load %arg5[%c7, %c0_53, %c0_54] : memref<9x4x8xbf16, #tpu.memory_space<vmem>>, vector<1x4x8xbf16>
    %54 = vector.shape_cast %53 : vector<1x4x8xbf16> to vector<4x8xbf16>
    %cst_55 = arith.constant dense<0.000000e+00> : vector<64x8xf32>
    %55 = tpu.matmul %52, %54, %cst_55 {dimension_numbers = #tpu.dot_dimension_numbers<[1], [0], [0], [1], [0, 0, 1, 1], [], []>} : vector<64x4xbf16>, vector<4x8xbf16>, vector<64x8xf32> -> vector<64x8xf32>
    %56 = arith.addf %49, %55 : vector<64x8xf32>
    %c0_56 = arith.constant 0 : index
    %c1_57 = arith.constant 1 : index
    %c1_58 = arith.constant 1 : index
    %c0_59 = arith.constant 0 : index
    %57 = vector.load %arg1[%c0_56, %c1_57, %c1_58, %c0_59] : memref<1x9x9x4xbf16, #tpu.memory_space<vmem>>, vector<1x8x8x4xbf16>
    %58 = vector.shape_cast %57 : vector<1x8x8x4xbf16> to vector<8x8x4xbf16>
    %59 = vector.shape_cast %58 : vector<8x8x4xbf16> to vector<64x4xbf16>
    %c8 = arith.constant 8 : index
    %c0_60 = arith.constant 0 : index
    %c0_61 = arith.constant 0 : index
    %60 = vector.load %arg5[%c8, %c0_60, %c0_61] : memref<9x4x8xbf16, #tpu.memory_space<vmem>>, vector<1x4x8xbf16>
    %61 = vector.shape_cast %60 : vector<1x4x8xbf16> to vector<4x8xbf16>
    %cst_62 = arith.constant dense<0.000000e+00> : vector<64x8xf32>
    %62 = tpu.matmul %59, %61, %cst_62 {dimension_numbers = #tpu.dot_dimension_numbers<[1], [0], [0], [1], [0, 0, 1, 1], [], []>} : vector<64x4xbf16>, vector<4x8xbf16>, vector<64x8xf32> -> vector<64x8xf32>
    %63 = arith.addf %56, %62 : vector<64x8xf32>
    %c0_63 = arith.constant 0 : index
    %c0_64 = arith.constant 0 : index
    %64 = vector.load %arg6[%c0_63, %c0_64] : memref<1x8xf32, #tpu.memory_space<vmem>>, vector<1x8xf32>
    %65 = vector.broadcast %64 : vector<1x8xf32> to vector<64x8xf32>
    %66 = arith.addf %63, %65 : vector<64x8xf32>
    %cst_65 = arith.constant 0.000000e+00 : f32
    %67 = vector.broadcast %cst_65 : f32 to vector<64x8xf32>
    %68 = arith.maximumf %66, %67 : vector<64x8xf32>
    %cst_66 = arith.constant 0.000000e+00 : bf16
    %69 = vector.broadcast %cst_66 : bf16 to vector<10x10x8xbf16>
    %c0_67 = arith.constant 0 : index
    %c0_68 = arith.constant 0 : index
    %c0_69 = arith.constant 0 : index
    %70 = vector.load %arg12[%c0_67, %c0_68, %c0_69] : memref<10x10x8xbf16, #tpu.memory_space<vmem>>, vector<10x10x8xbf16>
    tpu.vector_store %arg12[%c0_67, %c0_68, %c0_69], %69 {strides = array<i32>} : memref<10x10x8xbf16, #tpu.memory_space<vmem>>, vector<10x10x8xbf16>,
    %71 = arith.truncf %68 : vector<64x8xf32> to vector<64x8xbf16>
    %72 = vector.shape_cast %71 : vector<64x8xbf16> to vector<8x8x8xbf16>
    %c1_70 = arith.constant 1 : index
    %c1_71 = arith.constant 1 : index
    %c0_72 = arith.constant 0 : index
    %73 = vector.load %arg12[%c1_70, %c1_71, %c0_72] : memref<10x10x8xbf16, #tpu.memory_space<vmem>>, vector<8x8x8xbf16>
    tpu.vector_store %arg12[%c1_70, %c1_71, %c0_72], %72 {strides = array<i32>} : memref<10x10x8xbf16, #tpu.memory_space<vmem>>, vector<8x8x8xbf16>,
    %cst_73 = arith.constant 0.000000e+00 : f32
    %74 = vector.broadcast %cst_73 : f32 to vector<64x8xf32>
    %c0_74 = arith.constant 0 : index
    %c0_75 = arith.constant 0 : index
    %c0_76 = arith.constant 0 : index
    %75 = vector.load %arg12[%c0_74, %c0_75, %c0_76] : memref<10x10x8xbf16, #tpu.memory_space<vmem>>, vector<8x8x8xbf16>
    %76 = vector.shape_cast %75 : vector<8x8x8xbf16> to vector<64x8xbf16>
    %c0_77 = arith.constant 0 : index
    %c0_78 = arith.constant 0 : index
    %c0_79 = arith.constant 0 : index
    %77 = vector.load %arg7[%c0_77, %c0_78, %c0_79] : memref<9x8x8xbf16, #tpu.memory_space<vmem>>, vector<1x8x8xbf16>
    %78 = vector.shape_cast %77 : vector<1x8x8xbf16> to vector<8x8xbf16>
    %cst_80 = arith.constant dense<0.000000e+00> : vector<64x8xf32>
    %79 = tpu.matmul %76, %78, %cst_80 {dimension_numbers = #tpu.dot_dimension_numbers<[1], [0], [0], [1], [0, 0, 1, 1], [], []>} : vector<64x8xbf16>, vector<8x8xbf16>, vector<64x8xf32> -> vector<64x8xf32>
    %80 = arith.addf %74, %79 : vector<64x8xf32>
    %c0_81 = arith.constant 0 : index
    %c1_82 = arith.constant 1 : index
    %c0_83 = arith.constant 0 : index
    %81 = vector.load %arg12[%c0_81, %c1_82, %c0_83] : memref<10x10x8xbf16, #tpu.memory_space<vmem>>, vector<8x8x8xbf16>
    %82 = vector.shape_cast %81 : vector<8x8x8xbf16> to vector<64x8xbf16>
    %c1_84 = arith.constant 1 : index
    %c0_85 = arith.constant 0 : index
    %c0_86 = arith.constant 0 : index
    %83 = vector.load %arg7[%c1_84, %c0_85, %c0_86] : memref<9x8x8xbf16, #tpu.memory_space<vmem>>, vector<1x8x8xbf16>
    %84 = vector.shape_cast %83 : vector<1x8x8xbf16> to vector<8x8xbf16>
    %cst_87 = arith.constant dense<0.000000e+00> : vector<64x8xf32>
    %85 = tpu.matmul %82, %84, %cst_87 {dimension_numbers = #tpu.dot_dimension_numbers<[1], [0], [0], [1], [0, 0, 1, 1], [], []>} : vector<64x8xbf16>, vector<8x8xbf16>, vector<64x8xf32> -> vector<64x8xf32>
    %86 = arith.addf %80, %85 : vector<64x8xf32>
    %c0_88 = arith.constant 0 : index
    %c2_89 = arith.constant 2 : index
    %c0_90 = arith.constant 0 : index
    %87 = vector.load %arg12[%c0_88, %c2_89, %c0_90] : memref<10x10x8xbf16, #tpu.memory_space<vmem>>, vector<8x8x8xbf16>
    %88 = vector.shape_cast %87 : vector<8x8x8xbf16> to vector<64x8xbf16>
    %c2_91 = arith.constant 2 : index
    %c0_92 = arith.constant 0 : index
    %c0_93 = arith.constant 0 : index
    %89 = vector.load %arg7[%c2_91, %c0_92, %c0_93] : memref<9x8x8xbf16, #tpu.memory_space<vmem>>, vector<1x8x8xbf16>
    %90 = vector.shape_cast %89 : vector<1x8x8xbf16> to vector<8x8xbf16>
    %cst_94 = arith.constant dense<0.000000e+00> : vector<64x8xf32>
    %91 = tpu.matmul %88, %90, %cst_94 {dimension_numbers = #tpu.dot_dimension_numbers<[1], [0], [0], [1], [0, 0, 1, 1], [], []>} : vector<64x8xbf16>, vector<8x8xbf16>, vector<64x8xf32> -> vector<64x8xf32>
    %92 = arith.addf %86, %91 : vector<64x8xf32>
    %c1_95 = arith.constant 1 : index
    %c0_96 = arith.constant 0 : index
    %c0_97 = arith.constant 0 : index
    %93 = vector.load %arg12[%c1_95, %c0_96, %c0_97] : memref<10x10x8xbf16, #tpu.memory_space<vmem>>, vector<8x8x8xbf16>
    %94 = vector.shape_cast %93 : vector<8x8x8xbf16> to vector<64x8xbf16>
    %c3_98 = arith.constant 3 : index
    %c0_99 = arith.constant 0 : index
    %c0_100 = arith.constant 0 : index
    %95 = vector.load %arg7[%c3_98, %c0_99, %c0_100] : memref<9x8x8xbf16, #tpu.memory_space<vmem>>, vector<1x8x8xbf16>
    %96 = vector.shape_cast %95 : vector<1x8x8xbf16> to vector<8x8xbf16>
    %cst_101 = arith.constant dense<0.000000e+00> : vector<64x8xf32>
    %97 = tpu.matmul %94, %96, %cst_101 {dimension_numbers = #tpu.dot_dimension_numbers<[1], [0], [0], [1], [0, 0, 1, 1], [], []>} : vector<64x8xbf16>, vector<8x8xbf16>, vector<64x8xf32> -> vector<64x8xf32>
    %98 = arith.addf %92, %97 : vector<64x8xf32>
    %c1_102 = arith.constant 1 : index
    %c1_103 = arith.constant 1 : index
    %c0_104 = arith.constant 0 : index
    %99 = vector.load %arg12[%c1_102, %c1_103, %c0_104] : memref<10x10x8xbf16, #tpu.memory_space<vmem>>, vector<8x8x8xbf16>
    %100 = vector.shape_cast %99 : vector<8x8x8xbf16> to vector<64x8xbf16>
    %c4_105 = arith.constant 4 : index
    %c0_106 = arith.constant 0 : index
    %c0_107 = arith.constant 0 : index
    %101 = vector.load %arg7[%c4_105, %c0_106, %c0_107] : memref<9x8x8xbf16, #tpu.memory_space<vmem>>, vector<1x8x8xbf16>
    %102 = vector.shape_cast %101 : vector<1x8x8xbf16> to vector<8x8xbf16>
    %cst_108 = arith.constant dense<0.000000e+00> : vector<64x8xf32>
    %103 = tpu.matmul %100, %102, %cst_108 {dimension_numbers = #tpu.dot_dimension_numbers<[1], [0], [0], [1], [0, 0, 1, 1], [], []>} : vector<64x8xbf16>, vector<8x8xbf16>, vector<64x8xf32> -> vector<64x8xf32>
    %104 = arith.addf %98, %103 : vector<64x8xf32>
    %c1_109 = arith.constant 1 : index
    %c2_110 = arith.constant 2 : index
    %c0_111 = arith.constant 0 : index
    %105 = vector.load %arg12[%c1_109, %c2_110, %c0_111] : memref<10x10x8xbf16, #tpu.memory_space<vmem>>, vector<8x8x8xbf16>
    %106 = vector.shape_cast %105 : vector<8x8x8xbf16> to vector<64x8xbf16>
    %c5_112 = arith.constant 5 : index
    %c0_113 = arith.constant 0 : index
    %c0_114 = arith.constant 0 : index
    %107 = vector.load %arg7[%c5_112, %c0_113, %c0_114] : memref<9x8x8xbf16, #tpu.memory_space<vmem>>, vector<1x8x8xbf16>
    %108 = vector.shape_cast %107 : vector<1x8x8xbf16> to vector<8x8xbf16>
    %cst_115 = arith.constant dense<0.000000e+00> : vector<64x8xf32>
    %109 = tpu.matmul %106, %108, %cst_115 {dimension_numbers = #tpu.dot_dimension_numbers<[1], [0], [0], [1], [0, 0, 1, 1], [], []>} : vector<64x8xbf16>, vector<8x8xbf16>, vector<64x8xf32> -> vector<64x8xf32>
    %110 = arith.addf %104, %109 : vector<64x8xf32>
    %c2_116 = arith.constant 2 : index
    %c0_117 = arith.constant 0 : index
    %c0_118 = arith.constant 0 : index
    %111 = vector.load %arg12[%c2_116, %c0_117, %c0_118] : memref<10x10x8xbf16, #tpu.memory_space<vmem>>, vector<8x8x8xbf16>
    %112 = vector.shape_cast %111 : vector<8x8x8xbf16> to vector<64x8xbf16>
    %c6_119 = arith.constant 6 : index
    %c0_120 = arith.constant 0 : index
    %c0_121 = arith.constant 0 : index
    %113 = vector.load %arg7[%c6_119, %c0_120, %c0_121] : memref<9x8x8xbf16, #tpu.memory_space<vmem>>, vector<1x8x8xbf16>
    %114 = vector.shape_cast %113 : vector<1x8x8xbf16> to vector<8x8xbf16>
    %cst_122 = arith.constant dense<0.000000e+00> : vector<64x8xf32>
    %115 = tpu.matmul %112, %114, %cst_122 {dimension_numbers = #tpu.dot_dimension_numbers<[1], [0], [0], [1], [0, 0, 1, 1], [], []>} : vector<64x8xbf16>, vector<8x8xbf16>, vector<64x8xf32> -> vector<64x8xf32>
    %116 = arith.addf %110, %115 : vector<64x8xf32>
    %c2_123 = arith.constant 2 : index
    %c1_124 = arith.constant 1 : index
    %c0_125 = arith.constant 0 : index
    %117 = vector.load %arg12[%c2_123, %c1_124, %c0_125] : memref<10x10x8xbf16, #tpu.memory_space<vmem>>, vector<8x8x8xbf16>
    %118 = vector.shape_cast %117 : vector<8x8x8xbf16> to vector<64x8xbf16>
    %c7_126 = arith.constant 7 : index
    %c0_127 = arith.constant 0 : index
    %c0_128 = arith.constant 0 : index
    %119 = vector.load %arg7[%c7_126, %c0_127, %c0_128] : memref<9x8x8xbf16, #tpu.memory_space<vmem>>, vector<1x8x8xbf16>
    %120 = vector.shape_cast %119 : vector<1x8x8xbf16> to vector<8x8xbf16>
    %cst_129 = arith.constant dense<0.000000e+00> : vector<64x8xf32>
    %121 = tpu.matmul %118, %120, %cst_129 {dimension_numbers = #tpu.dot_dimension_numbers<[1], [0], [0], [1], [0, 0, 1, 1], [], []>} : vector<64x8xbf16>, vector<8x8xbf16>, vector<64x8xf32> -> vector<64x8xf32>
    %122 = arith.addf %116, %121 : vector<64x8xf32>
    %c2_130 = arith.constant 2 : index
    %c2_131 = arith.constant 2 : index
    %c0_132 = arith.constant 0 : index
    %123 = vector.load %arg12[%c2_130, %c2_131, %c0_132] : memref<10x10x8xbf16, #tpu.memory_space<vmem>>, vector<8x8x8xbf16>
    %124 = vector.shape_cast %123 : vector<8x8x8xbf16> to vector<64x8xbf16>
    %c8_133 = arith.constant 8 : index
    %c0_134 = arith.constant 0 : index
    %c0_135 = arith.constant 0 : index
    %125 = vector.load %arg7[%c8_133, %c0_134, %c0_135] : memref<9x8x8xbf16, #tpu.memory_space<vmem>>, vector<1x8x8xbf16>
    %126 = vector.shape_cast %125 : vector<1x8x8xbf16> to vector<8x8xbf16>
    %cst_136 = arith.constant dense<0.000000e+00> : vector<64x8xf32>
    %127 = tpu.matmul %124, %126, %cst_136 {dimension_numbers = #tpu.dot_dimension_numbers<[1], [0], [0], [1], [0, 0, 1, 1], [], []>} : vector<64x8xbf16>, vector<8x8xbf16>, vector<64x8xf32> -> vector<64x8xf32>
    %128 = arith.addf %122, %127 : vector<64x8xf32>
    %c0_137 = arith.constant 0 : index
    %c0_138 = arith.constant 0 : index
    %129 = vector.load %arg8[%c0_137, %c0_138] : memref<1x8xf32, #tpu.memory_space<vmem>>, vector<1x8xf32>
    %130 = vector.broadcast %129 : vector<1x8xf32> to vector<64x8xf32>
    %131 = arith.addf %128, %130 : vector<64x8xf32>
    %c0_139 = arith.constant 0 : index
    %c0_140 = arith.constant 0 : index
    %132 = vector.load %arg9[%c0_139, %c0_140] : memref<4x8xbf16, #tpu.memory_space<vmem>>, vector<4x8xbf16>
    %cst_141 = arith.constant dense<0.000000e+00> : vector<64x8xf32>
    %133 = tpu.matmul %31, %132, %cst_141 {dimension_numbers = #tpu.dot_dimension_numbers<[1], [0], [0], [1], [0, 0, 1, 1], [], []>} : vector<64x4xbf16>, vector<4x8xbf16>, vector<64x8xf32> -> vector<64x8xf32>
    %c0_142 = arith.constant 0 : index
    %c0_143 = arith.constant 0 : index
    %134 = vector.load %arg10[%c0_142, %c0_143] : memref<1x8xf32, #tpu.memory_space<vmem>>, vector<1x8xf32>
    %135 = vector.broadcast %134 : vector<1x8xf32> to vector<64x8xf32>
    %136 = arith.addf %133, %135 : vector<64x8xf32>
    %137 = arith.addf %131, %136 : vector<64x8xf32>
    %cst_144 = arith.constant 0.000000e+00 : f32
    %138 = vector.broadcast %cst_144 : f32 to vector<64x8xf32>
    %139 = arith.maximumf %137, %138 : vector<64x8xf32>
    %140 = vector.shape_cast %139 : vector<64x8xf32> to vector<1x8x8x8xf32>
    %c0_145 = arith.constant 0 : index
    %c0_146 = arith.constant 0 : index
    %c0_147 = arith.constant 0 : index
    %c0_148 = arith.constant 0 : index
    %141 = vector.load %arg11[%c0_145, %c0_146, %c0_147, %c0_148] : memref<1x8x8x8xf32, #tpu.memory_space<vmem>>, vector<1x8x8x8xf32>
    tpu.vector_store %arg11[%c0_145, %c0_146, %c0_147, %c0_148], %140 {strides = array<i32>} : memref<1x8x8x8xf32, #tpu.memory_space<vmem>>, vector<1x8x8x8xf32>,
    return
  }
  func.func @transform_0(%arg0: i32) -> (i32, i32, i32, i32) {
    %c0_i32 = arith.constant 0 : i32
    %c0_i32_0 = arith.constant 0 : i32
    %c0_i32_1 = arith.constant 0 : i32
    %c0_i32_2 = arith.constant 0 : i32
    return %arg0, %c0_i32, %c0_i32_0, %c0_i32_1 : i32, i32, i32, i32
  }
  func.func @transform_1(%arg0: i32) -> (i32, i32, i32, i32) {
    %c0_i32 = arith.constant 0 : i32
    %c0_i32_0 = arith.constant 0 : i32
    %c0_i32_1 = arith.constant 0 : i32
    %c0_i32_2 = arith.constant 0 : i32
    return %arg0, %c0_i32, %c0_i32_0, %c0_i32_1 : i32, i32, i32, i32
  }
  func.func @transform_2(%arg0: i32) -> (i32, i32, i32, i32) {
    %c0_i32 = arith.constant 0 : i32
    %c0_i32_0 = arith.constant 0 : i32
    %c0_i32_1 = arith.constant 0 : i32
    %c0_i32_2 = arith.constant 0 : i32
    return %arg0, %c0_i32, %c0_i32_0, %c0_i32_1 : i32, i32, i32, i32
  }
  func.func @transform_3(%arg0: i32) -> (i32, i32, i32, i32) {
    %c0_i32 = arith.constant 0 : i32
    %c0_i32_0 = arith.constant 0 : i32
    %c0_i32_1 = arith.constant 0 : i32
    %c0_i32_2 = arith.constant 0 : i32
    return %arg0, %c0_i32, %c0_i32_0, %c0_i32_1 : i32, i32, i32, i32
  }
  func.func @transform_4(%arg0: i32) -> (i32, i32, i32) {
    %c0_i32 = arith.constant 0 : i32
    %c0_i32_0 = arith.constant 0 : i32
    %c0_i32_1 = arith.constant 0 : i32
    %c0_i32_2 = arith.constant 0 : i32
    return %c0_i32, %c0_i32_0, %c0_i32_1 : i32, i32, i32
  }
  func.func @transform_5(%arg0: i32) -> (i32, i32) {
    %c0_i32 = arith.constant 0 : i32
    %c0_i32_0 = arith.constant 0 : i32
    %c0_i32_1 = arith.constant 0 : i32
    return %c0_i32, %c0_i32_0 : i32, i32
  }
  func.func @transform_6(%arg0: i32) -> (i32, i32, i32) {
    %c0_i32 = arith.constant 0 : i32
    %c0_i32_0 = arith.constant 0 : i32
    %c0_i32_1 = arith.constant 0 : i32
    %c0_i32_2 = arith.constant 0 : i32
    return %c0_i32, %c0_i32_0, %c0_i32_1 : i32, i32, i32
  }
  func.func @transform_7(%arg0: i32) -> (i32, i32) {
    %c0_i32 = arith.constant 0 : i32
    %c0_i32_0 = arith.constant 0 : i32
    %c0_i32_1 = arith.constant 0 : i32
    return %c0_i32, %c0_i32_0 : i32, i32
  }
  func.func @transform_8(%arg0: i32) -> (i32, i32) {
    %c0_i32 = arith.constant 0 : i32
    %c0_i32_0 = arith.constant 0 : i32
    %c0_i32_1 = arith.constant 0 : i32
    return %c0_i32, %c0_i32_0 : i32, i32
  }
  func.func @transform_9(%arg0: i32) -> (i32, i32) {
    %c0_i32 = arith.constant 0 : i32
    %c0_i32_0 = arith.constant 0 : i32
    %c0_i32_1 = arith.constant 0 : i32
    return %c0_i32, %c0_i32_0 : i32, i32
  }
  func.func @transform_10(%arg0: i32) -> (i32, i32, i32, i32) {
    %c0_i32 = arith.constant 0 : i32
    %c0_i32_0 = arith.constant 0 : i32
    %c0_i32_1 = arith.constant 0 : i32
    %c0_i32_2 = arith.constant 0 : i32
    return %arg0, %c0_i32, %c0_i32_0, %c0_i32_1 : i32, i32, i32, i32
  }
}

</mosaic_0001>

<llo_original>
// kernel: simple_block_forward.1
$region0: #{simple_block_forward.1}
  #allocation0 [shape = 'u32[]', space=smem, size = 0x4, offset = 0x4, fixed_abs, tag = 'smem constant byte address 0x4 - core index']
  #allocation1 [shape = 'u32[144,128]{1,0:T(1,128)}', space=vmem, size = 0x12000, scoped, tag = 'internal scratch']
  #allocation2 [shape = 'bf16[10,10,8]{2,1,0:T(8,128)(2,1)}', space=vmem, size = 0xa000, scoped, tag = 'scratch operand']
  %s0 = inlined_call_operand.vmem [shape: bf16[2,9,9,4], index: 0, kind: input, shape index: {}]
  %s1 = inlined_call_operand.vmem [shape: bf16[2,9,9,4], index: 1, kind: input, shape index: {}]
  %s2 = inlined_call_operand.vmem [shape: bf16[2,9,9,4], index: 2, kind: input, shape index: {}]
  %s3 = inlined_call_operand.vmem [shape: bf16[2,9,9,4], index: 3, kind: input, shape index: {}]
  %s4 = inlined_call_operand.vmem [shape: bf16[9,4,8], index: 4, kind: input, shape index: {}]
  %s5 = inlined_call_operand.vmem [shape: f32[1,8], index: 5, kind: input, shape index: {}]
  %s6 = inlined_call_operand.vmem [shape: bf16[9,8,8], index: 6, kind: input, shape index: {}]
  %s7 = inlined_call_operand.vmem [shape: f32[1,8], index: 7, kind: input, shape index: {}]
  %s8 = inlined_call_operand.vmem [shape: bf16[4,8], index: 8, kind: input, shape index: {}]
  %s9 = inlined_call_operand.vmem [shape: f32[1,8], index: 9, kind: input, shape index: {}]
  %s10 = inlined_call_operand.vmem [shape: f32[2,8,8,8], index: 10, kind: output, shape index: {}]
  %s11 = sld [smem:[#allocation0]]
  $region73: #{simple_block_forward.1} parent=0
    _
  %s13 = ssub.s32 1, %s11
  %s14 = scalar_select 0, %s13, %s11
  loop: start=0, step=1, limit=4
  $region2: #{simple_block_forward.1} parent=0 // loop_pre_header
    _
  $region3: #{simple_block_forward.1} parent=0 // loop_header
    %s16 = sphi 0, %s20
    %p17 = scmp.ge.s32.totalorder %s16, 4
    %s26 = sphi 0, %s28
    %s29 = sphi 0, %s26
    %s30 = sphi 0, %s29
    %s46 = sphi 0, %s30
    %s52 = sphi 0, %s54
    %s55 = sphi 0, %s52
    %s56 = sphi 0, %s55
    %s72 = sphi 0, %s56
    %s78 = sphi 0, %s80
    %s81 = sphi 0, %s78
    %s82 = sphi 0, %s81
    %s98 = sphi 0, %s82
    %s104 = sphi 0, %s106
    %s107 = sphi 0, %s104
    %s108 = sphi 0, %s107
    %s124 = sphi 0, %s108
    %s128 = sphi 0, %s128
    %s130 = sphi 0, %s128
    %s131 = sphi 0, %s130
    %s145 = sphi 0, %s131
    %s149 = sphi 0, %s149
    %s151 = sphi 0, %s149
    %s152 = sphi 0, %s151
    %s166 = sphi 0, %s152
    %s170 = sphi 0, %s170
    %s172 = sphi 0, %s170
    %s173 = sphi 0, %s172
    %s187 = sphi 0, %s173
    %s191 = sphi 0, %s191
    %s193 = sphi 0, %s191
    %s194 = sphi 0, %s193
    %s208 = sphi 0, %s194
    %s212 = sphi 0, %s212
    %s214 = sphi 0, %s212
    %s215 = sphi 0, %s214
    %s229 = sphi 0, %s215
    %s233 = sphi 0, %s233
    %s235 = sphi 0, %s233
    %s236 = sphi 0, %s235
    %s250 = sphi 0, %s236
    %s256 = sphi 0, %s258
    %s259 = sphi 0, %s256
    %s260 = sphi 0, %s259
    %s276 = sphi 0, %s260
  $region4: #{simple_block_forward.1} parent=0 // loop_header_branch
    %19 = sbr.rel (%p17) target = $region8
  $region5: #{simple_block_forward.1} parent=0 // loop_body
    %s21 = ssub.s32 %s16, 1
    %s22 = ssub.s32 %s16, 2
    %s23 = sadd.s32 %s16, 1
    %s24 = ssub.s32 %s16, %s23
    %p25 = scmp.eq.s32.totalorder %s24, 0
    %s27 = sadd.s32 %s26, 1
    %s28 = scalar_select %p25, %s26, %s27
    %p31 = pneg %p25
    %p32 = scmp.eq.s32.totalorder %s16, 1
    %p33 = por %p31, %p32
    %p34 = scmp.ne.s32.totalorder %s26, %s29
    %p35 = scmp.eq.s32.totalorder %s16, 0
    %p36 = por %p34, %p35
    %p37 = scmp.ne.s32.totalorder %s26, %s29
    %p38 = scmp.eq.s32.totalorder %s21, 1
    %p39 = por %p37, %p38
    %p40 = scmp.ne.s32.totalorder %s29, %s30
    %p41 = scmp.eq.s32.totalorder %s21, 0
    %p42 = por %p40, %p41
    %p43 = scmp.ne.s32.totalorder %s29, %s30
    %p44 = scmp.eq.s32.totalorder %s22, 1
    %p45 = por %p43, %p44
    %p47 = scmp.ne.s32.totalorder %s30, %s46
    %p48 = scmp.eq.s32.totalorder %s22, 0
    %p49 = por %p47, %p48
    %s50 = ssub.s32 %s16, %s23
    %p51 = scmp.eq.s32.totalorder %s50, 0
    %s53 = sadd.s32 %s52, 1
    %s54 = scalar_select %p51, %s52, %s53
    %p57 = pneg %p51
    %p58 = scmp.eq.s32.totalorder %s16, 1
    %p59 = por %p57, %p58
    %p60 = scmp.ne.s32.totalorder %s52, %s55
    %p61 = scmp.eq.s32.totalorder %s16, 0
    %p62 = por %p60, %p61
    %p63 = scmp.ne.s32.totalorder %s52, %s55
    %p64 = scmp.eq.s32.totalorder %s21, 1
    %p65 = por %p63, %p64
    %p66 = scmp.ne.s32.totalorder %s55, %s56
    %p67 = scmp.eq.s32.totalorder %s21, 0
    %p68 = por %p66, %p67
    %p69 = scmp.ne.s32.totalorder %s55, %s56
    %p70 = scmp.eq.s32.totalorder %s22, 1
    %p71 = por %p69, %p70
    %p73 = scmp.ne.s32.totalorder %s56, %s72
    %p74 = scmp.eq.s32.totalorder %s22, 0
    %p75 = por %p73, %p74
    %s76 = ssub.s32 %s16, %s23
    %p77 = scmp.eq.s32.totalorder %s76, 0
    %s79 = sadd.s32 %s78, 1
    %s80 = scalar_select %p77, %s78, %s79
    %p83 = pneg %p77
    %p84 = scmp.eq.s32.totalorder %s16, 1
    %p85 = por %p83, %p84
    %p86 = scmp.ne.s32.totalorder %s78, %s81
    %p87 = scmp.eq.s32.totalorder %s16, 0
    %p88 = por %p86, %p87
    %p89 = scmp.ne.s32.totalorder %s78, %s81
    %p90 = scmp.eq.s32.totalorder %s21, 1
    %p91 = por %p89, %p90
    %p92 = scmp.ne.s32.totalorder %s81, %s82
    %p93 = scmp.eq.s32.totalorder %s21, 0
    %p94 = por %p92, %p93
    %p95 = scmp.ne.s32.totalorder %s81, %s82
    %p96 = scmp.eq.s32.totalorder %s22, 1
    %p97 = por %p95, %p96
    %p99 = scmp.ne.s32.totalorder %s82, %s98
    %p100 = scmp.eq.s32.totalorder %s22, 0
    %p101 = por %p99, %p100
    %s102 = ssub.s32 %s16, %s23
    %p103 = scmp.eq.s32.totalorder %s102, 0
    %s105 = sadd.s32 %s104, 1
    %s106 = scalar_select %p103, %s104, %s105
    %p109 = pneg %p103
    %p110 = scmp.eq.s32.totalorder %s16, 1
    %p111 = por %p109, %p110
    %p112 = scmp.ne.s32.totalorder %s104, %s107
    %p113 = scmp.eq.s32.totalorder %s16, 0
    %p114 = por %p112, %p113
    %p115 = scmp.ne.s32.totalorder %s104, %s107
    %p116 = scmp.eq.s32.totalorder %s21, 1
    %p117 = por %p115, %p116
    %p118 = scmp.ne.s32.totalorder %s107, %s108
    %p119 = scmp.eq.s32.totalorder %s21, 0
    %p120 = por %p118, %p119
    %p121 = scmp.ne.s32.totalorder %s107, %s108
    %p122 = scmp.eq.s32.totalorder %s22, 1
    %p123 = por %p121, %p122
    %p125 = scmp.ne.s32.totalorder %s108, %s124
    %p126 = scmp.eq.s32.totalorder %s22, 0
    %p127 = por %p125, %p126
    %s129 = sadd.s32 %s128, 1
    %p132 = scmp.eq.s32.totalorder %s16, 1
    %p133 = scmp.ne.s32.totalorder %s128, %s130
    %p134 = scmp.eq.s32.totalorder %s16, 0
    %p135 = por %p133, %p134
    %p136 = scmp.ne.s32.totalorder %s128, %s130
    %p137 = scmp.eq.s32.totalorder %s21, 1
    %p138 = por %p136, %p137
    %p139 = scmp.ne.s32.totalorder %s130, %s131
    %p140 = scmp.eq.s32.totalorder %s21, 0
    %p141 = por %p139, %p140
    %p142 = scmp.ne.s32.totalorder %s130, %s131
    %p143 = scmp.eq.s32.totalorder %s22, 1
    %p144 = por %p142, %p143
    %p146 = scmp.ne.s32.totalorder %s131, %s145
    %p147 = scmp.eq.s32.totalorder %s22, 0
    %p148 = por %p146, %p147
    %s150 = sadd.s32 %s149, 1
    %p153 = scmp.eq.s32.totalorder %s16, 1
    %p154 = scmp.ne.s32.totalorder %s149, %s151
    %p155 = scmp.eq.s32.totalorder %s16, 0
    %p156 = por %p154, %p155
    %p157 = scmp.ne.s32.totalorder %s149, %s151
    %p158 = scmp.eq.s32.totalorder %s21, 1
    %p159 = por %p157, %p158
    %p160 = scmp.ne.s32.totalorder %s151, %s152
    %p161 = scmp.eq.s32.totalorder %s21, 0
    %p162 = por %p160, %p161
    %p163 = scmp.ne.s32.totalorder %s151, %s152
    %p164 = scmp.eq.s32.totalorder %s22, 1
    %p165 = por %p163, %p164
    %p167 = scmp.ne.s32.totalorder %s152, %s166
    %p168 = scmp.eq.s32.totalorder %s22, 0
    %p169 = por %p167, %p168
    %s171 = sadd.s32 %s170, 1
    %p174 = scmp.eq.s32.totalorder %s16, 1
    %p175 = scmp.ne.s32.totalorder %s170, %s172
    %p176 = scmp.eq.s32.totalorder %s16, 0
    %p177 = por %p175, %p176
    %p178 = scmp.ne.s32.totalorder %s170, %s172
    %p179 = scmp.eq.s32.totalorder %s21, 1
    %p180 = por %p178, %p179
    %p181 = scmp.ne.s32.totalorder %s172, %s173
    %p182 = scmp.eq.s32.totalorder %s21, 0
    %p183 = por %p181, %p182
    %p184 = scmp.ne.s32.totalorder %s172, %s173
    %p185 = scmp.eq.s32.totalorder %s22, 1
    %p186 = por %p184, %p185
    %p188 = scmp.ne.s32.totalorder %s173, %s187
    %p189 = scmp.eq.s32.totalorder %s22, 0
    %p190 = por %p188, %p189
    %s192 = sadd.s32 %s191, 1
    %p195 = scmp.eq.s32.totalorder %s16, 1
    %p196 = scmp.ne.s32.totalorder %s191, %s193
    %p197 = scmp.eq.s32.totalorder %s16, 0
    %p198 = por %p196, %p197
    %p199 = scmp.ne.s32.totalorder %s191, %s193
    %p200 = scmp.eq.s32.totalorder %s21, 1
    %p201 = por %p199, %p200
    %p202 = scmp.ne.s32.totalorder %s193, %s194
    %p203 = scmp.eq.s32.totalorder %s21, 0
    %p204 = por %p202, %p203
    %p205 = scmp.ne.s32.totalorder %s193, %s194
    %p206 = scmp.eq.s32.totalorder %s22, 1
    %p207 = por %p205, %p206
    %p209 = scmp.ne.s32.totalorder %s194, %s208
    %p210 = scmp.eq.s32.totalorder %s22, 0
    %p211 = por %p209, %p210
    %s213 = sadd.s32 %s212, 1
    %p216 = scmp.eq.s32.totalorder %s16, 1
    %p217 = scmp.ne.s32.totalorder %s212, %s214
    %p218 = scmp.eq.s32.totalorder %s16, 0
    %p219 = por %p217, %p218
    %p220 = scmp.ne.s32.totalorder %s212, %s214
    %p221 = scmp.eq.s32.totalorder %s21, 1
    %p222 = por %p220, %p221
    %p223 = scmp.ne.s32.totalorder %s214, %s215
    %p224 = scmp.eq.s32.totalorder %s21, 0
    %p225 = por %p223, %p224
    %p226 = scmp.ne.s32.totalorder %s214, %s215
    %p227 = scmp.eq.s32.totalorder %s22, 1
    %p228 = por %p226, %p227
    %p230 = scmp.ne.s32.totalorder %s215, %s229
    %p231 = scmp.eq.s32.totalorder %s22, 0
    %p232 = por %p230, %p231
    %s234 = sadd.s32 %s233, 1
    %p237 = scmp.eq.s32.totalorder %s16, 1
    %p238 = scmp.ne.s32.totalorder %s233, %s235
    %p239 = scmp.eq.s32.totalorder %s16, 0
    %p240 = por %p238, %p239
    %p241 = scmp.ne.s32.totalorder %s233, %s235
    %p242 = scmp.eq.s32.totalorder %s21, 1
    %p243 = por %p241, %p242
    %p244 = scmp.ne.s32.totalorder %s235, %s236
    %p245 = scmp.eq.s32.totalorder %s21, 0
    %p246 = por %p244, %p245
    %p247 = scmp.ne.s32.totalorder %s235, %s236
    %p248 = scmp.eq.s32.totalorder %s22, 1
    %p249 = por %p247, %p248
    %p251 = scmp.ne.s32.totalorder %s236, %s250
    %p252 = scmp.eq.s32.totalorder %s22, 0
    %p253 = por %p251, %p252
    %s254 = ssub.s32 %s16, %s23
    %p255 = scmp.eq.s32.totalorder %s254, 0
    %s257 = sadd.s32 %s256, 1
    %s258 = scalar_select %p255, %s256, %s257
    %p261 = pneg %p255
    %p262 = scmp.eq.s32.totalorder %s16, 1
    %p263 = por %p261, %p262
    %p264 = scmp.ne.s32.totalorder %s256, %s259
    %p265 = scmp.eq.s32.totalorder %s16, 0
    %p266 = por %p264, %p265
    %p267 = scmp.ne.s32.totalorder %s256, %s259
    %p268 = scmp.eq.s32.totalorder %s21, 1
    %p269 = por %p267, %p268
    %p270 = scmp.ne.s32.totalorder %s259, %s260
    %p271 = scmp.eq.s32.totalorder %s21, 0
    %p272 = por %p270, %p271
    %p273 = scmp.ne.s32.totalorder %s259, %s260
    %p274 = scmp.eq.s32.totalorder %s22, 1
    %p275 = por %p273, %p274
    %p277 = scmp.ne.s32.totalorder %s260, %s276
    %p278 = scmp.eq.s32.totalorder %s22, 0
    %p279 = por %p277, %p278
    %p280 = scmp.le.s32.totalorder 1, %s16
    %p281 = scmp.lt.s32.totalorder %s16, 3
    %p282 = pnand %p280, %p281
    %p283 = pneg %p282
    // Predicated region
    $region9: #{simple_block_forward.1} parent=5 // pred_check
      _
    $region10: #{simple_block_forward.1} parent=5 // pred_check_branch
      %285 = sbr.rel (%p282) target = $region12
    $region11: #{simple_block_forward.1} parent=5 // pred_region
      %s286 = ssub.s32 %s16, 1
      // Predicated region
      $region13: #{simple_block_forward.1} parent=11 // pred_check
        %p287 = pneg %p141
      $region14: #{simple_block_forward.1} parent=11 // pred_check_branch
        %289 = sbr.rel (%p287) target = $region16
      $region15: #{simple_block_forward.1} parent=11 // pred_region
        _
      $region16: #{simple_block_forward.1} parent=11 // pred_fallthru
        _
      // Predicated region
      $region17: #{simple_block_forward.1} parent=11 // pred_check
        %p290 = pneg %p162
      $region18: #{simple_block_forward.1} parent=11 // pred_check_branch
        %292 = sbr.rel (%p290) target = $region20
      $region19: #{simple_block_forward.1} parent=11 // pred_region
        _
      $region20: #{simple_block_forward.1} parent=11 // pred_fallthru
        _
      // Predicated region
      $region21: #{simple_block_forward.1} parent=11 // pred_check
        %p293 = pneg %p183
      $region22: #{simple_block_forward.1} parent=11 // pred_check_branch
        %295 = sbr.rel (%p293) target = $region24
      $region23: #{simple_block_forward.1} parent=11 // pred_region
        _
      $region24: #{simple_block_forward.1} parent=11 // pred_fallthru
        _
      // Predicated region
      $region25: #{simple_block_forward.1} parent=11 // pred_check
        %p296 = pneg %p204
      $region26: #{simple_block_forward.1} parent=11 // pred_check_branch
        %298 = sbr.rel (%p296) target = $region28
      $region27: #{simple_block_forward.1} parent=11 // pred_region
        _
      $region28: #{simple_block_forward.1} parent=11 // pred_fallthru
        _
      // Predicated region
      $region29: #{simple_block_forward.1} parent=11 // pred_check
        %p299 = pneg %p225
      $region30: #{simple_block_forward.1} parent=11 // pred_check_branch
        %301 = sbr.rel (%p299) target = $region32
      $region31: #{simple_block_forward.1} parent=11 // pred_region
        _
      $region32: #{simple_block_forward.1} parent=11 // pred_fallthru
        _
      // Predicated region
      $region33: #{simple_block_forward.1} parent=11 // pred_check
        %p302 = pneg %p246
      $region34: #{simple_block_forward.1} parent=11 // pred_check_branch
        %304 = sbr.rel (%p302) target = $region36
      $region35: #{simple_block_forward.1} parent=11 // pred_region
        _
      $region36: #{simple_block_forward.1} parent=11 // pred_fallthru
        _
    $region12: #{simple_block_forward.1} parent=5 // pred_fallthru
      _
    %p305 = scmp.lt.s32.totalorder %s16, 2
    // Predicated region
    $region37: #{simple_block_forward.1} parent=5 // pred_check
      %p306 = pneg %p305
    $region38: #{simple_block_forward.1} parent=5 // pred_check_branch
      %308 = sbr.rel (%p306) target = $region40
    $region39: #{simple_block_forward.1} parent=5 // pred_region
      // Predicated region
      $region41: #{simple_block_forward.1} parent=39 // pred_check
        %p309 = pneg %p36
      $region42: #{simple_block_forward.1} parent=39 // pred_check_branch
        %311 = sbr.rel (%p309) target = $region44
      $region43: #{simple_block_forward.1} parent=39 // pred_region
        %p312 = scmp.lt.s32.totalorder %s16, 1
        %s313 = scalar_select %p312, %s16, 1
        %s314 = smul.addr %s313, 18
        %s315 = smul.addr %s314, 4
        %s316 = scalar_lea.vmem %s0, %s315
      $region44: #{simple_block_forward.1} parent=39 // pred_fallthru
        _
      // Predicated region
      $region45: #{simple_block_forward.1} parent=39 // pred_check
        %p317 = pneg %p62
      $region46: #{simple_block_forward.1} parent=39 // pred_check_branch
        %319 = sbr.rel (%p317) target = $region48
      $region47: #{simple_block_forward.1} parent=39 // pred_region
        %p320 = scmp.lt.s32.totalorder %s16, 1
        %s321 = scalar_select %p320, %s16, 1
        %s322 = smul.addr %s321, 18
        %s323 = smul.addr %s322, 4
        %s324 = scalar_lea.vmem %s1, %s323
      $region48: #{simple_block_forward.1} parent=39 // pred_fallthru
        _
      // Predicated region
      $region49: #{simple_block_forward.1} parent=39 // pred_check
        %p325 = pneg %p88
      $region50: #{simple_block_forward.1} parent=39 // pred_check_branch
        %327 = sbr.rel (%p325) target = $region52
      $region51: #{simple_block_forward.1} parent=39 // pred_region
        %p328 = scmp.lt.s32.totalorder %s16, 1
        %s329 = scalar_select %p328, %s16, 1
        %s330 = smul.addr %s329, 18
        %s331 = smul.addr %s330, 4
        %s332 = scalar_lea.vmem %s2, %s331
      $region52: #{simple_block_forward.1} parent=39 // pred_fallthru
        _
      // Predicated region
      $region53: #{simple_block_forward.1} parent=39 // pred_check
        %p333 = pneg %p114
      $region54: #{simple_block_forward.1} parent=39 // pred_check_branch
        %335 = sbr.rel (%p333) target = $region56
      $region55: #{simple_block_forward.1} parent=39 // pred_region
        %p336 = scmp.lt.s32.totalorder %s16, 1
        %s337 = scalar_select %p336, %s16, 1
        %s338 = smul.addr %s337, 18
        %s339 = smul.addr %s338, 4
        %s340 = scalar_lea.vmem %s3, %s339
      $region56: #{simple_block_forward.1} parent=39 // pred_fallthru
        _
    $region40: #{simple_block_forward.1} parent=5 // pred_fallthru
      _
    %p341 = scmp.le.s32.totalorder 1, %s16
    %p342 = scmp.lt.s32.totalorder %s16, 3
    %p343 = pnand %p341, %p342
    %p344 = pneg %p343
    // Predicated region
    $region57: #{simple_block_forward.1} parent=5 // pred_check
      _
    $region58: #{simple_block_forward.1} parent=5 // pred_check_branch
      %346 = sbr.rel (%p343) target = $region60
    $region59: #{simple_block_forward.1} parent=5 // pred_region
      %s347 = ssub.s32 %s16, 1
      %p348 = scmp.lt.s32.totalorder %s21, 1
      %s349 = scalar_select %p348, %s21, 1
      %s350 = smul.addr %s349, 18
      %s351 = smul.addr %s350, 4
      %s352 = scalar_lea.vmem %s0, %s351
      %p353 = pneg %p42
      %p354 = pneg %p39
      %p355 = scmp.lt.s32.totalorder %s21, 1
      %s356 = scalar_select %p355, %s21, 1
      %s357 = smul.addr %s356, 18
      %s358 = smul.addr %s357, 4
      %s359 = scalar_lea.vmem %s1, %s358
      %p360 = pneg %p68
      %p361 = pneg %p65
      %p362 = scmp.lt.s32.totalorder %s21, 1
      %s363 = scalar_select %p362, %s21, 1
      %s364 = smul.addr %s363, 18
      %s365 = smul.addr %s364, 4
      %s366 = scalar_lea.vmem %s2, %s365
      %p367 = pneg %p94
      %p368 = pneg %p91
      %p369 = scmp.lt.s32.totalorder %s21, 1
      %s370 = scalar_select %p369, %s21, 1
      %s371 = smul.addr %s370, 18
      %s372 = smul.addr %s371, 4
      %s373 = scalar_lea.vmem %s3, %s372
      %p374 = pneg %p120
      %p375 = pneg %p117
      %p376 = pneg %p141
      %p377 = pneg %p138
      %p378 = pneg %p162
      %p379 = pneg %p159
      %p380 = pneg %p183
      %p381 = pneg %p180
      %p382 = pneg %p204
      %p383 = pneg %p201
      %p384 = pneg %p225
      %p385 = pneg %p222
      %p386 = pneg %p246
      %p387 = pneg %p243
      %p388 = pneg %p272
      %p389 = pneg %p269
      %p390 = scmp.lt.s32.totalorder %s21, 1
      %s391 = scalar_select %p390, %s21, 1
      %s392 = smul.addr %s391, 8
      %s393 = smul.addr %s392, 8
      %s394 = scalar_lea.vmem %s10, %s393
      %p395 = scmp.lt.s32.totalorder %s21, 1
      %s396 = scalar_select %p395, %s21, 1
      %s397 = smul.addr %s396, 18
      %s398 = smul.addr %s397, 4
      %s399 = scalar_lea.vmem %s0, %s398
      %p400 = scmp.lt.s32.totalorder %s21, 1
      %s401 = scalar_select %p400, %s21, 1
      %s402 = smul.addr %s401, 18
      %s403 = smul.addr %s402, 4
      %s404 = scalar_lea.vmem %s1, %s403
      %p405 = scmp.lt.s32.totalorder %s21, 1
      %s406 = scalar_select %p405, %s21, 1
      %s407 = smul.addr %s406, 18
      %s408 = smul.addr %s407, 4
      %s409 = scalar_lea.vmem %s2, %s408
      %p410 = scmp.lt.s32.totalorder %s21, 1
      %s411 = scalar_select %p410, %s21, 1
      %s412 = smul.addr %s411, 18
      %s413 = smul.addr %s412, 4
      %s414 = scalar_lea.vmem %s3, %s413
      %p415 = scmp.lt.s32.totalorder %s21, 1
      %s416 = scalar_select %p415, %s21, 1
      %s417 = smul.addr %s416, 8
      %s418 = smul.addr %s417, 8
      %s419 = scalar_lea.vmem %s10, %s418
      %v421 = vld [vmem:[%s399] sm:$0xf]
      %v422 = vld [vmem:[%s399 + $0x8] sm:$0xf]
      %v423 = vld [vmem:[%s399 + $0x10] sm:$0xf]
      %v424 = vld [vmem:[%s399 + $0x18] sm:$0xf]
      %v425 = vld [vmem:[%s399 + $0x20] sm:$0xf]
      %v426 = vld [vmem:[%s399 + $0x28] sm:$0xf]
      %v427 = vld [vmem:[%s399 + $0x30] sm:$0xf]
      %v428 = vld [vmem:[%s399 + $0x38] sm:$0xf]
      %v429 = vld [vmem:[%s4] sm:$0x3]
      %v430 = vld [vmem:[%s404] sm:$0xf]
      %v431 = vld [vmem:[%s404 + $0x8] sm:$0xf]
      %v432 = vld [vmem:[%s404 + $0x10] sm:$0xf]
      %v433 = vld [vmem:[%s404 + $0x18] sm:$0xf]
      %v434 = vld [vmem:[%s404 + $0x20] sm:$0xf]
      %v435 = vld [vmem:[%s404 + $0x28] sm:$0xf]
      %v436 = vld [vmem:[%s404 + $0x30] sm:$0xf]
      %v437 = vld [vmem:[%s404 + $0x38] sm:$0xf]
      %s438 = scalar_lea.vmem %s4, 2
      %v439 = vld [vmem:[%s438] sm:$0x3]
      %v448 = vunpack.c.l.b16 %v430
      %v449 = vunpack.c.l.b16 %v431
      %v450 = vunpack.c.l.b16 %v432
      %v451 = vunpack.c.l.b16 %v433
      %v452 = vunpack.c.l.b16 %v434
      %v453 = vunpack.c.l.b16 %v435
      %v454 = vunpack.c.l.b16 %v436
      %v455 = vunpack.c.l.b16 %v437
      %v456 = vpack.c.b16 %v449, %v448
      %v457 = vpack.c.b16 %v451, %v450
      %v458 = vpack.c.b16 %v453, %v452
      %v459 = vpack.c.b16 %v455, %v454
      %vm460 = vcmask 31744
      %v462 = vsel %vm460, %v456, 0
      %v465 = vsel %vm460, %v457, 0
      %v468 = vsel %vm460, %v458, 0
      %v471 = vsel %vm460, %v459, 0
      %vm473 = vcmask 1041408
      %v475 = vsel %vm473, %v439, 0
      %477 = vmatprep.subr.bf16.mxu0 0
      %478 = vmatpush1.bf16.msra.mxu0 0
      %479 = vmatprep.subr.bf16.mxu0 0
      %480 = vmatpush1.bf16.msra.mxu0 0
      %481 = vmatprep.subr.bf16.mxu0 0
      %482 = vmatpush1.bf16.msra.mxu0 0
      %483 = vmatprep.subr.bf16.mxu0 0
      %484 = vmatpush1.bf16.msra.mxu0 0
      %485 = vmatprep.subr.bf16.mxu0 0
      %486 = vmatpush1.bf16.msra.mxu0 0
      %487 = vmatprep.subr.bf16.mxu0 0
      %488 = vmatpush1.bf16.msra.mxu0 0
      %489 = vmatprep.subr.bf16.mxu0 0
      %490 = vmatpush1.bf16.msra.mxu0 0
      %491 = vmatprep.subr.bf16.mxu0 0
      %492 = vmatpush1.bf16.msra.mxu0 %v475
      %493 = vmatprep.subr.bf16.mxu0 0
      %494 = vmatpush2.bf16.msra.mxu0 0
      %495 = vmatprep.subr.bf16.mxu0 0
      %496 = vmatpush2.bf16.msra.mxu0 0
      %497 = vmatprep.subr.bf16.mxu0 0
      %498 = vmatpush2.bf16.msra.mxu0 0
      %499 = vmatprep.subr.bf16.mxu0 0
      %500 = vmatpush2.bf16.msra.mxu0 0
      %501 = vmatprep.subr.bf16.mxu0 0
      %502 = vmatpush2.bf16.msra.mxu0 0
      %503 = vmatprep.subr.bf16.mxu0 0
      %504 = vmatpush2.bf16.msra.mxu0 0
      %505 = vmatprep.subr.bf16.mxu0 0
      %506 = vmatpush2.bf16.msra.mxu0 0
      %507 = vmatprep.subr.bf16.mxu0 0
      %508 = vmatpush2.bf16.msra.mxu0 0
      %509 = vmatprep.mubr.bf16.mxu0 0
      %510 = vmatmul.mubr.bf16.gmra.mxu0 %v462
      %v511 = vpop.f32.mrf.mxu0
      %v512 = vadd.f32 0.0, %v511
      %v513 = vpop.f32.mrf.mxu0
      %v514 = vpop.f32.mrf.mxu0
      %v515 = vadd.f32 0.0, %v514
      %v516 = vpop.f32.mrf.mxu0
      %517 = vmatprep.mubr.bf16.mxu0 0
      %518 = vmatmul.mubr.bf16.gmra.mxu0 %v465
      %v519 = vpop.f32.mrf.mxu0
      %v520 = vadd.f32 0.0, %v519
      %v521 = vpop.f32.mrf.mxu0
      %v522 = vpop.f32.mrf.mxu0
      %v523 = vadd.f32 0.0, %v522
      %v524 = vpop.f32.mrf.mxu0
      %525 = vmatprep.mubr.bf16.mxu0 0
      %526 = vmatmul.mubr.bf16.gmra.mxu0 %v468
      %v527 = vpop.f32.mrf.mxu0
      %v528 = vadd.f32 0.0, %v527
      %v529 = vpop.f32.mrf.mxu0
      %v530 = vpop.f32.mrf.mxu0
      %v531 = vadd.f32 0.0, %v530
      %v532 = vpop.f32.mrf.mxu0
      %533 = vmatprep.mubr.bf16.mxu0 0
      %534 = vmatmul.mubr.bf16.gmra.mxu0 %v471
      %v535 = vpop.f32.mrf.mxu0
      %v536 = vadd.f32 0.0, %v535
      %v537 = vpop.f32.mrf.mxu0
      %v538 = vpop.f32.mrf.mxu0
      %v539 = vadd.f32 0.0, %v538
      %v540 = vpop.f32.mrf.mxu0
      %541 = vdwg.mxu0
      %v550 = vunpack.c.l.b16 %v421
      %v551 = vunpack.c.l.b16 %v422
      %v552 = vunpack.c.l.b16 %v423
      %v553 = vunpack.c.l.b16 %v424
      %v554 = vunpack.c.l.b16 %v425
      %v555 = vunpack.c.l.b16 %v426
      %v556 = vunpack.c.l.b16 %v427
      %v557 = vunpack.c.l.b16 %v428
      %v558 = vpack.c.b16 %v551, %v550
      %v559 = vpack.c.b16 %v553, %v552
      %v560 = vpack.c.b16 %v555, %v554
      %v561 = vpack.c.b16 %v557, %v556
      %v563 = vsel %vm460, %v558, 0
      %v566 = vsel %vm460, %v559, 0
      %v569 = vsel %vm460, %v560, 0
      %v572 = vsel %vm460, %v561, 0
      %v575 = vsel %vm473, %v429, 0
      %577 = vmatprep.subr.bf16.mxu0 0
      %578 = vmatpush1.bf16.msra.mxu0 0
      %579 = vmatprep.subr.bf16.mxu0 0
      %580 = vmatpush1.bf16.msra.mxu0 0
      %581 = vmatprep.subr.bf16.mxu0 0
      %582 = vmatpush1.bf16.msra.mxu0 0
      %583 = vmatprep.subr.bf16.mxu0 0
      %584 = vmatpush1.bf16.msra.mxu0 0
      %585 = vmatprep.subr.bf16.mxu0 0
      %586 = vmatpush1.bf16.msra.mxu0 0
      %587 = vmatprep.subr.bf16.mxu0 0
      %588 = vmatpush1.bf16.msra.mxu0 0
      %589 = vmatprep.subr.bf16.mxu0 0
      %590 = vmatpush1.bf16.msra.mxu0 0
      %591 = vmatprep.subr.bf16.mxu0 0
      %592 = vmatpush1.bf16.msra.mxu0 %v575
      %593 = vmatprep.subr.bf16.mxu0 0
      %594 = vmatpush2.bf16.msra.mxu0 0
      %595 = vmatprep.subr.bf16.mxu0 0
      %596 = vmatpush2.bf16.msra.mxu0 0
      %597 = vmatprep.subr.bf16.mxu0 0
      %598 = vmatpush2.bf16.msra.mxu0 0
      %599 = vmatprep.subr.bf16.mxu0 0
      %600 = vmatpush2.bf16.msra.mxu0 0
      %601 = vmatprep.subr.bf16.mxu0 0
      %602 = vmatpush2.bf16.msra.mxu0 0
      %603 = vmatprep.subr.bf16.mxu0 0
      %604 = vmatpush2.bf16.msra.mxu0 0
      %605 = vmatprep.subr.bf16.mxu0 0
      %606 = vmatpush2.bf16.msra.mxu0 0
      %607 = vmatprep.subr.bf16.mxu0 0
      %608 = vmatpush2.bf16.msra.mxu0 0
      %609 = vmatprep.mubr.bf16.mxu0 0
      %610 = vmatmul.mubr.bf16.gmra.mxu0 %v563
      %v611 = vpop.f32.mrf.mxu0
      %v612 = vadd.f32 %v512, %v611
      %v613 = vpop.f32.mrf.mxu0
      %v614 = vpop.f32.mrf.mxu0
      %v615 = vadd.f32 %v515, %v614
      %v616 = vpop.f32.mrf.mxu0
      %617 = vmatprep.mubr.bf16.mxu0 0
      %618 = vmatmul.mubr.bf16.gmra.mxu0 %v566
      %v619 = vpop.f32.mrf.mxu0
      %v620 = vadd.f32 %v520, %v619
      %v621 = vpop.f32.mrf.mxu0
      %v622 = vpop.f32.mrf.mxu0
      %v623 = vadd.f32 %v523, %v622
      %v624 = vpop.f32.mrf.mxu0
      %625 = vmatprep.mubr.bf16.mxu0 0
      %626 = vmatmul.mubr.bf16.gmra.mxu0 %v569
      %v627 = vpop.f32.mrf.mxu0
      %v628 = vadd.f32 %v528, %v627
      %v629 = vpop.f32.mrf.mxu0
      %v630 = vpop.f32.mrf.mxu0
      %v631 = vadd.f32 %v531, %v630
      %v632 = vpop.f32.mrf.mxu0
      %633 = vmatprep.mubr.bf16.mxu0 0
      %634 = vmatmul.mubr.bf16.gmra.mxu0 %v572
      %v635 = vpop.f32.mrf.mxu0
      %v636 = vadd.f32 %v536, %v635
      %v637 = vpop.f32.mrf.mxu0
      %v638 = vpop.f32.mrf.mxu0
      %v639 = vadd.f32 %v539, %v638
      %v640 = vpop.f32.mrf.mxu0
      %641 = vdwg.mxu0
      %v642 = vld [vmem:[%s399] sm:$0xf]
      %v643 = vld [vmem:[%s399 + $0x4] sm:$0x1]
      %v644 = vld [vmem:[%s399 + $0x8] sm:$0xf]
      %v645 = vld [vmem:[%s399 + $0xc] sm:$0x1]
      %v646 = vld [vmem:[%s399 + $0x10] sm:$0xf]
      %v647 = vld [vmem:[%s399 + $0x14] sm:$0x1]
      %v648 = vld [vmem:[%s399 + $0x18] sm:$0xf]
      %v649 = vld [vmem:[%s399 + $0x1c] sm:$0x1]
      %v650 = vld [vmem:[%s399 + $0x20] sm:$0xf]
      %v651 = vld [vmem:[%s399 + $0x24] sm:$0x1]
      %v652 = vld [vmem:[%s399 + $0x28] sm:$0xf]
      %v653 = vld [vmem:[%s399 + $0x2c] sm:$0x1]
      %v654 = vld [vmem:[%s399 + $0x30] sm:$0xf]
      %v655 = vld [vmem:[%s399 + $0x34] sm:$0x1]
      %v656 = vld [vmem:[%s399 + $0x38] sm:$0xf]
      %v657 = vld [vmem:[%s399 + $0x3c] sm:$0x1]
      %vm658 = vsmask.f32 3328
      %vm659 = vsmask.f32 7440
      %vm660 = vmor %vm658, %vm659
      %v662 = vshrl.u32 %v642, 16
      %v664 = vrot.slane %v662, 4
      %v665 = vshll.u32 %v642, 16
      %v667 = vrot.slane %v665, 5
      %v668 = vor.u32 %v664, %v667
      %v669 = vrot.slane %v668, 4
      %v671 = vshll.u32 %v643, 16
      %v673 = vrot.slane %v671, 5
      %v674 = vsel %vm660, %v669, %v673
      %v676 = vshrl.u32 %v644, 16
      %v678 = vrot.slane %v676, 4
      %v679 = vshll.u32 %v644, 16
      %v681 = vrot.slane %v679, 5
      %v682 = vor.u32 %v678, %v681
      %v683 = vrot.slane %v682, 4
      %v685 = vshll.u32 %v645, 16
      %v687 = vrot.slane %v685, 5
      %v688 = vsel %vm660, %v683, %v687
      %v690 = vshrl.u32 %v646, 16
      %v692 = vrot.slane %v690, 4
      %v693 = vshll.u32 %v646, 16
      %v695 = vrot.slane %v693, 5
      %v696 = vor.u32 %v692, %v695
      %v697 = vrot.slane %v696, 4
      %v699 = vshll.u32 %v647, 16
      %v701 = vrot.slane %v699, 5
      %v702 = vsel %vm660, %v697, %v701
      %v704 = vshrl.u32 %v648, 16
      %v706 = vrot.slane %v704, 4
      %v707 = vshll.u32 %v648, 16
      %v709 = vrot.slane %v707, 5
      %v710 = vor.u32 %v706, %v709
      %v711 = vrot.slane %v710, 4
      %v713 = vshll.u32 %v649, 16
      %v715 = vrot.slane %v713, 5
      %v716 = vsel %vm660, %v711, %v715
      %v718 = vshrl.u32 %v650, 16
      %v720 = vrot.slane %v718, 4
      %v721 = vshll.u32 %v650, 16
      %v723 = vrot.slane %v721, 5
      %v724 = vor.u32 %v720, %v723
      %v725 = vrot.slane %v724, 4
      %v727 = vshll.u32 %v651, 16
      %v729 = vrot.slane %v727, 5
      %v730 = vsel %vm660, %v725, %v729
      %v732 = vshrl.u32 %v652, 16
      %v734 = vrot.slane %v732, 4
      %v735 = vshll.u32 %v652, 16
      %v737 = vrot.slane %v735, 5
      %v738 = vor.u32 %v734, %v737
      %v739 = vrot.slane %v738, 4
      %v741 = vshll.u32 %v653, 16
      %v743 = vrot.slane %v741, 5
      %v744 = vsel %vm660, %v739, %v743
      %v746 = vshrl.u32 %v654, 16
      %v748 = vrot.slane %v746, 4
      %v749 = vshll.u32 %v654, 16
      %v751 = vrot.slane %v749, 5
      %v752 = vor.u32 %v748, %v751
      %v753 = vrot.slane %v752, 4
      %v755 = vshll.u32 %v655, 16
      %v757 = vrot.slane %v755, 5
      %v758 = vsel %vm660, %v753, %v757
      %v760 = vshrl.u32 %v656, 16
      %v762 = vrot.slane %v760, 4
      %v763 = vshll.u32 %v656, 16
      %v765 = vrot.slane %v763, 5
      %v766 = vor.u32 %v762, %v765
      %v767 = vrot.slane %v766, 4
      %v769 = vshll.u32 %v657, 16
      %v771 = vrot.slane %v769, 5
      %v772 = vsel %vm660, %v767, %v771
      %s773 = scalar_lea.vmem %s4, 4
      %v774 = vld [vmem:[%s773] sm:$0x3]
      %v775 = vunpack.c.l.b16 %v674
      %v776 = vunpack.c.l.b16 %v688
      %v777 = vunpack.c.l.b16 %v702
      %v778 = vunpack.c.l.b16 %v716
      %v779 = vunpack.c.l.b16 %v730
      %v780 = vunpack.c.l.b16 %v744
      %v781 = vunpack.c.l.b16 %v758
      %v782 = vunpack.c.l.b16 %v772
      %v783 = vpack.c.b16 %v776, %v775
      %v784 = vpack.c.b16 %v778, %v777
      %v785 = vpack.c.b16 %v780, %v779
      %v786 = vpack.c.b16 %v782, %v781
      %v788 = vsel %vm460, %v783, 0
      %v791 = vsel %vm460, %v784, 0
      %v794 = vsel %vm460, %v785, 0
      %v797 = vsel %vm460, %v786, 0
      %v800 = vsel %vm473, %v774, 0
      %802 = vmatprep.subr.bf16.mxu0 0
      %803 = vmatpush1.bf16.msra.mxu0 0
      %804 = vmatprep.subr.bf16.mxu0 0
      %805 = vmatpush1.bf16.msra.mxu0 0
      %806 = vmatprep.subr.bf16.mxu0 0
      %807 = vmatpush1.bf16.msra.mxu0 0
      %808 = vmatprep.subr.bf16.mxu0 0
      %809 = vmatpush1.bf16.msra.mxu0 0
      %810 = vmatprep.subr.bf16.mxu0 0
      %811 = vmatpush1.bf16.msra.mxu0 0
      %812 = vmatprep.subr.bf16.mxu0 0
      %813 = vmatpush1.bf16.msra.mxu0 0
      %814 = vmatprep.subr.bf16.mxu0 0
      %815 = vmatpush1.bf16.msra.mxu0 0
      %816 = vmatprep.subr.bf16.mxu0 0
      %817 = vmatpush1.bf16.msra.mxu0 %v800
      %818 = vmatprep.subr.bf16.mxu0 0
      %819 = vmatpush2.bf16.msra.mxu0 0
      %820 = vmatprep.subr.bf16.mxu0 0
      %821 = vmatpush2.bf16.msra.mxu0 0
      %822 = vmatprep.subr.bf16.mxu0 0
      %823 = vmatpush2.bf16.msra.mxu0 0
      %824 = vmatprep.subr.bf16.mxu0 0
      %825 = vmatpush2.bf16.msra.mxu0 0
      %826 = vmatprep.subr.bf16.mxu0 0
      %827 = vmatpush2.bf16.msra.mxu0 0
      %828 = vmatprep.subr.bf16.mxu0 0
      %829 = vmatpush2.bf16.msra.mxu0 0
      %830 = vmatprep.subr.bf16.mxu0 0
      %831 = vmatpush2.bf16.msra.mxu0 0
      %832 = vmatprep.subr.bf16.mxu0 0
      %833 = vmatpush2.bf16.msra.mxu0 0
      %834 = vmatprep.mubr.bf16.mxu0 0
      %835 = vmatmul.mubr.bf16.gmra.mxu0 %v788
      %v836 = vpop.f32.mrf.mxu0
      %v837 = vadd.f32 0.0, %v836
      %v838 = vpop.f32.mrf.mxu0
      %v839 = vpop.f32.mrf.mxu0
      %v840 = vadd.f32 0.0, %v839
      %v841 = vpop.f32.mrf.mxu0
      %842 = vmatprep.mubr.bf16.mxu0 0
      %843 = vmatmul.mubr.bf16.gmra.mxu0 %v791
      %v844 = vpop.f32.mrf.mxu0
      %v845 = vadd.f32 0.0, %v844
      %v846 = vpop.f32.mrf.mxu0
      %v847 = vpop.f32.mrf.mxu0
      %v848 = vadd.f32 0.0, %v847
      %v849 = vpop.f32.mrf.mxu0
      %850 = vmatprep.mubr.bf16.mxu0 0
      %851 = vmatmul.mubr.bf16.gmra.mxu0 %v794
      %v852 = vpop.f32.mrf.mxu0
      %v853 = vadd.f32 0.0, %v852
      %v854 = vpop.f32.mrf.mxu0
      %v855 = vpop.f32.mrf.mxu0
      %v856 = vadd.f32 0.0, %v855
      %v857 = vpop.f32.mrf.mxu0
      %858 = vmatprep.mubr.bf16.mxu0 0
      %859 = vmatmul.mubr.bf16.gmra.mxu0 %v797
      %v860 = vpop.f32.mrf.mxu0
      %v861 = vadd.f32 0.0, %v860
      %v862 = vpop.f32.mrf.mxu0
      %v863 = vpop.f32.mrf.mxu0
      %v864 = vadd.f32 0.0, %v863
      %v865 = vpop.f32.mrf.mxu0
      %866 = vdwg.mxu0
      %v867 = vadd.f32 %v612, %v837
      %v868 = vadd.f32 %v615, %v840
      %v869 = vadd.f32 %v620, %v845
      %v870 = vadd.f32 %v623, %v848
      %v871 = vadd.f32 %v628, %v853
      %v872 = vadd.f32 %v631, %v856
      %v873 = vadd.f32 %v636, %v861
      %v874 = vadd.f32 %v639, %v864
      %v875 = vld [vmem:[%s409] sm:$0xf]
      %v876 = vld [vmem:[%s409 + $0x8] sm:$0xf]
      %v877 = vld [vmem:[%s409 + $0x10] sm:$0xf]
      %v878 = vld [vmem:[%s409 + $0x18] sm:$0xf]
      %v879 = vld [vmem:[%s409 + $0x20] sm:$0xf]
      %v880 = vld [vmem:[%s409 + $0x28] sm:$0xf]
      %v881 = vld [vmem:[%s409 + $0x30] sm:$0xf]
      %v882 = vld [vmem:[%s409 + $0x38] sm:$0xf]
      %s883 = scalar_lea.vmem %s4, 6
      %v884 = vld [vmem:[%s883] sm:$0x3]
      %v893 = vunpack.c.l.b16 %v875
      %v894 = vunpack.c.l.b16 %v876
      %v895 = vunpack.c.l.b16 %v877
      %v896 = vunpack.c.l.b16 %v878
      %v897 = vunpack.c.l.b16 %v879
      %v898 = vunpack.c.l.b16 %v880
      %v899 = vunpack.c.l.b16 %v881
      %v900 = vunpack.c.l.b16 %v882
      %v901 = vpack.c.b16 %v894, %v893
      %v902 = vpack.c.b16 %v896, %v895
      %v903 = vpack.c.b16 %v898, %v897
      %v904 = vpack.c.b16 %v900, %v899
      %v906 = vsel %vm460, %v901, 0
      %v909 = vsel %vm460, %v902, 0
      %v912 = vsel %vm460, %v903, 0
      %v915 = vsel %vm460, %v904, 0
      %v918 = vsel %vm473, %v884, 0
      %920 = vmatprep.subr.bf16.mxu0 0
      %921 = vmatpush1.bf16.msra.mxu0 0
      %922 = vmatprep.subr.bf16.mxu0 0
      %923 = vmatpush1.bf16.msra.mxu0 0
      %924 = vmatprep.subr.bf16.mxu0 0
      %925 = vmatpush1.bf16.msra.mxu0 0
      %926 = vmatprep.subr.bf16.mxu0 0
      %927 = vmatpush1.bf16.msra.mxu0 0
      %928 = vmatprep.subr.bf16.mxu0 0
      %929 = vmatpush1.bf16.msra.mxu0 0
      %930 = vmatprep.subr.bf16.mxu0 0
      %931 = vmatpush1.bf16.msra.mxu0 0
      %932 = vmatprep.subr.bf16.mxu0 0
      %933 = vmatpush1.bf16.msra.mxu0 0
      %934 = vmatprep.subr.bf16.mxu0 0
      %935 = vmatpush1.bf16.msra.mxu0 %v918
      %936 = vmatprep.subr.bf16.mxu0 0
      %937 = vmatpush2.bf16.msra.mxu0 0
      %938 = vmatprep.subr.bf16.mxu0 0
      %939 = vmatpush2.bf16.msra.mxu0 0
      %940 = vmatprep.subr.bf16.mxu0 0
      %941 = vmatpush2.bf16.msra.mxu0 0
      %942 = vmatprep.subr.bf16.mxu0 0
      %943 = vmatpush2.bf16.msra.mxu0 0
      %944 = vmatprep.subr.bf16.mxu0 0
      %945 = vmatpush2.bf16.msra.mxu0 0
      %946 = vmatprep.subr.bf16.mxu0 0
      %947 = vmatpush2.bf16.msra.mxu0 0
      %948 = vmatprep.subr.bf16.mxu0 0
      %949 = vmatpush2.bf16.msra.mxu0 0
      %950 = vmatprep.subr.bf16.mxu0 0
      %951 = vmatpush2.bf16.msra.mxu0 0
      %952 = vmatprep.mubr.bf16.mxu0 0
      %953 = vmatmul.mubr.bf16.gmra.mxu0 %v906
      %v954 = vpop.f32.mrf.mxu0
      %v955 = vadd.f32 0.0, %v954
      %v956 = vpop.f32.mrf.mxu0
      %v957 = vpop.f32.mrf.mxu0
      %v958 = vadd.f32 0.0, %v957
      %v959 = vpop.f32.mrf.mxu0
      %960 = vmatprep.mubr.bf16.mxu0 0
      %961 = vmatmul.mubr.bf16.gmra.mxu0 %v909
      %v962 = vpop.f32.mrf.mxu0
      %v963 = vadd.f32 0.0, %v962
      %v964 = vpop.f32.mrf.mxu0
      %v965 = vpop.f32.mrf.mxu0
      %v966 = vadd.f32 0.0, %v965
      %v967 = vpop.f32.mrf.mxu0
      %968 = vmatprep.mubr.bf16.mxu0 0
      %969 = vmatmul.mubr.bf16.gmra.mxu0 %v912
      %v970 = vpop.f32.mrf.mxu0
      %v971 = vadd.f32 0.0, %v970
      %v972 = vpop.f32.mrf.mxu0
      %v973 = vpop.f32.mrf.mxu0
      %v974 = vadd.f32 0.0, %v973
      %v975 = vpop.f32.mrf.mxu0
      %976 = vmatprep.mubr.bf16.mxu0 0
      %977 = vmatmul.mubr.bf16.gmra.mxu0 %v915
      %v978 = vpop.f32.mrf.mxu0
      %v979 = vadd.f32 0.0, %v978
      %v980 = vpop.f32.mrf.mxu0
      %v981 = vpop.f32.mrf.mxu0
      %v982 = vadd.f32 0.0, %v981
      %v983 = vpop.f32.mrf.mxu0
      %984 = vdwg.mxu0
      %v985 = vadd.f32 %v867, %v955
      %v986 = vadd.f32 %v868, %v958
      %v987 = vadd.f32 %v869, %v963
      %v988 = vadd.f32 %v870, %v966
      %v989 = vadd.f32 %v871, %v971
      %v990 = vadd.f32 %v872, %v974
      %v991 = vadd.f32 %v873, %v979
      %v992 = vadd.f32 %v874, %v982
      %v993 = vld [vmem:[%s414] sm:$0xf]
      %v994 = vld [vmem:[%s414 + $0x8] sm:$0xf]
      %v995 = vld [vmem:[%s414 + $0x10] sm:$0xf]
      %v996 = vld [vmem:[%s414 + $0x18] sm:$0xf]
      %v997 = vld [vmem:[%s414 + $0x20] sm:$0xf]
      %v998 = vld [vmem:[%s414 + $0x28] sm:$0xf]
      %v999 = vld [vmem:[%s414 + $0x30] sm:$0xf]
      %v1000 = vld [vmem:[%s414 + $0x38] sm:$0xf]
      %s1001 = scalar_lea.vmem %s4, 8
      %v1002 = vld [vmem:[%s1001] sm:$0x3]
      %v1011 = vunpack.c.l.b16 %v993
      %v1012 = vunpack.c.l.b16 %v994
      %v1013 = vunpack.c.l.b16 %v995
      %v1014 = vunpack.c.l.b16 %v996
      %v1015 = vunpack.c.l.b16 %v997
      %v1016 = vunpack.c.l.b16 %v998
      %v1017 = vunpack.c.l.b16 %v999
      %v1018 = vunpack.c.l.b16 %v1000
      %v1019 = vpack.c.b16 %v1012, %v1011
      %v1020 = vpack.c.b16 %v1014, %v1013
      %v1021 = vpack.c.b16 %v1016, %v1015
      %v1022 = vpack.c.b16 %v1018, %v1017
      %v1024 = vsel %vm460, %v1019, 0
      %v1027 = vsel %vm460, %v1020, 0
      %v1030 = vsel %vm460, %v1021, 0
      %v1033 = vsel %vm460, %v1022, 0
      %v1036 = vsel %vm473, %v1002, 0
      %1038 = vmatprep.subr.bf16.mxu0 0
      %1039 = vmatpush1.bf16.msra.mxu0 0
      %1040 = vmatprep.subr.bf16.mxu0 0
      %1041 = vmatpush1.bf16.msra.mxu0 0
      %1042 = vmatprep.subr.bf16.mxu0 0
      %1043 = vmatpush1.bf16.msra.mxu0 0
      %1044 = vmatprep.subr.bf16.mxu0 0
      %1045 = vmatpush1.bf16.msra.mxu0 0
      %1046 = vmatprep.subr.bf16.mxu0 0
      %1047 = vmatpush1.bf16.msra.mxu0 0
      %1048 = vmatprep.subr.bf16.mxu0 0
      %1049 = vmatpush1.bf16.msra.mxu0 0
      %1050 = vmatprep.subr.bf16.mxu0 0
      %1051 = vmatpush1.bf16.msra.mxu0 0
      %1052 = vmatprep.subr.bf16.mxu0 0
      %1053 = vmatpush1.bf16.msra.mxu0 %v1036
      %1054 = vmatprep.subr.bf16.mxu0 0
      %1055 = vmatpush2.bf16.msra.mxu0 0
      %1056 = vmatprep.subr.bf16.mxu0 0
      %1057 = vmatpush2.bf16.msra.mxu0 0
      %1058 = vmatprep.subr.bf16.mxu0 0
      %1059 = vmatpush2.bf16.msra.mxu0 0
      %1060 = vmatprep.subr.bf16.mxu0 0
      %1061 = vmatpush2.bf16.msra.mxu0 0
      %1062 = vmatprep.subr.bf16.mxu0 0
      %1063 = vmatpush2.bf16.msra.mxu0 0
      %1064 = vmatprep.subr.bf16.mxu0 0
      %1065 = vmatpush2.bf16.msra.mxu0 0
      %1066 = vmatprep.subr.bf16.mxu0 0
      %1067 = vmatpush2.bf16.msra.mxu0 0
      %1068 = vmatprep.subr.bf16.mxu0 0
      %1069 = vmatpush2.bf16.msra.mxu0 0
      %1070 = vmatprep.mubr.bf16.mxu0 0
      %1071 = vmatmul.mubr.bf16.gmra.mxu0 %v1024
      %v1072 = vpop.f32.mrf.mxu0
      %v1073 = vadd.f32 0.0, %v1072
      %v1074 = vpop.f32.mrf.mxu0
      %v1075 = vpop.f32.mrf.mxu0
      %v1076 = vadd.f32 0.0, %v1075
      %v1077 = vpop.f32.mrf.mxu0
      %1078 = vmatprep.mubr.bf16.mxu0 0
      %1079 = vmatmul.mubr.bf16.gmra.mxu0 %v1027
      %v1080 = vpop.f32.mrf.mxu0
      %v1081 = vadd.f32 0.0, %v1080
      %v1082 = vpop.f32.mrf.mxu0
      %v1083 = vpop.f32.mrf.mxu0
      %v1084 = vadd.f32 0.0, %v1083
      %v1085 = vpop.f32.mrf.mxu0
      %1086 = vmatprep.mubr.bf16.mxu0 0
      %1087 = vmatmul.mubr.bf16.gmra.mxu0 %v1030
      %v1088 = vpop.f32.mrf.mxu0
      %v1089 = vadd.f32 0.0, %v1088
      %v1090 = vpop.f32.mrf.mxu0
      %v1091 = vpop.f32.mrf.mxu0
      %v1092 = vadd.f32 0.0, %v1091
      %v1093 = vpop.f32.mrf.mxu0
      %1094 = vmatprep.mubr.bf16.mxu0 0
      %1095 = vmatmul.mubr.bf16.gmra.mxu0 %v1033
      %v1096 = vpop.f32.mrf.mxu0
      %v1097 = vadd.f32 0.0, %v1096
      %v1098 = vpop.f32.mrf.mxu0
      %v1099 = vpop.f32.mrf.mxu0
      %v1100 = vadd.f32 0.0, %v1099
      %v1101 = vpop.f32.mrf.mxu0
      %1102 = vdwg.mxu0
      %v1103 = vadd.f32 %v985, %v1073
      %v1104 = vadd.f32 %v986, %v1076
      %v1105 = vadd.f32 %v987, %v1081
      %v1106 = vadd.f32 %v988, %v1084
      %v1107 = vadd.f32 %v989, %v1089
      %v1108 = vadd.f32 %v990, %v1092
      %v1109 = vadd.f32 %v991, %v1097
      %v1110 = vadd.f32 %v992, %v1100
      %v1111 = vld [vmem:[%s409] sm:$0xf]
      %v1112 = vld [vmem:[%s409 + $0x4] sm:$0x1]
      %v1113 = vld [vmem:[%s409 + $0x8] sm:$0xf]
      %v1114 = vld [vmem:[%s409 + $0xc] sm:$0x1]
      %v1115 = vld [vmem:[%s409 + $0x10] sm:$0xf]
      %v1116 = vld [vmem:[%s409 + $0x14] sm:$0x1]
      %v1117 = vld [vmem:[%s409 + $0x18] sm:$0xf]
      %v1118 = vld [vmem:[%s409 + $0x1c] sm:$0x1]
      %v1119 = vld [vmem:[%s409 + $0x20] sm:$0xf]
      %v1120 = vld [vmem:[%s409 + $0x24] sm:$0x1]
      %v1121 = vld [vmem:[%s409 + $0x28] sm:$0xf]
      %v1122 = vld [vmem:[%s409 + $0x2c] sm:$0x1]
      %v1123 = vld [vmem:[%s409 + $0x30] sm:$0xf]
      %v1124 = vld [vmem:[%s409 + $0x34] sm:$0x1]
      %v1125 = vld [vmem:[%s409 + $0x38] sm:$0xf]
      %v1126 = vld [vmem:[%s409 + $0x3c] sm:$0x1]
      %v1128 = vshrl.u32 %v1111, 16
      %v1130 = vrot.slane %v1128, 4
      %v1131 = vshll.u32 %v1111, 16
      %v1133 = vrot.slane %v1131, 5
      %v1134 = vor.u32 %v1130, %v1133
      %v1135 = vrot.slane %v1134, 4
      %v1137 = vshll.u32 %v1112, 16
      %v1139 = vrot.slane %v1137, 5
      %v1140 = vsel %vm660, %v1135, %v1139
      %v1142 = vshrl.u32 %v1113, 16
      %v1144 = vrot.slane %v1142, 4
      %v1145 = vshll.u32 %v1113, 16
      %v1147 = vrot.slane %v1145, 5
      %v1148 = vor.u32 %v1144, %v1147
      %v1149 = vrot.slane %v1148, 4
      %v1151 = vshll.u32 %v1114, 16
      %v1153 = vrot.slane %v1151, 5
      %v1154 = vsel %vm660, %v1149, %v1153
      %v1156 = vshrl.u32 %v1115, 16
      %v1158 = vrot.slane %v1156, 4
      %v1159 = vshll.u32 %v1115, 16
      %v1161 = vrot.slane %v1159, 5
      %v1162 = vor.u32 %v1158, %v1161
      %v1163 = vrot.slane %v1162, 4
      %v1165 = vshll.u32 %v1116, 16
      %v1167 = vrot.slane %v1165, 5
      %v1168 = vsel %vm660, %v1163, %v1167
      %v1170 = vshrl.u32 %v1117, 16
      %v1172 = vrot.slane %v1170, 4
      %v1173 = vshll.u32 %v1117, 16
      %v1175 = vrot.slane %v1173, 5
      %v1176 = vor.u32 %v1172, %v1175
      %v1177 = vrot.slane %v1176, 4
      %v1179 = vshll.u32 %v1118, 16
      %v1181 = vrot.slane %v1179, 5
      %v1182 = vsel %vm660, %v1177, %v1181
      %v1184 = vshrl.u32 %v1119, 16
      %v1186 = vrot.slane %v1184, 4
      %v1187 = vshll.u32 %v1119, 16
      %v1189 = vrot.slane %v1187, 5
      %v1190 = vor.u32 %v1186, %v1189
      %v1191 = vrot.slane %v1190, 4
      %v1193 = vshll.u32 %v1120, 16
      %v1195 = vrot.slane %v1193, 5
      %v1196 = vsel %vm660, %v1191, %v1195
      %v1198 = vshrl.u32 %v1121, 16
      %v1200 = vrot.slane %v1198, 4
      %v1201 = vshll.u32 %v1121, 16
      %v1203 = vrot.slane %v1201, 5
      %v1204 = vor.u32 %v1200, %v1203
      %v1205 = vrot.slane %v1204, 4
      %v1207 = vshll.u32 %v1122, 16
      %v1209 = vrot.slane %v1207, 5
      %v1210 = vsel %vm660, %v1205, %v1209
      %v1212 = vshrl.u32 %v1123, 16
      %v1214 = vrot.slane %v1212, 4
      %v1215 = vshll.u32 %v1123, 16
      %v1217 = vrot.slane %v1215, 5
      %v1218 = vor.u32 %v1214, %v1217
      %v1219 = vrot.slane %v1218, 4
      %v1221 = vshll.u32 %v1124, 16
      %v1223 = vrot.slane %v1221, 5
      %v1224 = vsel %vm660, %v1219, %v1223
      %v1226 = vshrl.u32 %v1125, 16
      %v1228 = vrot.slane %v1226, 4
      %v1229 = vshll.u32 %v1125, 16
      %v1231 = vrot.slane %v1229, 5
      %v1232 = vor.u32 %v1228, %v1231
      %v1233 = vrot.slane %v1232, 4
      %v1235 = vshll.u32 %v1126, 16
      %v1237 = vrot.slane %v1235, 5
      %v1238 = vsel %vm660, %v1233, %v1237
      %s1239 = scalar_lea.vmem %s4, 10
      %v1240 = vld [vmem:[%s1239] sm:$0x3]
      %v1241 = vunpack.c.l.b16 %v1140
      %v1242 = vunpack.c.l.b16 %v1154
      %v1243 = vunpack.c.l.b16 %v1168
      %v1244 = vunpack.c.l.b16 %v1182
      %v1245 = vunpack.c.l.b16 %v1196
      %v1246 = vunpack.c.l.b16 %v1210
      %v1247 = vunpack.c.l.b16 %v1224
      %v1248 = vunpack.c.l.b16 %v1238
      %v1249 = vpack.c.b16 %v1242, %v1241
      %v1250 = vpack.c.b16 %v1244, %v1243
      %v1251 = vpack.c.b16 %v1246, %v1245
      %v1252 = vpack.c.b16 %v1248, %v1247
      %v1254 = vsel %vm460, %v1249, 0
      %v1257 = vsel %vm460, %v1250, 0
      %v1260 = vsel %vm460, %v1251, 0
      %v1263 = vsel %vm460, %v1252, 0
      %v1266 = vsel %vm473, %v1240, 0
      %1268 = vmatprep.subr.bf16.mxu0 0
      %1269 = vmatpush1.bf16.msra.mxu0 0
      %1270 = vmatprep.subr.bf16.mxu0 0
      %1271 = vmatpush1.bf16.msra.mxu0 0
      %1272 = vmatprep.subr.bf16.mxu0 0
      %1273 = vmatpush1.bf16.msra.mxu0 0
      %1274 = vmatprep.subr.bf16.mxu0 0
      %1275 = vmatpush1.bf16.msra.mxu0 0
      %1276 = vmatprep.subr.bf16.mxu0 0
      %1277 = vmatpush1.bf16.msra.mxu0 0
      %1278 = vmatprep.subr.bf16.mxu0 0
      %1279 = vmatpush1.bf16.msra.mxu0 0
      %1280 = vmatprep.subr.bf16.mxu0 0
      %1281 = vmatpush1.bf16.msra.mxu0 0
      %1282 = vmatprep.subr.bf16.mxu0 0
      %1283 = vmatpush1.bf16.msra.mxu0 %v1266
      %1284 = vmatprep.subr.bf16.mxu0 0
      %1285 = vmatpush2.bf16.msra.mxu0 0
      %1286 = vmatprep.subr.bf16.mxu0 0
      %1287 = vmatpush2.bf16.msra.mxu0 0
      %1288 = vmatprep.subr.bf16.mxu0 0
      %1289 = vmatpush2.bf16.msra.mxu0 0
      %1290 = vmatprep.subr.bf16.mxu0 0
      %1291 = vmatpush2.bf16.msra.mxu0 0
      %1292 = vmatprep.subr.bf16.mxu0 0
      %1293 = vmatpush2.bf16.msra.mxu0 0
      %1294 = vmatprep.subr.bf16.mxu0 0
      %1295 = vmatpush2.bf16.msra.mxu0 0
      %1296 = vmatprep.subr.bf16.mxu0 0
      %1297 = vmatpush2.bf16.msra.mxu0 0
      %1298 = vmatprep.subr.bf16.mxu0 0
      %1299 = vmatpush2.bf16.msra.mxu0 0
      %1300 = vmatprep.mubr.bf16.mxu0 0
      %1301 = vmatmul.mubr.bf16.gmra.mxu0 %v1254
      %v1302 = vpop.f32.mrf.mxu0
      %v1303 = vadd.f32 0.0, %v1302
      %v1304 = vpop.f32.mrf.mxu0
      %v1305 = vpop.f32.mrf.mxu0
      %v1306 = vadd.f32 0.0, %v1305
      %v1307 = vpop.f32.mrf.mxu0
      %1308 = vmatprep.mubr.bf16.mxu0 0
      %1309 = vmatmul.mubr.bf16.gmra.mxu0 %v1257
      %v1310 = vpop.f32.mrf.mxu0
      %v1311 = vadd.f32 0.0, %v1310
      %v1312 = vpop.f32.mrf.mxu0
      %v1313 = vpop.f32.mrf.mxu0
      %v1314 = vadd.f32 0.0, %v1313
      %v1315 = vpop.f32.mrf.mxu0
      %1316 = vmatprep.mubr.bf16.mxu0 0
      %1317 = vmatmul.mubr.bf16.gmra.mxu0 %v1260
      %v1318 = vpop.f32.mrf.mxu0
      %v1319 = vadd.f32 0.0, %v1318
      %v1320 = vpop.f32.mrf.mxu0
      %v1321 = vpop.f32.mrf.mxu0
      %v1322 = vadd.f32 0.0, %v1321
      %v1323 = vpop.f32.mrf.mxu0
      %1324 = vmatprep.mubr.bf16.mxu0 0
      %1325 = vmatmul.mubr.bf16.gmra.mxu0 %v1263
      %v1326 = vpop.f32.mrf.mxu0
      %v1327 = vadd.f32 0.0, %v1326
      %v1328 = vpop.f32.mrf.mxu0
      %v1329 = vpop.f32.mrf.mxu0
      %v1330 = vadd.f32 0.0, %v1329
      %v1331 = vpop.f32.mrf.mxu0
      %1332 = vdwg.mxu0
      %v1333 = vadd.f32 %v1103, %v1303
      %v1334 = vadd.f32 %v1104, %v1306
      %v1335 = vadd.f32 %v1105, %v1311
      %v1336 = vadd.f32 %v1106, %v1314
      %v1337 = vadd.f32 %v1107, %v1319
      %v1338 = vadd.f32 %v1108, %v1322
      %v1339 = vadd.f32 %v1109, %v1327
      %v1340 = vadd.f32 %v1110, %v1330
      %s1341 = scalar_lea.vmem %s399, 8
      %v1342 = vld [vmem:[%s1341] sm:$0xf]
      %v1343 = vld [vmem:[%s1341 + $0x8] sm:$0xf]
      %v1344 = vld [vmem:[%s1341 + $0x10] sm:$0xf]
      %v1345 = vld [vmem:[%s1341 + $0x18] sm:$0xf]
      %v1346 = vld [vmem:[%s1341 + $0x20] sm:$0xf]
      %v1347 = vld [vmem:[%s1341 + $0x28] sm:$0xf]
      %v1348 = vld [vmem:[%s1341 + $0x30] sm:$0xf]
      %v1349 = vld [vmem:[%s1341 + $0x38] sm:$0xf]
      %s1350 = scalar_lea.vmem %s4, 12
      %v1351 = vld [vmem:[%s1350] sm:$0x3]
      %v1360 = vunpack.c.l.b16 %v1342
      %v1361 = vunpack.c.l.b16 %v1343
      %v1362 = vunpack.c.l.b16 %v1344
      %v1363 = vunpack.c.l.b16 %v1345
      %v1364 = vunpack.c.l.b16 %v1346
      %v1365 = vunpack.c.l.b16 %v1347
      %v1366 = vunpack.c.l.b16 %v1348
      %v1367 = vunpack.c.l.b16 %v1349
      %v1368 = vpack.c.b16 %v1361, %v1360
      %v1369 = vpack.c.b16 %v1363, %v1362
      %v1370 = vpack.c.b16 %v1365, %v1364
      %v1371 = vpack.c.b16 %v1367, %v1366
      %v1373 = vsel %vm460, %v1368, 0
      %v1376 = vsel %vm460, %v1369, 0
      %v1379 = vsel %vm460, %v1370, 0
      %v1382 = vsel %vm460, %v1371, 0
      %v1385 = vsel %vm473, %v1351, 0
      %1387 = vmatprep.subr.bf16.mxu0 0
      %1388 = vmatpush1.bf16.msra.mxu0 0
      %1389 = vmatprep.subr.bf16.mxu0 0
      %1390 = vmatpush1.bf16.msra.mxu0 0
      %1391 = vmatprep.subr.bf16.mxu0 0
      %1392 = vmatpush1.bf16.msra.mxu0 0
      %1393 = vmatprep.subr.bf16.mxu0 0
      %1394 = vmatpush1.bf16.msra.mxu0 0
      %1395 = vmatprep.subr.bf16.mxu0 0
      %1396 = vmatpush1.bf16.msra.mxu0 0
      %1397 = vmatprep.subr.bf16.mxu0 0
      %1398 = vmatpush1.bf16.msra.mxu0 0
      %1399 = vmatprep.subr.bf16.mxu0 0
      %1400 = vmatpush1.bf16.msra.mxu0 0
      %1401 = vmatprep.subr.bf16.mxu0 0
      %1402 = vmatpush1.bf16.msra.mxu0 %v1385
      %1403 = vmatprep.subr.bf16.mxu0 0
      %1404 = vmatpush2.bf16.msra.mxu0 0
      %1405 = vmatprep.subr.bf16.mxu0 0
      %1406 = vmatpush2.bf16.msra.mxu0 0
      %1407 = vmatprep.subr.bf16.mxu0 0
      %1408 = vmatpush2.bf16.msra.mxu0 0
      %1409 = vmatprep.subr.bf16.mxu0 0
      %1410 = vmatpush2.bf16.msra.mxu0 0
      %1411 = vmatprep.subr.bf16.mxu0 0
      %1412 = vmatpush2.bf16.msra.mxu0 0
      %1413 = vmatprep.subr.bf16.mxu0 0
      %1414 = vmatpush2.bf16.msra.mxu0 0
      %1415 = vmatprep.subr.bf16.mxu0 0
      %1416 = vmatpush2.bf16.msra.mxu0 0
      %1417 = vmatprep.subr.bf16.mxu0 0
      %1418 = vmatpush2.bf16.msra.mxu0 0
      %1419 = vmatprep.mubr.bf16.mxu0 0
      %1420 = vmatmul.mubr.bf16.gmra.mxu0 %v1373
      %v1421 = vpop.f32.mrf.mxu0
      %v1422 = vadd.f32 0.0, %v1421
      %v1423 = vpop.f32.mrf.mxu0
      %v1424 = vpop.f32.mrf.mxu0
      %v1425 = vadd.f32 0.0, %v1424
      %v1426 = vpop.f32.mrf.mxu0
      %1427 = vmatprep.mubr.bf16.mxu0 0
      %1428 = vmatmul.mubr.bf16.gmra.mxu0 %v1376
      %v1429 = vpop.f32.mrf.mxu0
      %v1430 = vadd.f32 0.0, %v1429
      %v1431 = vpop.f32.mrf.mxu0
      %v1432 = vpop.f32.mrf.mxu0
      %v1433 = vadd.f32 0.0, %v1432
      %v1434 = vpop.f32.mrf.mxu0
      %1435 = vmatprep.mubr.bf16.mxu0 0
      %1436 = vmatmul.mubr.bf16.gmra.mxu0 %v1379
      %v1437 = vpop.f32.mrf.mxu0
      %v1438 = vadd.f32 0.0, %v1437
      %v1439 = vpop.f32.mrf.mxu0
      %v1440 = vpop.f32.mrf.mxu0
      %v1441 = vadd.f32 0.0, %v1440
      %v1442 = vpop.f32.mrf.mxu0
      %1443 = vmatprep.mubr.bf16.mxu0 0
      %1444 = vmatmul.mubr.bf16.gmra.mxu0 %v1382
      %v1445 = vpop.f32.mrf.mxu0
      %v1446 = vadd.f32 0.0, %v1445
      %v1447 = vpop.f32.mrf.mxu0
      %v1448 = vpop.f32.mrf.mxu0
      %v1449 = vadd.f32 0.0, %v1448
      %v1450 = vpop.f32.mrf.mxu0
      %1451 = vdwg.mxu0
      %v1452 = vadd.f32 %v1333, %v1422
      %v1453 = vadd.f32 %v1334, %v1425
      %v1454 = vadd.f32 %v1335, %v1430
      %v1455 = vadd.f32 %v1336, %v1433
      %v1456 = vadd.f32 %v1337, %v1438
      %v1457 = vadd.f32 %v1338, %v1441
      %v1458 = vadd.f32 %v1339, %v1446
      %v1459 = vadd.f32 %v1340, %v1449
      %s1460 = scalar_lea.vmem %s404, 8
      %v1461 = vld [vmem:[%s1460] sm:$0xf]
      %v1462 = vld [vmem:[%s1460 + $0x8] sm:$0xf]
      %v1463 = vld [vmem:[%s1460 + $0x10] sm:$0xf]
      %v1464 = vld [vmem:[%s1460 + $0x18] sm:$0xf]
      %v1465 = vld [vmem:[%s1460 + $0x20] sm:$0xf]
      %v1466 = vld [vmem:[%s1460 + $0x28] sm:$0xf]
      %v1467 = vld [vmem:[%s1460 + $0x30] sm:$0xf]
      %v1468 = vld [vmem:[%s1460 + $0x38] sm:$0xf]
      %s1469 = scalar_lea.vmem %s4, 14
      %v1470 = vld [vmem:[%s1469] sm:$0x3]
      %v1479 = vunpack.c.l.b16 %v1461
      %v1480 = vunpack.c.l.b16 %v1462
      %v1481 = vunpack.c.l.b16 %v1463
      %v1482 = vunpack.c.l.b16 %v1464
      %v1483 = vunpack.c.l.b16 %v1465
      %v1484 = vunpack.c.l.b16 %v1466
      %v1485 = vunpack.c.l.b16 %v1467
      %v1486 = vunpack.c.l.b16 %v1468
      %v1487 = vpack.c.b16 %v1480, %v1479
      %v1488 = vpack.c.b16 %v1482, %v1481
      %v1489 = vpack.c.b16 %v1484, %v1483
      %v1490 = vpack.c.b16 %v1486, %v1485
      %v1492 = vsel %vm460, %v1487, 0
      %v1495 = vsel %vm460, %v1488, 0
      %v1498 = vsel %vm460, %v1489, 0
      %v1501 = vsel %vm460, %v1490, 0
      %v1504 = vsel %vm473, %v1470, 0
      %1506 = vmatprep.subr.bf16.mxu0 0
      %1507 = vmatpush1.bf16.msra.mxu0 0
      %1508 = vmatprep.subr.bf16.mxu0 0
      %1509 = vmatpush1.bf16.msra.mxu0 0
      %1510 = vmatprep.subr.bf16.mxu0 0
      %1511 = vmatpush1.bf16.msra.mxu0 0
      %1512 = vmatprep.subr.bf16.mxu0 0
      %1513 = vmatpush1.bf16.msra.mxu0 0
      %1514 = vmatprep.subr.bf16.mxu0 0
      %1515 = vmatpush1.bf16.msra.mxu0 0
      %1516 = vmatprep.subr.bf16.mxu0 0
      %1517 = vmatpush1.bf16.msra.mxu0 0
      %1518 = vmatprep.subr.bf16.mxu0 0
      %1519 = vmatpush1.bf16.msra.mxu0 0
      %1520 = vmatprep.subr.bf16.mxu0 0
      %1521 = vmatpush1.bf16.msra.mxu0 %v1504
      %1522 = vmatprep.subr.bf16.mxu0 0
      %1523 = vmatpush2.bf16.msra.mxu0 0
      %1524 = vmatprep.subr.bf16.mxu0 0
      %1525 = vmatpush2.bf16.msra.mxu0 0
      %1526 = vmatprep.subr.bf16.mxu0 0
      %1527 = vmatpush2.bf16.msra.mxu0 0
      %1528 = vmatprep.subr.bf16.mxu0 0
      %1529 = vmatpush2.bf16.msra.mxu0 0
      %1530 = vmatprep.subr.bf16.mxu0 0
      %1531 = vmatpush2.bf16.msra.mxu0 0
      %1532 = vmatprep.subr.bf16.mxu0 0
      %1533 = vmatpush2.bf16.msra.mxu0 0
      %1534 = vmatprep.subr.bf16.mxu0 0
      %1535 = vmatpush2.bf16.msra.mxu0 0
      %1536 = vmatprep.subr.bf16.mxu0 0
      %1537 = vmatpush2.bf16.msra.mxu0 0
      %1538 = vmatprep.mubr.bf16.mxu0 0
      %1539 = vmatmul.mubr.bf16.gmra.mxu0 %v1492
      %v1540 = vpop.f32.mrf.mxu0
      %v1541 = vadd.f32 0.0, %v1540
      %v1542 = vpop.f32.mrf.mxu0
      %v1543 = vpop.f32.mrf.mxu0
      %v1544 = vadd.f32 0.0, %v1543
      %v1545 = vpop.f32.mrf.mxu0
      %1546 = vmatprep.mubr.bf16.mxu0 0
      %1547 = vmatmul.mubr.bf16.gmra.mxu0 %v1495
      %v1548 = vpop.f32.mrf.mxu0
      %v1549 = vadd.f32 0.0, %v1548
      %v1550 = vpop.f32.mrf.mxu0
      %v1551 = vpop.f32.mrf.mxu0
      %v1552 = vadd.f32 0.0, %v1551
      %v1553 = vpop.f32.mrf.mxu0
      %1554 = vmatprep.mubr.bf16.mxu0 0
      %1555 = vmatmul.mubr.bf16.gmra.mxu0 %v1498
      %v1556 = vpop.f32.mrf.mxu0
      %v1557 = vadd.f32 0.0, %v1556
      %v1558 = vpop.f32.mrf.mxu0
      %v1559 = vpop.f32.mrf.mxu0
      %v1560 = vadd.f32 0.0, %v1559
      %v1561 = vpop.f32.mrf.mxu0
      %1562 = vmatprep.mubr.bf16.mxu0 0
      %1563 = vmatmul.mubr.bf16.gmra.mxu0 %v1501
      %v1564 = vpop.f32.mrf.mxu0
      %v1565 = vadd.f32 0.0, %v1564
      %v1566 = vpop.f32.mrf.mxu0
      %v1567 = vpop.f32.mrf.mxu0
      %v1568 = vadd.f32 0.0, %v1567
      %v1569 = vpop.f32.mrf.mxu0
      %1570 = vdwg.mxu0
      %v1571 = vadd.f32 %v1452, %v1541
      %v1572 = vadd.f32 %v1453, %v1544
      %v1573 = vadd.f32 %v1454, %v1549
      %v1574 = vadd.f32 %v1455, %v1552
      %v1575 = vadd.f32 %v1456, %v1557
      %v1576 = vadd.f32 %v1457, %v1560
      %v1577 = vadd.f32 %v1458, %v1565
      %v1578 = vadd.f32 %v1459, %v1568
      %v1579 = vld [vmem:[%s1341] sm:$0xf]
      %v1580 = vld [vmem:[%s1341 + $0x4] sm:$0x1]
      %v1581 = vld [vmem:[%s1341 + $0x8] sm:$0xf]
      %v1582 = vld [vmem:[%s1341 + $0xc] sm:$0x1]
      %v1583 = vld [vmem:[%s1341 + $0x10] sm:$0xf]
      %v1584 = vld [vmem:[%s1341 + $0x14] sm:$0x1]
      %v1585 = vld [vmem:[%s1341 + $0x18] sm:$0xf]
      %v1586 = vld [vmem:[%s1341 + $0x1c] sm:$0x1]
      %v1587 = vld [vmem:[%s1341 + $0x20] sm:$0xf]
      %v1588 = vld [vmem:[%s1341 + $0x24] sm:$0x1]
      %v1589 = vld [vmem:[%s1341 + $0x28] sm:$0xf]
      %v1590 = vld [vmem:[%s1341 + $0x2c] sm:$0x1]
      %v1591 = vld [vmem:[%s1341 + $0x30] sm:$0xf]
      %v1592 = vld [vmem:[%s1341 + $0x34] sm:$0x1]
      %v1593 = vld [vmem:[%s1341 + $0x38] sm:$0xf]
      %v1594 = vld [vmem:[%s1341 + $0x3c] sm:$0x1]
      %v1596 = vshrl.u32 %v1579, 16
      %v1598 = vrot.slane %v1596, 4
      %v1599 = vshll.u32 %v1579, 16
      %v1601 = vrot.slane %v1599, 5
      %v1602 = vor.u32 %v1598, %v1601
      %v1603 = vrot.slane %v1602, 4
      %v1605 = vshll.u32 %v1580, 16
      %v1607 = vrot.slane %v1605, 5
      %v1608 = vsel %vm660, %v1603, %v1607
      %v1610 = vshrl.u32 %v1581, 16
      %v1612 = vrot.slane %v1610, 4
      %v1613 = vshll.u32 %v1581, 16
      %v1615 = vrot.slane %v1613, 5
      %v1616 = vor.u32 %v1612, %v1615
      %v1617 = vrot.slane %v1616, 4
      %v1619 = vshll.u32 %v1582, 16
      %v1621 = vrot.slane %v1619, 5
      %v1622 = vsel %vm660, %v1617, %v1621
      %v1624 = vshrl.u32 %v1583, 16
      %v1626 = vrot.slane %v1624, 4
      %v1627 = vshll.u32 %v1583, 16
      %v1629 = vrot.slane %v1627, 5
      %v1630 = vor.u32 %v1626, %v1629
      %v1631 = vrot.slane %v1630, 4
      %v1633 = vshll.u32 %v1584, 16
      %v1635 = vrot.slane %v1633, 5
      %v1636 = vsel %vm660, %v1631, %v1635
      %v1638 = vshrl.u32 %v1585, 16
      %v1640 = vrot.slane %v1638, 4
      %v1641 = vshll.u32 %v1585, 16
      %v1643 = vrot.slane %v1641, 5
      %v1644 = vor.u32 %v1640, %v1643
      %v1645 = vrot.slane %v1644, 4
      %v1647 = vshll.u32 %v1586, 16
      %v1649 = vrot.slane %v1647, 5
      %v1650 = vsel %vm660, %v1645, %v1649
      %v1652 = vshrl.u32 %v1587, 16
      %v1654 = vrot.slane %v1652, 4
      %v1655 = vshll.u32 %v1587, 16
      %v1657 = vrot.slane %v1655, 5
      %v1658 = vor.u32 %v1654, %v1657
      %v1659 = vrot.slane %v1658, 4
      %v1661 = vshll.u32 %v1588, 16
      %v1663 = vrot.slane %v1661, 5
      %v1664 = vsel %vm660, %v1659, %v1663
      %v1666 = vshrl.u32 %v1589, 16
      %v1668 = vrot.slane %v1666, 4
      %v1669 = vshll.u32 %v1589, 16
      %v1671 = vrot.slane %v1669, 5
      %v1672 = vor.u32 %v1668, %v1671
      %v1673 = vrot.slane %v1672, 4
      %v1675 = vshll.u32 %v1590, 16
      %v1677 = vrot.slane %v1675, 5
      %v1678 = vsel %vm660, %v1673, %v1677
      %v1680 = vshrl.u32 %v1591, 16
      %v1682 = vrot.slane %v1680, 4
      %v1683 = vshll.u32 %v1591, 16
      %v1685 = vrot.slane %v1683, 5
      %v1686 = vor.u32 %v1682, %v1685
      %v1687 = vrot.slane %v1686, 4
      %v1689 = vshll.u32 %v1592, 16
      %v1691 = vrot.slane %v1689, 5
      %v1692 = vsel %vm660, %v1687, %v1691
      %v1694 = vshrl.u32 %v1593, 16
      %v1696 = vrot.slane %v1694, 4
      %v1697 = vshll.u32 %v1593, 16
      %v1699 = vrot.slane %v1697, 5
      %v1700 = vor.u32 %v1696, %v1699
      %v1701 = vrot.slane %v1700, 4
      %v1703 = vshll.u32 %v1594, 16
      %v1705 = vrot.slane %v1703, 5
      %v1706 = vsel %vm660, %v1701, %v1705
      %s1707 = scalar_lea.vmem %s4, 16
      %v1708 = vld [vmem:[%s1707] sm:$0x3]
      %v1709 = vunpack.c.l.b16 %v1608
      %v1710 = vunpack.c.l.b16 %v1622
      %v1711 = vunpack.c.l.b16 %v1636
      %v1712 = vunpack.c.l.b16 %v1650
      %v1713 = vunpack.c.l.b16 %v1664
      %v1714 = vunpack.c.l.b16 %v1678
      %v1715 = vunpack.c.l.b16 %v1692
      %v1716 = vunpack.c.l.b16 %v1706
      %v1717 = vpack.c.b16 %v1710, %v1709
      %v1718 = vpack.c.b16 %v1712, %v1711
      %v1719 = vpack.c.b16 %v1714, %v1713
      %v1720 = vpack.c.b16 %v1716, %v1715
      %v1722 = vsel %vm460, %v1717, 0
      %v1725 = vsel %vm460, %v1718, 0
      %v1728 = vsel %vm460, %v1719, 0
      %v1731 = vsel %vm460, %v1720, 0
      %v1734 = vsel %vm473, %v1708, 0
      %1736 = vmatprep.subr.bf16.mxu0 0
      %1737 = vmatpush1.bf16.msra.mxu0 0
      %1738 = vmatprep.subr.bf16.mxu0 0
      %1739 = vmatpush1.bf16.msra.mxu0 0
      %1740 = vmatprep.subr.bf16.mxu0 0
      %1741 = vmatpush1.bf16.msra.mxu0 0
      %1742 = vmatprep.subr.bf16.mxu0 0
      %1743 = vmatpush1.bf16.msra.mxu0 0
      %1744 = vmatprep.subr.bf16.mxu0 0
      %1745 = vmatpush1.bf16.msra.mxu0 0
      %1746 = vmatprep.subr.bf16.mxu0 0
      %1747 = vmatpush1.bf16.msra.mxu0 0
      %1748 = vmatprep.subr.bf16.mxu0 0
      %1749 = vmatpush1.bf16.msra.mxu0 0
      %1750 = vmatprep.subr.bf16.mxu0 0
      %1751 = vmatpush1.bf16.msra.mxu0 %v1734
      %1752 = vmatprep.subr.bf16.mxu0 0
      %1753 = vmatpush2.bf16.msra.mxu0 0
      %1754 = vmatprep.subr.bf16.mxu0 0
      %1755 = vmatpush2.bf16.msra.mxu0 0
      %1756 = vmatprep.subr.bf16.mxu0 0
      %1757 = vmatpush2.bf16.msra.mxu0 0
      %1758 = vmatprep.subr.bf16.mxu0 0
      %1759 = vmatpush2.bf16.msra.mxu0 0
      %1760 = vmatprep.subr.bf16.mxu0 0
      %1761 = vmatpush2.bf16.msra.mxu0 0
      %1762 = vmatprep.subr.bf16.mxu0 0
      %1763 = vmatpush2.bf16.msra.mxu0 0
      %1764 = vmatprep.subr.bf16.mxu0 0
      %1765 = vmatpush2.bf16.msra.mxu0 0
      %1766 = vmatprep.subr.bf16.mxu0 0
      %1767 = vmatpush2.bf16.msra.mxu0 0
      %1768 = vmatprep.mubr.bf16.mxu0 0
      %1769 = vmatmul.mubr.bf16.gmra.mxu0 %v1722
      %v1770 = vpop.f32.mrf.mxu0
      %v1771 = vadd.f32 0.0, %v1770
      %v1772 = vpop.f32.mrf.mxu0
      %v1773 = vpop.f32.mrf.mxu0
      %v1774 = vadd.f32 0.0, %v1773
      %v1775 = vpop.f32.mrf.mxu0
      %1776 = vmatprep.mubr.bf16.mxu0 0
      %1777 = vmatmul.mubr.bf16.gmra.mxu0 %v1725
      %v1778 = vpop.f32.mrf.mxu0
      %v1779 = vadd.f32 0.0, %v1778
      %v1780 = vpop.f32.mrf.mxu0
      %v1781 = vpop.f32.mrf.mxu0
      %v1782 = vadd.f32 0.0, %v1781
      %v1783 = vpop.f32.mrf.mxu0
      %1784 = vmatprep.mubr.bf16.mxu0 0
      %1785 = vmatmul.mubr.bf16.gmra.mxu0 %v1728
      %v1786 = vpop.f32.mrf.mxu0
      %v1787 = vadd.f32 0.0, %v1786
      %v1788 = vpop.f32.mrf.mxu0
      %v1789 = vpop.f32.mrf.mxu0
      %v1790 = vadd.f32 0.0, %v1789
      %v1791 = vpop.f32.mrf.mxu0
      %1792 = vmatprep.mubr.bf16.mxu0 0
      %1793 = vmatmul.mubr.bf16.gmra.mxu0 %v1731
      %v1794 = vpop.f32.mrf.mxu0
      %v1795 = vadd.f32 0.0, %v1794
      %v1796 = vpop.f32.mrf.mxu0
      %v1797 = vpop.f32.mrf.mxu0
      %v1798 = vadd.f32 0.0, %v1797
      %v1799 = vpop.f32.mrf.mxu0
      %1800 = vdwg.mxu0
      %v1801 = vadd.f32 %v1571, %v1771
      %v1802 = vadd.f32 %v1572, %v1774
      %v1803 = vadd.f32 %v1573, %v1779
      %v1804 = vadd.f32 %v1574, %v1782
      %v1805 = vadd.f32 %v1575, %v1787
      %v1806 = vadd.f32 %v1576, %v1790
      %v1807 = vadd.f32 %v1577, %v1795
      %v1808 = vadd.f32 %v1578, %v1798
      %v1809 = vld [vmem:[%s5] sm:$0x1]
      %v1811 = vlaneseq
      %v1812 = vshrl.u32 %v1811, 7
      %v1813 = vsub.s32 0, %v1812
      %v1814 = vrot.slane %v1809, %v1813
      %v1816 = vadd.f32 %v1801, %v1814
      %v1817 = vadd.f32 %v1802, %v1814
      %v1818 = vadd.f32 %v1803, %v1814
      %v1819 = vadd.f32 %v1804, %v1814
      %v1820 = vadd.f32 %v1805, %v1814
      %v1821 = vadd.f32 %v1806, %v1814
      %v1822 = vadd.f32 %v1807, %v1814
      %v1823 = vadd.f32 %v1808, %v1814
      %v1824 = vmax.f32 %v1816, 0.0
      %v1825 = vmax.f32 %v1817, 0.0
      %v1826 = vmax.f32 %v1818, 0.0
      %v1827 = vmax.f32 %v1819, 0.0
      %v1828 = vmax.f32 %v1820, 0.0
      %v1829 = vmax.f32 %v1821, 0.0
      %v1830 = vmax.f32 %v1822, 0.0
      %v1831 = vmax.f32 %v1823, 0.0
      %vm1832 = vcmask 60416
      %1833 = vst.msk [vmem:[#allocation2] sm:$0xf] %vm1832, 0
      %vm1834 = vcmask 57344
      %1835 = vst.msk [vmem:[#allocation2 + $0x4] sm:$0x1] %vm1834, 0
      %1836 = vst.msk [vmem:[#allocation2 + $0x8] sm:$0xf] %vm1832, 0
      %1837 = vst.msk [vmem:[#allocation2 + $0xc] sm:$0x1] %vm1834, 0
      %1838 = vst.msk [vmem:[#allocation2 + $0x10] sm:$0xf] %vm1832, 0
      %1839 = vst.msk [vmem:[#allocation2 + $0x14] sm:$0x1] %vm1834, 0
      %1840 = vst.msk [vmem:[#allocation2 + $0x18] sm:$0xf] %vm1832, 0
      %1841 = vst.msk [vmem:[#allocation2 + $0x1c] sm:$0x1] %vm1834, 0
      %1842 = vst.msk [vmem:[#allocation2 + $0x20] sm:$0xf] %vm1832, 0
      %1843 = vst.msk [vmem:[#allocation2 + $0x24] sm:$0x1] %vm1834, 0
      %1844 = vst.msk [vmem:[#allocation2 + $0x28] sm:$0xf] %vm1832, 0
      %1845 = vst.msk [vmem:[#allocation2 + $0x2c] sm:$0x1] %vm1834, 0
      %1846 = vst.msk [vmem:[#allocation2 + $0x30] sm:$0xf] %vm1832, 0
      %1847 = vst.msk [vmem:[#allocation2 + $0x34] sm:$0x1] %vm1834, 0
      %1848 = vst.msk [vmem:[#allocation2 + $0x38] sm:$0xf] %vm1832, 0
      %1849 = vst.msk [vmem:[#allocation2 + $0x3c] sm:$0x1] %vm1834, 0
      %1850 = vst.msk [vmem:[#allocation2 + $0x40] sm:$0xf] %vm1832, 0
      %1851 = vst.msk [vmem:[#allocation2 + $0x44] sm:$0x1] %vm1834, 0
      %1852 = vst.msk [vmem:[#allocation2 + $0x48] sm:$0xf] %vm1832, 0
      %1853 = vst.msk [vmem:[#allocation2 + $0x4c] sm:$0x1] %vm1834, 0
      %v1854 = vpack.c.bf16 %v1825, %v1824
      %v1855 = vpack.c.bf16 %v1827, %v1826
      %v1856 = vpack.c.bf16 %v1829, %v1828
      %v1857 = vpack.c.bf16 %v1831, %v1830
      %v1862 = vunpack.c.l.b16 %v1854
      %v1863 = vunpack.c.h.b16 %v1854
      %v1864 = vunpack.c.l.b16 %v1855
      %v1865 = vunpack.c.h.b16 %v1855
      %v1866 = vunpack.c.l.b16 %v1856
      %v1867 = vunpack.c.h.b16 %v1856
      %v1868 = vunpack.c.l.b16 %v1857
      %v1869 = vunpack.c.h.b16 %v1857
      %v1870 = vpack.c.b16 %v1862, %v1862
      %v1871 = vpack.c.b16 %v1863, %v1863
      %v1872 = vpack.c.b16 %v1864, %v1864
      %v1873 = vpack.c.b16 %v1865, %v1865
      %v1874 = vpack.c.b16 %v1866, %v1866
      %v1875 = vpack.c.b16 %v1867, %v1867
      %v1876 = vpack.c.b16 %v1868, %v1868
      %v1877 = vpack.c.b16 %v1869, %v1869
      %v1879 = vshrl.u32 %v1870, 16
      %v1881 = vrot.slane %v1879, 7
      %v1882 = vshll.u32 %v1870, 16
      %v1884 = vor.u32 %v1881, %v1882
      %v1885 = vrot.slane %v1881, 4
      %v1887 = vshrl.u32 %v1871, 16
      %v1889 = vrot.slane %v1887, 7
      %v1890 = vshll.u32 %v1871, 16
      %v1892 = vor.u32 %v1889, %v1890
      %v1893 = vrot.slane %v1889, 4
      %v1895 = vshrl.u32 %v1872, 16
      %v1897 = vrot.slane %v1895, 7
      %v1898 = vshll.u32 %v1872, 16
      %v1900 = vor.u32 %v1897, %v1898
      %v1901 = vrot.slane %v1897, 4
      %v1903 = vshrl.u32 %v1873, 16
      %v1905 = vrot.slane %v1903, 7
      %v1906 = vshll.u32 %v1873, 16
      %v1908 = vor.u32 %v1905, %v1906
      %v1909 = vrot.slane %v1905, 4
      %v1911 = vshrl.u32 %v1874, 16
      %v1913 = vrot.slane %v1911, 7
      %v1914 = vshll.u32 %v1874, 16
      %v1916 = vor.u32 %v1913, %v1914
      %v1917 = vrot.slane %v1913, 4
      %v1919 = vshrl.u32 %v1875, 16
      %v1921 = vrot.slane %v1919, 7
      %v1922 = vshll.u32 %v1875, 16
      %v1924 = vor.u32 %v1921, %v1922
      %v1925 = vrot.slane %v1921, 4
      %v1927 = vshrl.u32 %v1876, 16
      %v1929 = vrot.slane %v1927, 7
      %v1930 = vshll.u32 %v1876, 16
      %v1932 = vor.u32 %v1929, %v1930
      %v1933 = vrot.slane %v1929, 4
      %v1935 = vshrl.u32 %v1877, 16
      %v1937 = vrot.slane %v1935, 7
      %v1938 = vshll.u32 %v1877, 16
      %v1940 = vor.u32 %v1937, %v1938
      %v1941 = vrot.slane %v1937, 4
      %s1958 = scalar_lea.vmem [#allocation2], 8
      %vm1959 = vcmask 60416
      %vm1960 = vsmask.f32 7938
      %vm1961 = vmand %vm1959, %vm1960
      %v1962 = vld [vmem:[%s1958] sm:$0xf]
      %v1963 = vsel %vm1961, %v1884, %v1962
      %1964 = vst [vmem:[%s1958] sm:$0xf] %v1963
      %vm1965 = vcmask 57344
      %vm1966 = vsmask.f32 256
      %vm1967 = vmand %vm1965, %vm1966
      %v1968 = vld [vmem:[%s1958 + $0x4] sm:$0x1]
      %v1969 = vsel %vm1967, %v1885, %v1968
      %1970 = vst [vmem:[%s1958 + $0x4] sm:$0x1] %v1969
      %v1971 = vld [vmem:[%s1958 + $0x8] sm:$0xf]
      %v1972 = vsel %vm1961, %v1892, %v1971
      %1973 = vst [vmem:[%s1958 + $0x8] sm:$0xf] %v1972
      %v1974 = vld [vmem:[%s1958 + $0xc] sm:$0x1]
      %v1975 = vsel %vm1967, %v1893, %v1974
      %1976 = vst [vmem:[%s1958 + $0xc] sm:$0x1] %v1975
      %v1977 = vld [vmem:[%s1958 + $0x10] sm:$0xf]
      %v1978 = vsel %vm1961, %v1900, %v1977
      %1979 = vst [vmem:[%s1958 + $0x10] sm:$0xf] %v1978
      %v1980 = vld [vmem:[%s1958 + $0x14] sm:$0x1]
      %v1981 = vsel %vm1967, %v1901, %v1980
      %1982 = vst [vmem:[%s1958 + $0x14] sm:$0x1] %v1981
      %v1983 = vld [vmem:[%s1958 + $0x18] sm:$0xf]
      %v1984 = vsel %vm1961, %v1908, %v1983
      %1985 = vst [vmem:[%s1958 + $0x18] sm:$0xf] %v1984
      %v1986 = vld [vmem:[%s1958 + $0x1c] sm:$0x1]
      %v1987 = vsel %vm1967, %v1909, %v1986
      %1988 = vst [vmem:[%s1958 + $0x1c] sm:$0x1] %v1987
      %v1989 = vld [vmem:[%s1958 + $0x20] sm:$0xf]
      %v1990 = vsel %vm1961, %v1916, %v1989
      %1991 = vst [vmem:[%s1958 + $0x20] sm:$0xf] %v1990
      %v1992 = vld [vmem:[%s1958 + $0x24] sm:$0x1]
      %v1993 = vsel %vm1967, %v1917, %v1992
      %1994 = vst [vmem:[%s1958 + $0x24] sm:$0x1] %v1993
      %v1995 = vld [vmem:[%s1958 + $0x28] sm:$0xf]
      %v1996 = vsel %vm1961, %v1924, %v1995
      %1997 = vst [vmem:[%s1958 + $0x28] sm:$0xf] %v1996
      %v1998 = vld [vmem:[%s1958 + $0x2c] sm:$0x1]
      %v1999 = vsel %vm1967, %v1925, %v1998
      %2000 = vst [vmem:[%s1958 + $0x2c] sm:$0x1] %v1999
      %v2001 = vld [vmem:[%s1958 + $0x30] sm:$0xf]
      %v2002 = vsel %vm1961, %v1932, %v2001
      %2003 = vst [vmem:[%s1958 + $0x30] sm:$0xf] %v2002
      %v2004 = vld [vmem:[%s1958 + $0x34] sm:$0x1]
      %v2005 = vsel %vm1967, %v1933, %v2004
      %2006 = vst [vmem:[%s1958 + $0x34] sm:$0x1] %v2005
      %v2007 = vld [vmem:[%s1958 + $0x38] sm:$0xf]
      %v2008 = vsel %vm1961, %v1940, %v2007
      %2009 = vst [vmem:[%s1958 + $0x38] sm:$0xf] %v2008
      %v2010 = vld [vmem:[%s1958 + $0x3c] sm:$0x1]
      %v2011 = vsel %vm1967, %v1941, %v2010
      %2012 = vst [vmem:[%s1958 + $0x3c] sm:$0x1] %v2011
      %v2013 = vld [vmem:[#allocation2] sm:$0xf]
      %v2014 = vld [vmem:[#allocation2 + $0x8] sm:$0xf]
      %v2015 = vld [vmem:[#allocation2 + $0x10] sm:$0xf]
      %v2016 = vld [vmem:[#allocation2 + $0x18] sm:$0xf]
      %v2017 = vld [vmem:[#allocation2 + $0x20] sm:$0xf]
      %v2018 = vld [vmem:[#allocation2 + $0x28] sm:$0xf]
      %v2019 = vld [vmem:[#allocation2 + $0x30] sm:$0xf]
      %v2020 = vld [vmem:[#allocation2 + $0x38] sm:$0xf]
      %v2021 = vld [vmem:[%s6] sm:$0xf]
      %v2022 = vld [vmem:[#allocation2 + $0x4] sm:$0x1]
      %v2023 = vld [vmem:[#allocation2 + $0xc] sm:$0x1]
      %v2024 = vld [vmem:[#allocation2 + $0x14] sm:$0x1]
      %v2025 = vld [vmem:[#allocation2 + $0x1c] sm:$0x1]
      %v2026 = vld [vmem:[#allocation2 + $0x24] sm:$0x1]
      %v2027 = vld [vmem:[#allocation2 + $0x2c] sm:$0x1]
      %v2028 = vld [vmem:[#allocation2 + $0x34] sm:$0x1]
      %v2029 = vld [vmem:[#allocation2 + $0x3c] sm:$0x1]
      %v2031 = vshrl.u32 %v2013, 16
      %v2033 = vrot.slane %v2031, 4
      %v2034 = vshll.u32 %v2013, 16
      %v2036 = vrot.slane %v2034, 5
      %v2037 = vor.u32 %v2033, %v2036
      %v2038 = vrot.slane %v2037, 4
      %v2040 = vshll.u32 %v2022, 16
      %v2042 = vrot.slane %v2040, 5
      %v2043 = vsel %vm660, %v2038, %v2042
      %v2045 = vshrl.u32 %v2014, 16
      %v2047 = vrot.slane %v2045, 4
      %v2048 = vshll.u32 %v2014, 16
      %v2050 = vrot.slane %v2048, 5
      %v2051 = vor.u32 %v2047, %v2050
      %v2052 = vrot.slane %v2051, 4
      %v2054 = vshll.u32 %v2023, 16
      %v2056 = vrot.slane %v2054, 5
      %v2057 = vsel %vm660, %v2052, %v2056
      %v2059 = vshrl.u32 %v2015, 16
      %v2061 = vrot.slane %v2059, 4
      %v2062 = vshll.u32 %v2015, 16
      %v2064 = vrot.slane %v2062, 5
      %v2065 = vor.u32 %v2061, %v2064
      %v2066 = vrot.slane %v2065, 4
      %v2068 = vshll.u32 %v2024, 16
      %v2070 = vrot.slane %v2068, 5
      %v2071 = vsel %vm660, %v2066, %v2070
      %v2073 = vshrl.u32 %v2016, 16
      %v2075 = vrot.slane %v2073, 4
      %v2076 = vshll.u32 %v2016, 16
      %v2078 = vrot.slane %v2076, 5
      %v2079 = vor.u32 %v2075, %v2078
      %v2080 = vrot.slane %v2079, 4
      %v2082 = vshll.u32 %v2025, 16
      %v2084 = vrot.slane %v2082, 5
      %v2085 = vsel %vm660, %v2080, %v2084
      %v2087 = vshrl.u32 %v2017, 16
      %v2089 = vrot.slane %v2087, 4
      %v2090 = vshll.u32 %v2017, 16
      %v2092 = vrot.slane %v2090, 5
      %v2093 = vor.u32 %v2089, %v2092
      %v2094 = vrot.slane %v2093, 4
      %v2096 = vshll.u32 %v2026, 16
      %v2098 = vrot.slane %v2096, 5
      %v2099 = vsel %vm660, %v2094, %v2098
      %v2101 = vshrl.u32 %v2018, 16
      %v2103 = vrot.slane %v2101, 4
      %v2104 = vshll.u32 %v2018, 16
      %v2106 = vrot.slane %v2104, 5
      %v2107 = vor.u32 %v2103, %v2106
      %v2108 = vrot.slane %v2107, 4
      %v2110 = vshll.u32 %v2027, 16
      %v2112 = vrot.slane %v2110, 5
      %v2113 = vsel %vm660, %v2108, %v2112
      %v2115 = vshrl.u32 %v2019, 16
      %v2117 = vrot.slane %v2115, 4
      %v2118 = vshll.u32 %v2019, 16
      %v2120 = vrot.slane %v2118, 5
      %v2121 = vor.u32 %v2117, %v2120
      %v2122 = vrot.slane %v2121, 4
      %v2124 = vshll.u32 %v2028, 16
      %v2126 = vrot.slane %v2124, 5
      %v2127 = vsel %vm660, %v2122, %v2126
      %v2129 = vshrl.u32 %v2020, 16
      %v2131 = vrot.slane %v2129, 4
      %v2132 = vshll.u32 %v2020, 16
      %v2134 = vrot.slane %v2132, 5
      %v2135 = vor.u32 %v2131, %v2134
      %v2136 = vrot.slane %v2135, 4
      %v2138 = vshll.u32 %v2029, 16
      %v2140 = vrot.slane %v2138, 5
      %v2141 = vsel %vm660, %v2136, %v2140
      %s2142 = scalar_lea.vmem %s6, 4
      %v2143 = vld [vmem:[%s2142] sm:$0xf]
      %v2144 = vunpack.c.l.b16 %v2043
      %v2145 = vunpack.c.l.b16 %v2057
      %v2146 = vunpack.c.l.b16 %v2071
      %v2147 = vunpack.c.l.b16 %v2085
      %v2148 = vunpack.c.l.b16 %v2099
      %v2149 = vunpack.c.l.b16 %v2113
      %v2150 = vunpack.c.l.b16 %v2127
      %v2151 = vunpack.c.l.b16 %v2141
      %v2152 = vpack.c.b16 %v2145, %v2144
      %v2153 = vpack.c.b16 %v2147, %v2146
      %v2154 = vpack.c.b16 %v2149, %v2148
      %v2155 = vpack.c.b16 %v2151, %v2150
      %vm2156 = vcmask 64512
      %v2158 = vsel %vm2156, %v2152, 0
      %v2161 = vsel %vm2156, %v2153, 0
      %v2164 = vsel %vm2156, %v2154, 0
      %v2167 = vsel %vm2156, %v2155, 0
      %vm2169 = vcmask 1043456
      %v2171 = vsel %vm2169, %v2143, 0
      %2173 = vmatprep.subr.bf16.mxu0 0
      %2174 = vmatpush1.bf16.msra.mxu0 0
      %2175 = vmatprep.subr.bf16.mxu0 0
      %2176 = vmatpush1.bf16.msra.mxu0 0
      %2177 = vmatprep.subr.bf16.mxu0 0
      %2178 = vmatpush1.bf16.msra.mxu0 0
      %2179 = vmatprep.subr.bf16.mxu0 0
      %2180 = vmatpush1.bf16.msra.mxu0 0
      %2181 = vmatprep.subr.bf16.mxu0 0
      %2182 = vmatpush1.bf16.msra.mxu0 0
      %2183 = vmatprep.subr.bf16.mxu0 0
      %2184 = vmatpush1.bf16.msra.mxu0 0
      %2185 = vmatprep.subr.bf16.mxu0 0
      %2186 = vmatpush1.bf16.msra.mxu0 0
      %2187 = vmatprep.subr.bf16.mxu0 0
      %2188 = vmatpush1.bf16.msra.mxu0 %v2171
      %2189 = vmatprep.subr.bf16.mxu0 0
      %2190 = vmatpush2.bf16.msra.mxu0 0
      %2191 = vmatprep.subr.bf16.mxu0 0
      %2192 = vmatpush2.bf16.msra.mxu0 0
      %2193 = vmatprep.subr.bf16.mxu0 0
      %2194 = vmatpush2.bf16.msra.mxu0 0
      %2195 = vmatprep.subr.bf16.mxu0 0
      %2196 = vmatpush2.bf16.msra.mxu0 0
      %2197 = vmatprep.subr.bf16.mxu0 0
      %2198 = vmatpush2.bf16.msra.mxu0 0
      %2199 = vmatprep.subr.bf16.mxu0 0
      %2200 = vmatpush2.bf16.msra.mxu0 0
      %2201 = vmatprep.subr.bf16.mxu0 0
      %2202 = vmatpush2.bf16.msra.mxu0 0
      %2203 = vmatprep.subr.bf16.mxu0 0
      %2204 = vmatpush2.bf16.msra.mxu0 0
      %2205 = vmatprep.mubr.bf16.mxu0 0
      %2206 = vmatmul.mubr.bf16.gmra.mxu0 %v2158
      %v2207 = vpop.f32.mrf.mxu0
      %v2208 = vadd.f32 0.0, %v2207
      %v2209 = vpop.f32.mrf.mxu0
      %v2210 = vpop.f32.mrf.mxu0
      %v2211 = vadd.f32 0.0, %v2210
      %v2212 = vpop.f32.mrf.mxu0
      %2213 = vmatprep.mubr.bf16.mxu0 0
      %2214 = vmatmul.mubr.bf16.gmra.mxu0 %v2161
      %v2215 = vpop.f32.mrf.mxu0
      %v2216 = vadd.f32 0.0, %v2215
      %v2217 = vpop.f32.mrf.mxu0
      %v2218 = vpop.f32.mrf.mxu0
      %v2219 = vadd.f32 0.0, %v2218
      %v2220 = vpop.f32.mrf.mxu0
      %2221 = vmatprep.mubr.bf16.mxu0 0
      %2222 = vmatmul.mubr.bf16.gmra.mxu0 %v2164
      %v2223 = vpop.f32.mrf.mxu0
      %v2224 = vadd.f32 0.0, %v2223
      %v2225 = vpop.f32.mrf.mxu0
      %v2226 = vpop.f32.mrf.mxu0
      %v2227 = vadd.f32 0.0, %v2226
      %v2228 = vpop.f32.mrf.mxu0
      %2229 = vmatprep.mubr.bf16.mxu0 0
      %2230 = vmatmul.mubr.bf16.gmra.mxu0 %v2167
      %v2231 = vpop.f32.mrf.mxu0
      %v2232 = vadd.f32 0.0, %v2231
      %v2233 = vpop.f32.mrf.mxu0
      %v2234 = vpop.f32.mrf.mxu0
      %v2235 = vadd.f32 0.0, %v2234
      %v2236 = vpop.f32.mrf.mxu0
      %2237 = vdwg.mxu0
      %v2246 = vunpack.c.l.b16 %v2013
      %v2247 = vunpack.c.l.b16 %v2014
      %v2248 = vunpack.c.l.b16 %v2015
      %v2249 = vunpack.c.l.b16 %v2016
      %v2250 = vunpack.c.l.b16 %v2017
      %v2251 = vunpack.c.l.b16 %v2018
      %v2252 = vunpack.c.l.b16 %v2019
      %v2253 = vunpack.c.l.b16 %v2020
      %v2254 = vpack.c.b16 %v2247, %v2246
      %v2255 = vpack.c.b16 %v2249, %v2248
      %v2256 = vpack.c.b16 %v2251, %v2250
      %v2257 = vpack.c.b16 %v2253, %v2252
      %v2259 = vsel %vm2156, %v2254, 0
      %v2262 = vsel %vm2156, %v2255, 0
      %v2265 = vsel %vm2156, %v2256, 0
      %v2268 = vsel %vm2156, %v2257, 0
      %v2271 = vsel %vm2169, %v2021, 0
      %2273 = vmatprep.subr.bf16.mxu0 0
      %2274 = vmatpush1.bf16.msra.mxu0 0
      %2275 = vmatprep.subr.bf16.mxu0 0
      %2276 = vmatpush1.bf16.msra.mxu0 0
      %2277 = vmatprep.subr.bf16.mxu0 0
      %2278 = vmatpush1.bf16.msra.mxu0 0
      %2279 = vmatprep.subr.bf16.mxu0 0
      %2280 = vmatpush1.bf16.msra.mxu0 0
      %2281 = vmatprep.subr.bf16.mxu0 0
      %2282 = vmatpush1.bf16.msra.mxu0 0
      %2283 = vmatprep.subr.bf16.mxu0 0
      %2284 = vmatpush1.bf16.msra.mxu0 0
      %2285 = vmatprep.subr.bf16.mxu0 0
      %2286 = vmatpush1.bf16.msra.mxu0 0
      %2287 = vmatprep.subr.bf16.mxu0 0
      %2288 = vmatpush1.bf16.msra.mxu0 %v2271
      %2289 = vmatprep.subr.bf16.mxu0 0
      %2290 = vmatpush2.bf16.msra.mxu0 0
      %2291 = vmatprep.subr.bf16.mxu0 0
      %2292 = vmatpush2.bf16.msra.mxu0 0
      %2293 = vmatprep.subr.bf16.mxu0 0
      %2294 = vmatpush2.bf16.msra.mxu0 0
      %2295 = vmatprep.subr.bf16.mxu0 0
      %2296 = vmatpush2.bf16.msra.mxu0 0
      %2297 = vmatprep.subr.bf16.mxu0 0
      %2298 = vmatpush2.bf16.msra.mxu0 0
      %2299 = vmatprep.subr.bf16.mxu0 0
      %2300 = vmatpush2.bf16.msra.mxu0 0
      %2301 = vmatprep.subr.bf16.mxu0 0
      %2302 = vmatpush2.bf16.msra.mxu0 0
      %2303 = vmatprep.subr.bf16.mxu0 0
      %2304 = vmatpush2.bf16.msra.mxu0 0
      %2305 = vmatprep.mubr.bf16.mxu0 0
      %2306 = vmatmul.mubr.bf16.gmra.mxu0 %v2259
      %v2307 = vpop.f32.mrf.mxu0
      %v2308 = vadd.f32 %v2208, %v2307
      %v2309 = vpop.f32.mrf.mxu0
      %v2310 = vpop.f32.mrf.mxu0
      %v2311 = vadd.f32 %v2211, %v2310
      %v2312 = vpop.f32.mrf.mxu0
      %2313 = vmatprep.mubr.bf16.mxu0 0
      %2314 = vmatmul.mubr.bf16.gmra.mxu0 %v2262
      %v2315 = vpop.f32.mrf.mxu0
      %v2316 = vadd.f32 %v2216, %v2315
      %v2317 = vpop.f32.mrf.mxu0
      %v2318 = vpop.f32.mrf.mxu0
      %v2319 = vadd.f32 %v2219, %v2318
      %v2320 = vpop.f32.mrf.mxu0
      %2321 = vmatprep.mubr.bf16.mxu0 0
      %2322 = vmatmul.mubr.bf16.gmra.mxu0 %v2265
      %v2323 = vpop.f32.mrf.mxu0
      %v2324 = vadd.f32 %v2224, %v2323
      %v2325 = vpop.f32.mrf.mxu0
      %v2326 = vpop.f32.mrf.mxu0
      %v2327 = vadd.f32 %v2227, %v2326
      %v2328 = vpop.f32.mrf.mxu0
      %2329 = vmatprep.mubr.bf16.mxu0 0
      %2330 = vmatmul.mubr.bf16.gmra.mxu0 %v2268
      %v2331 = vpop.f32.mrf.mxu0
      %v2332 = vadd.f32 %v2232, %v2331
      %v2333 = vpop.f32.mrf.mxu0
      %v2334 = vpop.f32.mrf.mxu0
      %v2335 = vadd.f32 %v2235, %v2334
      %v2336 = vpop.f32.mrf.mxu0
      %2337 = vdwg.mxu0
      %v2338 = vld [vmem:[#allocation2] sm:$0xe]
      %v2339 = vld [vmem:[#allocation2 + $0x8] sm:$0xe]
      %v2340 = vld [vmem:[#allocation2 + $0x10] sm:$0xe]
      %v2341 = vld [vmem:[#allocation2 + $0x18] sm:$0xe]
      %v2342 = vld [vmem:[#allocation2 + $0x20] sm:$0xe]
      %v2343 = vld [vmem:[#allocation2 + $0x28] sm:$0xe]
      %v2344 = vld [vmem:[#allocation2 + $0x30] sm:$0xe]
      %v2345 = vld [vmem:[#allocation2 + $0x38] sm:$0xe]
      %vm2362 = vcmask 1042432
      %vm2363 = vcmask 1046532
      %vm2364 = vmor %vm2362, %vm2363
      %v2365 = vrot.slane %v2338, 5
      %v2366 = vrot.slane %v2365, 4
      %v2367 = vrot.slane %v2022, 5
      %v2368 = vsel %vm2364, %v2366, %v2367
      %v2369 = vrot.slane %v2339, 5
      %v2370 = vrot.slane %v2369, 4
      %v2371 = vrot.slane %v2023, 5
      %v2372 = vsel %vm2364, %v2370, %v2371
      %v2373 = vrot.slane %v2340, 5
      %v2374 = vrot.slane %v2373, 4
      %v2375 = vrot.slane %v2024, 5
      %v2376 = vsel %vm2364, %v2374, %v2375
      %v2377 = vrot.slane %v2341, 5
      %v2378 = vrot.slane %v2377, 4
      %v2379 = vrot.slane %v2025, 5
      %v2380 = vsel %vm2364, %v2378, %v2379
      %v2381 = vrot.slane %v2342, 5
      %v2382 = vrot.slane %v2381, 4
      %v2383 = vrot.slane %v2026, 5
      %v2384 = vsel %vm2364, %v2382, %v2383
      %v2385 = vrot.slane %v2343, 5
      %v2386 = vrot.slane %v2385, 4
      %v2387 = vrot.slane %v2027, 5
      %v2388 = vsel %vm2364, %v2386, %v2387
      %v2389 = vrot.slane %v2344, 5
      %v2390 = vrot.slane %v2389, 4
      %v2391 = vrot.slane %v2028, 5
      %v2392 = vsel %vm2364, %v2390, %v2391
      %v2393 = vrot.slane %v2345, 5
      %v2394 = vrot.slane %v2393, 4
      %v2395 = vrot.slane %v2029, 5
      %v2396 = vsel %vm2364, %v2394, %v2395
      %s2397 = scalar_lea.vmem %s6, 8
      %v2398 = vld [vmem:[%s2397] sm:$0xf]
      %v2399 = vunpack.c.l.b16 %v2368
      %v2400 = vunpack.c.l.b16 %v2372
      %v2401 = vunpack.c.l.b16 %v2376
      %v2402 = vunpack.c.l.b16 %v2380
      %v2403 = vunpack.c.l.b16 %v2384
      %v2404 = vunpack.c.l.b16 %v2388
      %v2405 = vunpack.c.l.b16 %v2392
      %v2406 = vunpack.c.l.b16 %v2396
      %v2407 = vpack.c.b16 %v2400, %v2399
      %v2408 = vpack.c.b16 %v2402, %v2401
      %v2409 = vpack.c.b16 %v2404, %v2403
      %v2410 = vpack.c.b16 %v2406, %v2405
      %v2412 = vsel %vm2156, %v2407, 0
      %v2415 = vsel %vm2156, %v2408, 0
      %v2418 = vsel %vm2156, %v2409, 0
      %v2421 = vsel %vm2156, %v2410, 0
      %v2424 = vsel %vm2169, %v2398, 0
      %2426 = vmatprep.subr.bf16.mxu0 0
      %2427 = vmatpush1.bf16.msra.mxu0 0
      %2428 = vmatprep.subr.bf16.mxu0 0
      %2429 = vmatpush1.bf16.msra.mxu0 0
      %2430 = vmatprep.subr.bf16.mxu0 0
      %2431 = vmatpush1.bf16.msra.mxu0 0
      %2432 = vmatprep.subr.bf16.mxu0 0
      %2433 = vmatpush1.bf16.msra.mxu0 0
      %2434 = vmatprep.subr.bf16.mxu0 0
      %2435 = vmatpush1.bf16.msra.mxu0 0
      %2436 = vmatprep.subr.bf16.mxu0 0
      %2437 = vmatpush1.bf16.msra.mxu0 0
      %2438 = vmatprep.subr.bf16.mxu0 0
      %2439 = vmatpush1.bf16.msra.mxu0 0
      %2440 = vmatprep.subr.bf16.mxu0 0
      %2441 = vmatpush1.bf16.msra.mxu0 %v2424
      %2442 = vmatprep.subr.bf16.mxu0 0
      %2443 = vmatpush2.bf16.msra.mxu0 0
      %2444 = vmatprep.subr.bf16.mxu0 0
      %2445 = vmatpush2.bf16.msra.mxu0 0
      %2446 = vmatprep.subr.bf16.mxu0 0
      %2447 = vmatpush2.bf16.msra.mxu0 0
      %2448 = vmatprep.subr.bf16.mxu0 0
      %2449 = vmatpush2.bf16.msra.mxu0 0
      %2450 = vmatprep.subr.bf16.mxu0 0
      %2451 = vmatpush2.bf16.msra.mxu0 0
      %2452 = vmatprep.subr.bf16.mxu0 0
      %2453 = vmatpush2.bf16.msra.mxu0 0
      %2454 = vmatprep.subr.bf16.mxu0 0
      %2455 = vmatpush2.bf16.msra.mxu0 0
      %2456 = vmatprep.subr.bf16.mxu0 0
      %2457 = vmatpush2.bf16.msra.mxu0 0
      %2458 = vmatprep.mubr.bf16.mxu0 0
      %2459 = vmatmul.mubr.bf16.gmra.mxu0 %v2412
      %v2460 = vpop.f32.mrf.mxu0
      %v2461 = vadd.f32 0.0, %v2460
      %v2462 = vpop.f32.mrf.mxu0
      %v2463 = vpop.f32.mrf.mxu0
      %v2464 = vadd.f32 0.0, %v2463
      %v2465 = vpop.f32.mrf.mxu0
      %2466 = vmatprep.mubr.bf16.mxu0 0
      %2467 = vmatmul.mubr.bf16.gmra.mxu0 %v2415
      %v2468 = vpop.f32.mrf.mxu0
      %v2469 = vadd.f32 0.0, %v2468
      %v2470 = vpop.f32.mrf.mxu0
      %v2471 = vpop.f32.mrf.mxu0
      %v2472 = vadd.f32 0.0, %v2471
      %v2473 = vpop.f32.mrf.mxu0
      %2474 = vmatprep.mubr.bf16.mxu0 0
      %2475 = vmatmul.mubr.bf16.gmra.mxu0 %v2418
      %v2476 = vpop.f32.mrf.mxu0
      %v2477 = vadd.f32 0.0, %v2476
      %v2478 = vpop.f32.mrf.mxu0
      %v2479 = vpop.f32.mrf.mxu0
      %v2480 = vadd.f32 0.0, %v2479
      %v2481 = vpop.f32.mrf.mxu0
      %2482 = vmatprep.mubr.bf16.mxu0 0
      %2483 = vmatmul.mubr.bf16.gmra.mxu0 %v2421
      %v2484 = vpop.f32.mrf.mxu0
      %v2485 = vadd.f32 0.0, %v2484
      %v2486 = vpop.f32.mrf.mxu0
      %v2487 = vpop.f32.mrf.mxu0
      %v2488 = vadd.f32 0.0, %v2487
      %v2489 = vpop.f32.mrf.mxu0
      %2490 = vdwg.mxu0
      %v2491 = vadd.f32 %v2308, %v2461
      %v2492 = vadd.f32 %v2311, %v2464
      %v2493 = vadd.f32 %v2316, %v2469
      %v2494 = vadd.f32 %v2319, %v2472
      %v2495 = vadd.f32 %v2324, %v2477
      %v2496 = vadd.f32 %v2327, %v2480
      %v2497 = vadd.f32 %v2332, %v2485
      %v2498 = vadd.f32 %v2335, %v2488
      %v2499 = vld [vmem:[%s1958] sm:$0xf]
      %v2500 = vld [vmem:[%s1958 + $0x8] sm:$0xf]
      %v2501 = vld [vmem:[%s1958 + $0x10] sm:$0xf]
      %v2502 = vld [vmem:[%s1958 + $0x18] sm:$0xf]
      %v2503 = vld [vmem:[%s1958 + $0x20] sm:$0xf]
      %v2504 = vld [vmem:[%s1958 + $0x28] sm:$0xf]
      %v2505 = vld [vmem:[%s1958 + $0x30] sm:$0xf]
      %v2506 = vld [vmem:[%s1958 + $0x38] sm:$0xf]
      %s2507 = scalar_lea.vmem %s6, 12
      %v2508 = vld [vmem:[%s2507] sm:$0xf]
      %v2517 = vunpack.c.l.b16 %v2499
      %v2518 = vunpack.c.l.b16 %v2500
      %v2519 = vunpack.c.l.b16 %v2501
      %v2520 = vunpack.c.l.b16 %v2502
      %v2521 = vunpack.c.l.b16 %v2503
      %v2522 = vunpack.c.l.b16 %v2504
      %v2523 = vunpack.c.l.b16 %v2505
      %v2524 = vunpack.c.l.b16 %v2506
      %v2525 = vpack.c.b16 %v2518, %v2517
      %v2526 = vpack.c.b16 %v2520, %v2519
      %v2527 = vpack.c.b16 %v2522, %v2521
      %v2528 = vpack.c.b16 %v2524, %v2523
      %v2530 = vsel %vm2156, %v2525, 0
      %v2533 = vsel %vm2156, %v2526, 0
      %v2536 = vsel %vm2156, %v2527, 0
      %v2539 = vsel %vm2156, %v2528, 0
      %v2542 = vsel %vm2169, %v2508, 0
      %2544 = vmatprep.subr.bf16.mxu0 0
      %2545 = vmatpush1.bf16.msra.mxu0 0
      %2546 = vmatprep.subr.bf16.mxu0 0
      %2547 = vmatpush1.bf16.msra.mxu0 0
      %2548 = vmatprep.subr.bf16.mxu0 0
      %2549 = vmatpush1.bf16.msra.mxu0 0
      %2550 = vmatprep.subr.bf16.mxu0 0
      %2551 = vmatpush1.bf16.msra.mxu0 0
      %2552 = vmatprep.subr.bf16.mxu0 0
      %2553 = vmatpush1.bf16.msra.mxu0 0
      %2554 = vmatprep.subr.bf16.mxu0 0
      %2555 = vmatpush1.bf16.msra.mxu0 0
      %2556 = vmatprep.subr.bf16.mxu0 0
      %2557 = vmatpush1.bf16.msra.mxu0 0
      %2558 = vmatprep.subr.bf16.mxu0 0
      %2559 = vmatpush1.bf16.msra.mxu0 %v2542
      %2560 = vmatprep.subr.bf16.mxu0 0
      %2561 = vmatpush2.bf16.msra.mxu0 0
      %2562 = vmatprep.subr.bf16.mxu0 0
      %2563 = vmatpush2.bf16.msra.mxu0 0
      %2564 = vmatprep.subr.bf16.mxu0 0
      %2565 = vmatpush2.bf16.msra.mxu0 0
      %2566 = vmatprep.subr.bf16.mxu0 0
      %2567 = vmatpush2.bf16.msra.mxu0 0
      %2568 = vmatprep.subr.bf16.mxu0 0
      %2569 = vmatpush2.bf16.msra.mxu0 0
      %2570 = vmatprep.subr.bf16.mxu0 0
      %2571 = vmatpush2.bf16.msra.mxu0 0
      %2572 = vmatprep.subr.bf16.mxu0 0
      %2573 = vmatpush2.bf16.msra.mxu0 0
      %2574 = vmatprep.subr.bf16.mxu0 0
      %2575 = vmatpush2.bf16.msra.mxu0 0
      %2576 = vmatprep.mubr.bf16.mxu0 0
      %2577 = vmatmul.mubr.bf16.gmra.mxu0 %v2530
      %v2578 = vpop.f32.mrf.mxu0
      %v2579 = vadd.f32 0.0, %v2578
      %v2580 = vpop.f32.mrf.mxu0
      %v2581 = vpop.f32.mrf.mxu0
      %v2582 = vadd.f32 0.0, %v2581
      %v2583 = vpop.f32.mrf.mxu0
      %2584 = vmatprep.mubr.bf16.mxu0 0
      %2585 = vmatmul.mubr.bf16.gmra.mxu0 %v2533
      %v2586 = vpop.f32.mrf.mxu0
      %v2587 = vadd.f32 0.0, %v2586
      %v2588 = vpop.f32.mrf.mxu0
      %v2589 = vpop.f32.mrf.mxu0
      %v2590 = vadd.f32 0.0, %v2589
      %v2591 = vpop.f32.mrf.mxu0
      %2592 = vmatprep.mubr.bf16.mxu0 0
      %2593 = vmatmul.mubr.bf16.gmra.mxu0 %v2536
      %v2594 = vpop.f32.mrf.mxu0
      %v2595 = vadd.f32 0.0, %v2594
      %v2596 = vpop.f32.mrf.mxu0
      %v2597 = vpop.f32.mrf.mxu0
      %v2598 = vadd.f32 0.0, %v2597
      %v2599 = vpop.f32.mrf.mxu0
      %2600 = vmatprep.mubr.bf16.mxu0 0
      %2601 = vmatmul.mubr.bf16.gmra.mxu0 %v2539
      %v2602 = vpop.f32.mrf.mxu0
      %v2603 = vadd.f32 0.0, %v2602
      %v2604 = vpop.f32.mrf.mxu0
      %v2605 = vpop.f32.mrf.mxu0
      %v2606 = vadd.f32 0.0, %v2605
      %v2607 = vpop.f32.mrf.mxu0
      %2608 = vdwg.mxu0
      %v2609 = vadd.f32 %v2491, %v2579
      %v2610 = vadd.f32 %v2492, %v2582
      %v2611 = vadd.f32 %v2493, %v2587
      %v2612 = vadd.f32 %v2494, %v2590
      %v2613 = vadd.f32 %v2495, %v2595
      %v2614 = vadd.f32 %v2496, %v2598
      %v2615 = vadd.f32 %v2497, %v2603
      %v2616 = vadd.f32 %v2498, %v2606
      %v2617 = vld [vmem:[%s1958] sm:$0xf]
      %v2618 = vld [vmem:[%s1958 + $0x4] sm:$0x1]
      %v2619 = vld [vmem:[%s1958 + $0x8] sm:$0xf]
      %v2620 = vld [vmem:[%s1958 + $0xc] sm:$0x1]
      %v2621 = vld [vmem:[%s1958 + $0x10] sm:$0xf]
      %v2622 = vld [vmem:[%s1958 + $0x14] sm:$0x1]
      %v2623 = vld [vmem:[%s1958 + $0x18] sm:$0xf]
      %v2624 = vld [vmem:[%s1958 + $0x1c] sm:$0x1]
      %v2625 = vld [vmem:[%s1958 + $0x20] sm:$0xf]
      %v2626 = vld [vmem:[%s1958 + $0x24] sm:$0x1]
      %v2627 = vld [vmem:[%s1958 + $0x28] sm:$0xf]
      %v2628 = vld [vmem:[%s1958 + $0x2c] sm:$0x1]
      %v2629 = vld [vmem:[%s1958 + $0x30] sm:$0xf]
      %v2630 = vld [vmem:[%s1958 + $0x34] sm:$0x1]
      %v2631 = vld [vmem:[%s1958 + $0x38] sm:$0xf]
      %v2632 = vld [vmem:[%s1958 + $0x3c] sm:$0x1]
      %v2634 = vshrl.u32 %v2617, 16
      %v2636 = vrot.slane %v2634, 4
      %v2637 = vshll.u32 %v2617, 16
      %v2639 = vrot.slane %v2637, 5
      %v2640 = vor.u32 %v2636, %v2639
      %v2641 = vrot.slane %v2640, 4
      %v2643 = vshll.u32 %v2618, 16
      %v2645 = vrot.slane %v2643, 5
      %v2646 = vsel %vm660, %v2641, %v2645
      %v2648 = vshrl.u32 %v2619, 16
      %v2650 = vrot.slane %v2648, 4
      %v2651 = vshll.u32 %v2619, 16
      %v2653 = vrot.slane %v2651, 5
      %v2654 = vor.u32 %v2650, %v2653
      %v2655 = vrot.slane %v2654, 4
      %v2657 = vshll.u32 %v2620, 16
      %v2659 = vrot.slane %v2657, 5
      %v2660 = vsel %vm660, %v2655, %v2659
      %v2662 = vshrl.u32 %v2621, 16
      %v2664 = vrot.slane %v2662, 4
      %v2665 = vshll.u32 %v2621, 16
      %v2667 = vrot.slane %v2665, 5
      %v2668 = vor.u32 %v2664, %v2667
      %v2669 = vrot.slane %v2668, 4
      %v2671 = vshll.u32 %v2622, 16
      %v2673 = vrot.slane %v2671, 5
      %v2674 = vsel %vm660, %v2669, %v2673
      %v2676 = vshrl.u32 %v2623, 16
      %v2678 = vrot.slane %v2676, 4
      %v2679 = vshll.u32 %v2623, 16
      %v2681 = vrot.slane %v2679, 5
      %v2682 = vor.u32 %v2678, %v2681
      %v2683 = vrot.slane %v2682, 4
      %v2685 = vshll.u32 %v2624, 16
      %v2687 = vrot.slane %v2685, 5
      %v2688 = vsel %vm660, %v2683, %v2687
      %v2690 = vshrl.u32 %v2625, 16
      %v2692 = vrot.slane %v2690, 4
      %v2693 = vshll.u32 %v2625, 16
      %v2695 = vrot.slane %v2693, 5
      %v2696 = vor.u32 %v2692, %v2695
      %v2697 = vrot.slane %v2696, 4
      %v2699 = vshll.u32 %v2626, 16
      %v2701 = vrot.slane %v2699, 5
      %v2702 = vsel %vm660, %v2697, %v2701
      %v2704 = vshrl.u32 %v2627, 16
      %v2706 = vrot.slane %v2704, 4
      %v2707 = vshll.u32 %v2627, 16
      %v2709 = vrot.slane %v2707, 5
      %v2710 = vor.u32 %v2706, %v2709
      %v2711 = vrot.slane %v2710, 4
      %v2713 = vshll.u32 %v2628, 16
      %v2715 = vrot.slane %v2713, 5
      %v2716 = vsel %vm660, %v2711, %v2715
      %v2718 = vshrl.u32 %v2629, 16
      %v2720 = vrot.slane %v2718, 4
      %v2721 = vshll.u32 %v2629, 16
      %v2723 = vrot.slane %v2721, 5
      %v2724 = vor.u32 %v2720, %v2723
      %v2725 = vrot.slane %v2724, 4
      %v2727 = vshll.u32 %v2630, 16
      %v2729 = vrot.slane %v2727, 5
      %v2730 = vsel %vm660, %v2725, %v2729
      %v2732 = vshrl.u32 %v2631, 16
      %v2734 = vrot.slane %v2732, 4
      %v2735 = vshll.u32 %v2631, 16
      %v2737 = vrot.slane %v2735, 5
      %v2738 = vor.u32 %v2734, %v2737
      %v2739 = vrot.slane %v2738, 4
      %v2741 = vshll.u32 %v2632, 16
      %v2743 = vrot.slane %v2741, 5
      %v2744 = vsel %vm660, %v2739, %v2743
      %s2745 = scalar_lea.vmem %s6, 16
      %v2746 = vld [vmem:[%s2745] sm:$0xf]
      %v2747 = vunpack.c.l.b16 %v2646
      %v2748 = vunpack.c.l.b16 %v2660
      %v2749 = vunpack.c.l.b16 %v2674
      %v2750 = vunpack.c.l.b16 %v2688
      %v2751 = vunpack.c.l.b16 %v2702
      %v2752 = vunpack.c.l.b16 %v2716
      %v2753 = vunpack.c.l.b16 %v2730
      %v2754 = vunpack.c.l.b16 %v2744
      %v2755 = vpack.c.b16 %v2748, %v2747
      %v2756 = vpack.c.b16 %v2750, %v2749
      %v2757 = vpack.c.b16 %v2752, %v2751
      %v2758 = vpack.c.b16 %v2754, %v2753
      %v2760 = vsel %vm2156, %v2755, 0
      %v2763 = vsel %vm2156, %v2756, 0
      %v2766 = vsel %vm2156, %v2757, 0
      %v2769 = vsel %vm2156, %v2758, 0
      %v2772 = vsel %vm2169, %v2746, 0
      %2774 = vmatprep.subr.bf16.mxu0 0
      %2775 = vmatpush1.bf16.msra.mxu0 0
      %2776 = vmatprep.subr.bf16.mxu0 0
      %2777 = vmatpush1.bf16.msra.mxu0 0
      %2778 = vmatprep.subr.bf16.mxu0 0
      %2779 = vmatpush1.bf16.msra.mxu0 0
      %2780 = vmatprep.subr.bf16.mxu0 0
      %2781 = vmatpush1.bf16.msra.mxu0 0
      %2782 = vmatprep.subr.bf16.mxu0 0
      %2783 = vmatpush1.bf16.msra.mxu0 0
      %2784 = vmatprep.subr.bf16.mxu0 0
      %2785 = vmatpush1.bf16.msra.mxu0 0
      %2786 = vmatprep.subr.bf16.mxu0 0
      %2787 = vmatpush1.bf16.msra.mxu0 0
      %2788 = vmatprep.subr.bf16.mxu0 0
      %2789 = vmatpush1.bf16.msra.mxu0 %v2772
      %2790 = vmatprep.subr.bf16.mxu0 0
      %2791 = vmatpush2.bf16.msra.mxu0 0
      %2792 = vmatprep.subr.bf16.mxu0 0
      %2793 = vmatpush2.bf16.msra.mxu0 0
      %2794 = vmatprep.subr.bf16.mxu0 0
      %2795 = vmatpush2.bf16.msra.mxu0 0
      %2796 = vmatprep.subr.bf16.mxu0 0
      %2797 = vmatpush2.bf16.msra.mxu0 0
      %2798 = vmatprep.subr.bf16.mxu0 0
      %2799 = vmatpush2.bf16.msra.mxu0 0
      %2800 = vmatprep.subr.bf16.mxu0 0
      %2801 = vmatpush2.bf16.msra.mxu0 0
      %2802 = vmatprep.subr.bf16.mxu0 0
      %2803 = vmatpush2.bf16.msra.mxu0 0
      %2804 = vmatprep.subr.bf16.mxu0 0
      %2805 = vmatpush2.bf16.msra.mxu0 0
      %2806 = vmatprep.mubr.bf16.mxu0 0
      %2807 = vmatmul.mubr.bf16.gmra.mxu0 %v2760
      %v2808 = vpop.f32.mrf.mxu0
      %v2809 = vadd.f32 0.0, %v2808
      %v2810 = vpop.f32.mrf.mxu0
      %v2811 = vpop.f32.mrf.mxu0
      %v2812 = vadd.f32 0.0, %v2811
      %v2813 = vpop.f32.mrf.mxu0
      %2814 = vmatprep.mubr.bf16.mxu0 0
      %2815 = vmatmul.mubr.bf16.gmra.mxu0 %v2763
      %v2816 = vpop.f32.mrf.mxu0
      %v2817 = vadd.f32 0.0, %v2816
      %v2818 = vpop.f32.mrf.mxu0
      %v2819 = vpop.f32.mrf.mxu0
      %v2820 = vadd.f32 0.0, %v2819
      %v2821 = vpop.f32.mrf.mxu0
      %2822 = vmatprep.mubr.bf16.mxu0 0
      %2823 = vmatmul.mubr.bf16.gmra.mxu0 %v2766
      %v2824 = vpop.f32.mrf.mxu0
      %v2825 = vadd.f32 0.0, %v2824
      %v2826 = vpop.f32.mrf.mxu0
      %v2827 = vpop.f32.mrf.mxu0
      %v2828 = vadd.f32 0.0, %v2827
      %v2829 = vpop.f32.mrf.mxu0
      %2830 = vmatprep.mubr.bf16.mxu0 0
      %2831 = vmatmul.mubr.bf16.gmra.mxu0 %v2769
      %v2832 = vpop.f32.mrf.mxu0
      %v2833 = vadd.f32 0.0, %v2832
      %v2834 = vpop.f32.mrf.mxu0
      %v2835 = vpop.f32.mrf.mxu0
      %v2836 = vadd.f32 0.0, %v2835
      %v2837 = vpop.f32.mrf.mxu0
      %2838 = vdwg.mxu0
      %v2839 = vadd.f32 %v2609, %v2809
      %v2840 = vadd.f32 %v2610, %v2812
      %v2841 = vadd.f32 %v2611, %v2817
      %v2842 = vadd.f32 %v2612, %v2820
      %v2843 = vadd.f32 %v2613, %v2825
      %v2844 = vadd.f32 %v2614, %v2828
      %v2845 = vadd.f32 %v2615, %v2833
      %v2846 = vadd.f32 %v2616, %v2836
      %v2847 = vld [vmem:[%s1958] sm:$0xe]
      %v2848 = vld [vmem:[%s1958 + $0x8] sm:$0xe]
      %v2849 = vld [vmem:[%s1958 + $0x10] sm:$0xe]
      %v2850 = vld [vmem:[%s1958 + $0x18] sm:$0xe]
      %v2851 = vld [vmem:[%s1958 + $0x20] sm:$0xe]
      %v2852 = vld [vmem:[%s1958 + $0x28] sm:$0xe]
      %v2853 = vld [vmem:[%s1958 + $0x30] sm:$0xe]
      %v2854 = vld [vmem:[%s1958 + $0x38] sm:$0xe]
      %v2871 = vrot.slane %v2847, 5
      %v2872 = vrot.slane %v2871, 4
      %v2873 = vrot.slane %v2618, 5
      %v2874 = vsel %vm2364, %v2872, %v2873
      %v2875 = vrot.slane %v2848, 5
      %v2876 = vrot.slane %v2875, 4
      %v2877 = vrot.slane %v2620, 5
      %v2878 = vsel %vm2364, %v2876, %v2877
      %v2879 = vrot.slane %v2849, 5
      %v2880 = vrot.slane %v2879, 4
      %v2881 = vrot.slane %v2622, 5
      %v2882 = vsel %vm2364, %v2880, %v2881
      %v2883 = vrot.slane %v2850, 5
      %v2884 = vrot.slane %v2883, 4
      %v2885 = vrot.slane %v2624, 5
      %v2886 = vsel %vm2364, %v2884, %v2885
      %v2887 = vrot.slane %v2851, 5
      %v2888 = vrot.slane %v2887, 4
      %v2889 = vrot.slane %v2626, 5
      %v2890 = vsel %vm2364, %v2888, %v2889
      %v2891 = vrot.slane %v2852, 5
      %v2892 = vrot.slane %v2891, 4
      %v2893 = vrot.slane %v2628, 5
      %v2894 = vsel %vm2364, %v2892, %v2893
      %v2895 = vrot.slane %v2853, 5
      %v2896 = vrot.slane %v2895, 4
      %v2897 = vrot.slane %v2630, 5
      %v2898 = vsel %vm2364, %v2896, %v2897
      %v2899 = vrot.slane %v2854, 5
      %v2900 = vrot.slane %v2899, 4
      %v2901 = vrot.slane %v2632, 5
      %v2902 = vsel %vm2364, %v2900, %v2901
      %s2903 = scalar_lea.vmem %s6, 20
      %v2904 = vld [vmem:[%s2903] sm:$0xf]
      %v2905 = vunpack.c.l.b16 %v2874
      %v2906 = vunpack.c.l.b16 %v2878
      %v2907 = vunpack.c.l.b16 %v2882
      %v2908 = vunpack.c.l.b16 %v2886
      %v2909 = vunpack.c.l.b16 %v2890
      %v2910 = vunpack.c.l.b16 %v2894
      %v2911 = vunpack.c.l.b16 %v2898
      %v2912 = vunpack.c.l.b16 %v2902
      %v2913 = vpack.c.b16 %v2906, %v2905
      %v2914 = vpack.c.b16 %v2908, %v2907
      %v2915 = vpack.c.b16 %v2910, %v2909
      %v2916 = vpack.c.b16 %v2912, %v2911
      %v2918 = vsel %vm2156, %v2913, 0
      %v2921 = vsel %vm2156, %v2914, 0
      %v2924 = vsel %vm2156, %v2915, 0
      %v2927 = vsel %vm2156, %v2916, 0
      %v2930 = vsel %vm2169, %v2904, 0
      %2932 = vmatprep.subr.bf16.mxu0 0
      %2933 = vmatpush1.bf16.msra.mxu0 0
      %2934 = vmatprep.subr.bf16.mxu0 0
      %2935 = vmatpush1.bf16.msra.mxu0 0
      %2936 = vmatprep.subr.bf16.mxu0 0
      %2937 = vmatpush1.bf16.msra.mxu0 0
      %2938 = vmatprep.subr.bf16.mxu0 0
      %2939 = vmatpush1.bf16.msra.mxu0 0
      %2940 = vmatprep.subr.bf16.mxu0 0
      %2941 = vmatpush1.bf16.msra.mxu0 0
      %2942 = vmatprep.subr.bf16.mxu0 0
      %2943 = vmatpush1.bf16.msra.mxu0 0
      %2944 = vmatprep.subr.bf16.mxu0 0
      %2945 = vmatpush1.bf16.msra.mxu0 0
      %2946 = vmatprep.subr.bf16.mxu0 0
      %2947 = vmatpush1.bf16.msra.mxu0 %v2930
      %2948 = vmatprep.subr.bf16.mxu0 0
      %2949 = vmatpush2.bf16.msra.mxu0 0
      %2950 = vmatprep.subr.bf16.mxu0 0
      %2951 = vmatpush2.bf16.msra.mxu0 0
      %2952 = vmatprep.subr.bf16.mxu0 0
      %2953 = vmatpush2.bf16.msra.mxu0 0
      %2954 = vmatprep.subr.bf16.mxu0 0
      %2955 = vmatpush2.bf16.msra.mxu0 0
      %2956 = vmatprep.subr.bf16.mxu0 0
      %2957 = vmatpush2.bf16.msra.mxu0 0
      %2958 = vmatprep.subr.bf16.mxu0 0
      %2959 = vmatpush2.bf16.msra.mxu0 0
      %2960 = vmatprep.subr.bf16.mxu0 0
      %2961 = vmatpush2.bf16.msra.mxu0 0
      %2962 = vmatprep.subr.bf16.mxu0 0
      %2963 = vmatpush2.bf16.msra.mxu0 0
      %2964 = vmatprep.mubr.bf16.mxu0 0
      %2965 = vmatmul.mubr.bf16.gmra.mxu0 %v2918
      %v2966 = vpop.f32.mrf.mxu0
      %v2967 = vadd.f32 0.0, %v2966
      %v2968 = vpop.f32.mrf.mxu0
      %v2969 = vpop.f32.mrf.mxu0
      %v2970 = vadd.f32 0.0, %v2969
      %v2971 = vpop.f32.mrf.mxu0
      %2972 = vmatprep.mubr.bf16.mxu0 0
      %2973 = vmatmul.mubr.bf16.gmra.mxu0 %v2921
      %v2974 = vpop.f32.mrf.mxu0
      %v2975 = vadd.f32 0.0, %v2974
      %v2976 = vpop.f32.mrf.mxu0
      %v2977 = vpop.f32.mrf.mxu0
      %v2978 = vadd.f32 0.0, %v2977
      %v2979 = vpop.f32.mrf.mxu0
      %2980 = vmatprep.mubr.bf16.mxu0 0
      %2981 = vmatmul.mubr.bf16.gmra.mxu0 %v2924
      %v2982 = vpop.f32.mrf.mxu0
      %v2983 = vadd.f32 0.0, %v2982
      %v2984 = vpop.f32.mrf.mxu0
      %v2985 = vpop.f32.mrf.mxu0
      %v2986 = vadd.f32 0.0, %v2985
      %v2987 = vpop.f32.mrf.mxu0
      %2988 = vmatprep.mubr.bf16.mxu0 0
      %2989 = vmatmul.mubr.bf16.gmra.mxu0 %v2927
      %v2990 = vpop.f32.mrf.mxu0
      %v2991 = vadd.f32 0.0, %v2990
      %v2992 = vpop.f32.mrf.mxu0
      %v2993 = vpop.f32.mrf.mxu0
      %v2994 = vadd.f32 0.0, %v2993
      %v2995 = vpop.f32.mrf.mxu0
      %2996 = vdwg.mxu0
      %v2997 = vadd.f32 %v2839, %v2967
      %v2998 = vadd.f32 %v2840, %v2970
      %v2999 = vadd.f32 %v2841, %v2975
      %v3000 = vadd.f32 %v2842, %v2978
      %v3001 = vadd.f32 %v2843, %v2983
      %v3002 = vadd.f32 %v2844, %v2986
      %v3003 = vadd.f32 %v2845, %v2991
      %v3004 = vadd.f32 %v2846, %v2994
      %s3005 = scalar_lea.vmem [#allocation2], 16
      %v3006 = vld [vmem:[%s3005] sm:$0xf]
      %v3007 = vld [vmem:[%s3005 + $0x8] sm:$0xf]
      %v3008 = vld [vmem:[%s3005 + $0x10] sm:$0xf]
      %v3009 = vld [vmem:[%s3005 + $0x18] sm:$0xf]
      %v3010 = vld [vmem:[%s3005 + $0x20] sm:$0xf]
      %v3011 = vld [vmem:[%s3005 + $0x28] sm:$0xf]
      %v3012 = vld [vmem:[%s3005 + $0x30] sm:$0xf]
      %v3013 = vld [vmem:[%s3005 + $0x38] sm:$0xf]
      %s3014 = scalar_lea.vmem %s6, 24
      %v3015 = vld [vmem:[%s3014] sm:$0xf]
      %v3024 = vunpack.c.l.b16 %v3006
      %v3025 = vunpack.c.l.b16 %v3007
      %v3026 = vunpack.c.l.b16 %v3008
      %v3027 = vunpack.c.l.b16 %v3009
      %v3028 = vunpack.c.l.b16 %v3010
      %v3029 = vunpack.c.l.b16 %v3011
      %v3030 = vunpack.c.l.b16 %v3012
      %v3031 = vunpack.c.l.b16 %v3013
      %v3032 = vpack.c.b16 %v3025, %v3024
      %v3033 = vpack.c.b16 %v3027, %v3026
      %v3034 = vpack.c.b16 %v3029, %v3028
      %v3035 = vpack.c.b16 %v3031, %v3030
      %v3037 = vsel %vm2156, %v3032, 0
      %v3040 = vsel %vm2156, %v3033, 0
      %v3043 = vsel %vm2156, %v3034, 0
      %v3046 = vsel %vm2156, %v3035, 0
      %v3049 = vsel %vm2169, %v3015, 0
      %3051 = vmatprep.subr.bf16.mxu0 0
      %3052 = vmatpush1.bf16.msra.mxu0 0
      %3053 = vmatprep.subr.bf16.mxu0 0
      %3054 = vmatpush1.bf16.msra.mxu0 0
      %3055 = vmatprep.subr.bf16.mxu0 0
      %3056 = vmatpush1.bf16.msra.mxu0 0
      %3057 = vmatprep.subr.bf16.mxu0 0
      %3058 = vmatpush1.bf16.msra.mxu0 0
      %3059 = vmatprep.subr.bf16.mxu0 0
      %3060 = vmatpush1.bf16.msra.mxu0 0
      %3061 = vmatprep.subr.bf16.mxu0 0
      %3062 = vmatpush1.bf16.msra.mxu0 0
      %3063 = vmatprep.subr.bf16.mxu0 0
      %3064 = vmatpush1.bf16.msra.mxu0 0
      %3065 = vmatprep.subr.bf16.mxu0 0
      %3066 = vmatpush1.bf16.msra.mxu0 %v3049
      %3067 = vmatprep.subr.bf16.mxu0 0
      %3068 = vmatpush2.bf16.msra.mxu0 0
      %3069 = vmatprep.subr.bf16.mxu0 0
      %3070 = vmatpush2.bf16.msra.mxu0 0
      %3071 = vmatprep.subr.bf16.mxu0 0
      %3072 = vmatpush2.bf16.msra.mxu0 0
      %3073 = vmatprep.subr.bf16.mxu0 0
      %3074 = vmatpush2.bf16.msra.mxu0 0
      %3075 = vmatprep.subr.bf16.mxu0 0
      %3076 = vmatpush2.bf16.msra.mxu0 0
      %3077 = vmatprep.subr.bf16.mxu0 0
      %3078 = vmatpush2.bf16.msra.mxu0 0
      %3079 = vmatprep.subr.bf16.mxu0 0
      %3080 = vmatpush2.bf16.msra.mxu0 0
      %3081 = vmatprep.subr.bf16.mxu0 0
      %3082 = vmatpush2.bf16.msra.mxu0 0
      %3083 = vmatprep.mubr.bf16.mxu0 0
      %3084 = vmatmul.mubr.bf16.gmra.mxu0 %v3037
      %v3085 = vpop.f32.mrf.mxu0
      %v3086 = vadd.f32 0.0, %v3085
      %v3087 = vpop.f32.mrf.mxu0
      %v3088 = vpop.f32.mrf.mxu0
      %v3089 = vadd.f32 0.0, %v3088
      %v3090 = vpop.f32.mrf.mxu0
      %3091 = vmatprep.mubr.bf16.mxu0 0
      %3092 = vmatmul.mubr.bf16.gmra.mxu0 %v3040
      %v3093 = vpop.f32.mrf.mxu0
      %v3094 = vadd.f32 0.0, %v3093
      %v3095 = vpop.f32.mrf.mxu0
      %v3096 = vpop.f32.mrf.mxu0
      %v3097 = vadd.f32 0.0, %v3096
      %v3098 = vpop.f32.mrf.mxu0
      %3099 = vmatprep.mubr.bf16.mxu0 0
      %3100 = vmatmul.mubr.bf16.gmra.mxu0 %v3043
      %v3101 = vpop.f32.mrf.mxu0
      %v3102 = vadd.f32 0.0, %v3101
      %v3103 = vpop.f32.mrf.mxu0
      %v3104 = vpop.f32.mrf.mxu0
      %v3105 = vadd.f32 0.0, %v3104
      %v3106 = vpop.f32.mrf.mxu0
      %3107 = vmatprep.mubr.bf16.mxu0 0
      %3108 = vmatmul.mubr.bf16.gmra.mxu0 %v3046
      %v3109 = vpop.f32.mrf.mxu0
      %v3110 = vadd.f32 0.0, %v3109
      %v3111 = vpop.f32.mrf.mxu0
      %v3112 = vpop.f32.mrf.mxu0
      %v3113 = vadd.f32 0.0, %v3112
      %v3114 = vpop.f32.mrf.mxu0
      %3115 = vdwg.mxu0
      %v3116 = vadd.f32 %v2997, %v3086
      %v3117 = vadd.f32 %v2998, %v3089
      %v3118 = vadd.f32 %v2999, %v3094
      %v3119 = vadd.f32 %v3000, %v3097
      %v3120 = vadd.f32 %v3001, %v3102
      %v3121 = vadd.f32 %v3002, %v3105
      %v3122 = vadd.f32 %v3003, %v3110
      %v3123 = vadd.f32 %v3004, %v3113
      %v3124 = vld [vmem:[%s3005] sm:$0xf]
      %v3125 = vld [vmem:[%s3005 + $0x4] sm:$0x1]
      %v3126 = vld [vmem:[%s3005 + $0x8] sm:$0xf]
      %v3127 = vld [vmem:[%s3005 + $0xc] sm:$0x1]
      %v3128 = vld [vmem:[%s3005 + $0x10] sm:$0xf]
      %v3129 = vld [vmem:[%s3005 + $0x14] sm:$0x1]
      %v3130 = vld [vmem:[%s3005 + $0x18] sm:$0xf]
      %v3131 = vld [vmem:[%s3005 + $0x1c] sm:$0x1]
      %v3132 = vld [vmem:[%s3005 + $0x20] sm:$0xf]
      %v3133 = vld [vmem:[%s3005 + $0x24] sm:$0x1]
      %v3134 = vld [vmem:[%s3005 + $0x28] sm:$0xf]
      %v3135 = vld [vmem:[%s3005 + $0x2c] sm:$0x1]
      %v3136 = vld [vmem:[%s3005 + $0x30] sm:$0xf]
      %v3137 = vld [vmem:[%s3005 + $0x34] sm:$0x1]
      %v3138 = vld [vmem:[%s3005 + $0x38] sm:$0xf]
      %v3139 = vld [vmem:[%s3005 + $0x3c] sm:$0x1]
      %v3141 = vshrl.u32 %v3124, 16
      %v3143 = vrot.slane %v3141, 4
      %v3144 = vshll.u32 %v3124, 16
      %v3146 = vrot.slane %v3144, 5
      %v3147 = vor.u32 %v3143, %v3146
      %v3148 = vrot.slane %v3147, 4
      %v3150 = vshll.u32 %v3125, 16
      %v3152 = vrot.slane %v3150, 5
      %v3153 = vsel %vm660, %v3148, %v3152
      %v3155 = vshrl.u32 %v3126, 16
      %v3157 = vrot.slane %v3155, 4
      %v3158 = vshll.u32 %v3126, 16
      %v3160 = vrot.slane %v3158, 5
      %v3161 = vor.u32 %v3157, %v3160
      %v3162 = vrot.slane %v3161, 4
      %v3164 = vshll.u32 %v3127, 16
      %v3166 = vrot.slane %v3164, 5
      %v3167 = vsel %vm660, %v3162, %v3166
      %v3169 = vshrl.u32 %v3128, 16
      %v3171 = vrot.slane %v3169, 4
      %v3172 = vshll.u32 %v3128, 16
      %v3174 = vrot.slane %v3172, 5
      %v3175 = vor.u32 %v3171, %v3174
      %v3176 = vrot.slane %v3175, 4
      %v3178 = vshll.u32 %v3129, 16
      %v3180 = vrot.slane %v3178, 5
      %v3181 = vsel %vm660, %v3176, %v3180
      %v3183 = vshrl.u32 %v3130, 16
      %v3185 = vrot.slane %v3183, 4
      %v3186 = vshll.u32 %v3130, 16
      %v3188 = vrot.slane %v3186, 5
      %v3189 = vor.u32 %v3185, %v3188
      %v3190 = vrot.slane %v3189, 4
      %v3192 = vshll.u32 %v3131, 16
      %v3194 = vrot.slane %v3192, 5
      %v3195 = vsel %vm660, %v3190, %v3194
      %v3197 = vshrl.u32 %v3132, 16
      %v3199 = vrot.slane %v3197, 4
      %v3200 = vshll.u32 %v3132, 16
      %v3202 = vrot.slane %v3200, 5
      %v3203 = vor.u32 %v3199, %v3202
      %v3204 = vrot.slane %v3203, 4
      %v3206 = vshll.u32 %v3133, 16
      %v3208 = vrot.slane %v3206, 5
      %v3209 = vsel %vm660, %v3204, %v3208
      %v3211 = vshrl.u32 %v3134, 16
      %v3213 = vrot.slane %v3211, 4
      %v3214 = vshll.u32 %v3134, 16
      %v3216 = vrot.slane %v3214, 5
      %v3217 = vor.u32 %v3213, %v3216
      %v3218 = vrot.slane %v3217, 4
      %v3220 = vshll.u32 %v3135, 16
      %v3222 = vrot.slane %v3220, 5
      %v3223 = vsel %vm660, %v3218, %v3222
      %v3225 = vshrl.u32 %v3136, 16
      %v3227 = vrot.slane %v3225, 4
      %v3228 = vshll.u32 %v3136, 16
      %v3230 = vrot.slane %v3228, 5
      %v3231 = vor.u32 %v3227, %v3230
      %v3232 = vrot.slane %v3231, 4
      %v3234 = vshll.u32 %v3137, 16
      %v3236 = vrot.slane %v3234, 5
      %v3237 = vsel %vm660, %v3232, %v3236
      %v3239 = vshrl.u32 %v3138, 16
      %v3241 = vrot.slane %v3239, 4
      %v3242 = vshll.u32 %v3138, 16
      %v3244 = vrot.slane %v3242, 5
      %v3245 = vor.u32 %v3241, %v3244
      %v3246 = vrot.slane %v3245, 4
      %v3248 = vshll.u32 %v3139, 16
      %v3250 = vrot.slane %v3248, 5
      %v3251 = vsel %vm660, %v3246, %v3250
      %s3252 = scalar_lea.vmem %s6, 28
      %v3253 = vld [vmem:[%s3252] sm:$0xf]
      %v3254 = vunpack.c.l.b16 %v3153
      %v3255 = vunpack.c.l.b16 %v3167
      %v3256 = vunpack.c.l.b16 %v3181
      %v3257 = vunpack.c.l.b16 %v3195
      %v3258 = vunpack.c.l.b16 %v3209
      %v3259 = vunpack.c.l.b16 %v3223
      %v3260 = vunpack.c.l.b16 %v3237
      %v3261 = vunpack.c.l.b16 %v3251
      %v3262 = vpack.c.b16 %v3255, %v3254
      %v3263 = vpack.c.b16 %v3257, %v3256
      %v3264 = vpack.c.b16 %v3259, %v3258
      %v3265 = vpack.c.b16 %v3261, %v3260
      %v3267 = vsel %vm2156, %v3262, 0
      %v3270 = vsel %vm2156, %v3263, 0
      %v3273 = vsel %vm2156, %v3264, 0
      %v3276 = vsel %vm2156, %v3265, 0
      %v3279 = vsel %vm2169, %v3253, 0
      %3281 = vmatprep.subr.bf16.mxu0 0
      %3282 = vmatpush1.bf16.msra.mxu0 0
      %3283 = vmatprep.subr.bf16.mxu0 0
      %3284 = vmatpush1.bf16.msra.mxu0 0
      %3285 = vmatprep.subr.bf16.mxu0 0
      %3286 = vmatpush1.bf16.msra.mxu0 0
      %3287 = vmatprep.subr.bf16.mxu0 0
      %3288 = vmatpush1.bf16.msra.mxu0 0
      %3289 = vmatprep.subr.bf16.mxu0 0
      %3290 = vmatpush1.bf16.msra.mxu0 0
      %3291 = vmatprep.subr.bf16.mxu0 0
      %3292 = vmatpush1.bf16.msra.mxu0 0
      %3293 = vmatprep.subr.bf16.mxu0 0
      %3294 = vmatpush1.bf16.msra.mxu0 0
      %3295 = vmatprep.subr.bf16.mxu0 0
      %3296 = vmatpush1.bf16.msra.mxu0 %v3279
      %3297 = vmatprep.subr.bf16.mxu0 0
      %3298 = vmatpush2.bf16.msra.mxu0 0
      %3299 = vmatprep.subr.bf16.mxu0 0
      %3300 = vmatpush2.bf16.msra.mxu0 0
      %3301 = vmatprep.subr.bf16.mxu0 0
      %3302 = vmatpush2.bf16.msra.mxu0 0
      %3303 = vmatprep.subr.bf16.mxu0 0
      %3304 = vmatpush2.bf16.msra.mxu0 0
      %3305 = vmatprep.subr.bf16.mxu0 0
      %3306 = vmatpush2.bf16.msra.mxu0 0
      %3307 = vmatprep.subr.bf16.mxu0 0
      %3308 = vmatpush2.bf16.msra.mxu0 0
      %3309 = vmatprep.subr.bf16.mxu0 0
      %3310 = vmatpush2.bf16.msra.mxu0 0
      %3311 = vmatprep.subr.bf16.mxu0 0
      %3312 = vmatpush2.bf16.msra.mxu0 0
      %3313 = vmatprep.mubr.bf16.mxu0 0
      %3314 = vmatmul.mubr.bf16.gmra.mxu0 %v3267
      %v3315 = vpop.f32.mrf.mxu0
      %v3316 = vadd.f32 0.0, %v3315
      %v3317 = vpop.f32.mrf.mxu0
      %v3318 = vpop.f32.mrf.mxu0
      %v3319 = vadd.f32 0.0, %v3318
      %v3320 = vpop.f32.mrf.mxu0
      %3321 = vmatprep.mubr.bf16.mxu0 0
      %3322 = vmatmul.mubr.bf16.gmra.mxu0 %v3270
      %v3323 = vpop.f32.mrf.mxu0
      %v3324 = vadd.f32 0.0, %v3323
      %v3325 = vpop.f32.mrf.mxu0
      %v3326 = vpop.f32.mrf.mxu0
      %v3327 = vadd.f32 0.0, %v3326
      %v3328 = vpop.f32.mrf.mxu0
      %3329 = vmatprep.mubr.bf16.mxu0 0
      %3330 = vmatmul.mubr.bf16.gmra.mxu0 %v3273
      %v3331 = vpop.f32.mrf.mxu0
      %v3332 = vadd.f32 0.0, %v3331
      %v3333 = vpop.f32.mrf.mxu0
      %v3334 = vpop.f32.mrf.mxu0
      %v3335 = vadd.f32 0.0, %v3334
      %v3336 = vpop.f32.mrf.mxu0
      %3337 = vmatprep.mubr.bf16.mxu0 0
      %3338 = vmatmul.mubr.bf16.gmra.mxu0 %v3276
      %v3339 = vpop.f32.mrf.mxu0
      %v3340 = vadd.f32 0.0, %v3339
      %v3341 = vpop.f32.mrf.mxu0
      %v3342 = vpop.f32.mrf.mxu0
      %v3343 = vadd.f32 0.0, %v3342
      %v3344 = vpop.f32.mrf.mxu0
      %3345 = vdwg.mxu0
      %v3346 = vadd.f32 %v3116, %v3316
      %v3347 = vadd.f32 %v3117, %v3319
      %v3348 = vadd.f32 %v3118, %v3324
      %v3349 = vadd.f32 %v3119, %v3327
      %v3350 = vadd.f32 %v3120, %v3332
      %v3351 = vadd.f32 %v3121, %v3335
      %v3352 = vadd.f32 %v3122, %v3340
      %v3353 = vadd.f32 %v3123, %v3343
      %v3354 = vld [vmem:[%s3005] sm:$0xe]
      %v3355 = vld [vmem:[%s3005 + $0x8] sm:$0xe]
      %v3356 = vld [vmem:[%s3005 + $0x10] sm:$0xe]
      %v3357 = vld [vmem:[%s3005 + $0x18] sm:$0xe]
      %v3358 = vld [vmem:[%s3005 + $0x20] sm:$0xe]
      %v3359 = vld [vmem:[%s3005 + $0x28] sm:$0xe]
      %v3360 = vld [vmem:[%s3005 + $0x30] sm:$0xe]
      %v3361 = vld [vmem:[%s3005 + $0x38] sm:$0xe]
      %v3378 = vrot.slane %v3354, 5
      %v3379 = vrot.slane %v3378, 4
      %v3380 = vrot.slane %v3125, 5
      %v3381 = vsel %vm2364, %v3379, %v3380
      %v3382 = vrot.slane %v3355, 5
      %v3383 = vrot.slane %v3382, 4
      %v3384 = vrot.slane %v3127, 5
      %v3385 = vsel %vm2364, %v3383, %v3384
      %v3386 = vrot.slane %v3356, 5
      %v3387 = vrot.slane %v3386, 4
      %v3388 = vrot.slane %v3129, 5
      %v3389 = vsel %vm2364, %v3387, %v3388
      %v3390 = vrot.slane %v3357, 5
      %v3391 = vrot.slane %v3390, 4
      %v3392 = vrot.slane %v3131, 5
      %v3393 = vsel %vm2364, %v3391, %v3392
      %v3394 = vrot.slane %v3358, 5
      %v3395 = vrot.slane %v3394, 4
      %v3396 = vrot.slane %v3133, 5
      %v3397 = vsel %vm2364, %v3395, %v3396
      %v3398 = vrot.slane %v3359, 5
      %v3399 = vrot.slane %v3398, 4
      %v3400 = vrot.slane %v3135, 5
      %v3401 = vsel %vm2364, %v3399, %v3400
      %v3402 = vrot.slane %v3360, 5
      %v3403 = vrot.slane %v3402, 4
      %v3404 = vrot.slane %v3137, 5
      %v3405 = vsel %vm2364, %v3403, %v3404
      %v3406 = vrot.slane %v3361, 5
      %v3407 = vrot.slane %v3406, 4
      %v3408 = vrot.slane %v3139, 5
      %v3409 = vsel %vm2364, %v3407, %v3408
      %s3410 = scalar_lea.vmem %s6, 32
      %v3411 = vld [vmem:[%s3410] sm:$0xf]
      %v3412 = vunpack.c.l.b16 %v3381
      %v3413 = vunpack.c.l.b16 %v3385
      %v3414 = vunpack.c.l.b16 %v3389
      %v3415 = vunpack.c.l.b16 %v3393
      %v3416 = vunpack.c.l.b16 %v3397
      %v3417 = vunpack.c.l.b16 %v3401
      %v3418 = vunpack.c.l.b16 %v3405
      %v3419 = vunpack.c.l.b16 %v3409
      %v3420 = vpack.c.b16 %v3413, %v3412
      %v3421 = vpack.c.b16 %v3415, %v3414
      %v3422 = vpack.c.b16 %v3417, %v3416
      %v3423 = vpack.c.b16 %v3419, %v3418
      %v3425 = vsel %vm2156, %v3420, 0
      %v3428 = vsel %vm2156, %v3421, 0
      %v3431 = vsel %vm2156, %v3422, 0
      %v3434 = vsel %vm2156, %v3423, 0
      %v3437 = vsel %vm2169, %v3411, 0
      %3439 = vmatprep.subr.bf16.mxu0 0
      %3440 = vmatpush1.bf16.msra.mxu0 0
      %3441 = vmatprep.subr.bf16.mxu0 0
      %3442 = vmatpush1.bf16.msra.mxu0 0
      %3443 = vmatprep.subr.bf16.mxu0 0
      %3444 = vmatpush1.bf16.msra.mxu0 0
      %3445 = vmatprep.subr.bf16.mxu0 0
      %3446 = vmatpush1.bf16.msra.mxu0 0
      %3447 = vmatprep.subr.bf16.mxu0 0
      %3448 = vmatpush1.bf16.msra.mxu0 0
      %3449 = vmatprep.subr.bf16.mxu0 0
      %3450 = vmatpush1.bf16.msra.mxu0 0
      %3451 = vmatprep.subr.bf16.mxu0 0
      %3452 = vmatpush1.bf16.msra.mxu0 0
      %3453 = vmatprep.subr.bf16.mxu0 0
      %3454 = vmatpush1.bf16.msra.mxu0 %v3437
      %3455 = vmatprep.subr.bf16.mxu0 0
      %3456 = vmatpush2.bf16.msra.mxu0 0
      %3457 = vmatprep.subr.bf16.mxu0 0
      %3458 = vmatpush2.bf16.msra.mxu0 0
      %3459 = vmatprep.subr.bf16.mxu0 0
      %3460 = vmatpush2.bf16.msra.mxu0 0
      %3461 = vmatprep.subr.bf16.mxu0 0
      %3462 = vmatpush2.bf16.msra.mxu0 0
      %3463 = vmatprep.subr.bf16.mxu0 0
      %3464 = vmatpush2.bf16.msra.mxu0 0
      %3465 = vmatprep.subr.bf16.mxu0 0
      %3466 = vmatpush2.bf16.msra.mxu0 0
      %3467 = vmatprep.subr.bf16.mxu0 0
      %3468 = vmatpush2.bf16.msra.mxu0 0
      %3469 = vmatprep.subr.bf16.mxu0 0
      %3470 = vmatpush2.bf16.msra.mxu0 0
      %3471 = vmatprep.mubr.bf16.mxu0 0
      %3472 = vmatmul.mubr.bf16.gmra.mxu0 %v3425
      %v3473 = vpop.f32.mrf.mxu0
      %v3474 = vadd.f32 0.0, %v3473
      %v3475 = vpop.f32.mrf.mxu0
      %v3476 = vpop.f32.mrf.mxu0
      %v3477 = vadd.f32 0.0, %v3476
      %v3478 = vpop.f32.mrf.mxu0
      %3479 = vmatprep.mubr.bf16.mxu0 0
      %3480 = vmatmul.mubr.bf16.gmra.mxu0 %v3428
      %v3481 = vpop.f32.mrf.mxu0
      %v3482 = vadd.f32 0.0, %v3481
      %v3483 = vpop.f32.mrf.mxu0
      %v3484 = vpop.f32.mrf.mxu0
      %v3485 = vadd.f32 0.0, %v3484
      %v3486 = vpop.f32.mrf.mxu0
      %3487 = vmatprep.mubr.bf16.mxu0 0
      %3488 = vmatmul.mubr.bf16.gmra.mxu0 %v3431
      %v3489 = vpop.f32.mrf.mxu0
      %v3490 = vadd.f32 0.0, %v3489
      %v3491 = vpop.f32.mrf.mxu0
      %v3492 = vpop.f32.mrf.mxu0
      %v3493 = vadd.f32 0.0, %v3492
      %v3494 = vpop.f32.mrf.mxu0
      %3495 = vmatprep.mubr.bf16.mxu0 0
      %3496 = vmatmul.mubr.bf16.gmra.mxu0 %v3434
      %v3497 = vpop.f32.mrf.mxu0
      %v3498 = vadd.f32 0.0, %v3497
      %v3499 = vpop.f32.mrf.mxu0
      %v3500 = vpop.f32.mrf.mxu0
      %v3501 = vadd.f32 0.0, %v3500
      %v3502 = vpop.f32.mrf.mxu0
      %3503 = vdwg.mxu0
      %v3504 = vadd.f32 %v3346, %v3474
      %v3505 = vadd.f32 %v3347, %v3477
      %v3506 = vadd.f32 %v3348, %v3482
      %v3507 = vadd.f32 %v3349, %v3485
      %v3508 = vadd.f32 %v3350, %v3490
      %v3509 = vadd.f32 %v3351, %v3493
      %v3510 = vadd.f32 %v3352, %v3498
      %v3511 = vadd.f32 %v3353, %v3501
      %v3512 = vld [vmem:[%s7] sm:$0x1]
      %v3514 = vlaneseq
      %v3515 = vshrl.u32 %v3514, 7
      %v3516 = vsub.s32 0, %v3515
      %v3517 = vrot.slane %v3512, %v3516
      %v3519 = vadd.f32 %v3504, %v3517
      %v3520 = vadd.f32 %v3505, %v3517
      %v3521 = vadd.f32 %v3506, %v3517
      %v3522 = vadd.f32 %v3507, %v3517
      %v3523 = vadd.f32 %v3508, %v3517
      %v3524 = vadd.f32 %v3509, %v3517
      %v3525 = vadd.f32 %v3510, %v3517
      %v3526 = vadd.f32 %v3511, %v3517
      %v3527 = vld [vmem:[%s8] sm:$0x3]
      %v3528 = vld [vmem:[%s9] sm:$0x1]
      %v3530 = vlaneseq
      %v3531 = vshrl.u32 %v3530, 7
      %v3532 = vsub.s32 0, %v3531
      %v3533 = vrot.slane %v3528, %v3532
      %v3536 = vsel %vm473, %v3527, 0
      %3538 = vmatprep.subr.bf16.mxu0 0
      %3539 = vmatpush1.bf16.msra.mxu0 0
      %3540 = vmatprep.subr.bf16.mxu0 0
      %3541 = vmatpush1.bf16.msra.mxu0 0
      %3542 = vmatprep.subr.bf16.mxu0 0
      %3543 = vmatpush1.bf16.msra.mxu0 0
      %3544 = vmatprep.subr.bf16.mxu0 0
      %3545 = vmatpush1.bf16.msra.mxu0 0
      %3546 = vmatprep.subr.bf16.mxu0 0
      %3547 = vmatpush1.bf16.msra.mxu0 0
      %3548 = vmatprep.subr.bf16.mxu0 0
      %3549 = vmatpush1.bf16.msra.mxu0 0
      %3550 = vmatprep.subr.bf16.mxu0 0
      %3551 = vmatpush1.bf16.msra.mxu0 0
      %3552 = vmatprep.subr.bf16.mxu0 0
      %3553 = vmatpush1.bf16.msra.mxu0 %v3536
      %3554 = vmatprep.subr.bf16.mxu0 0
      %3555 = vmatpush2.bf16.msra.mxu0 0
      %3556 = vmatprep.subr.bf16.mxu0 0
      %3557 = vmatpush2.bf16.msra.mxu0 0
      %3558 = vmatprep.subr.bf16.mxu0 0
      %3559 = vmatpush2.bf16.msra.mxu0 0
      %3560 = vmatprep.subr.bf16.mxu0 0
      %3561 = vmatpush2.bf16.msra.mxu0 0
      %3562 = vmatprep.subr.bf16.mxu0 0
      %3563 = vmatpush2.bf16.msra.mxu0 0
      %3564 = vmatprep.subr.bf16.mxu0 0
      %3565 = vmatpush2.bf16.msra.mxu0 0
      %3566 = vmatprep.subr.bf16.mxu0 0
      %3567 = vmatpush2.bf16.msra.mxu0 0
      %3568 = vmatprep.subr.bf16.mxu0 0
      %3569 = vmatpush2.bf16.msra.mxu0 0
      %3570 = vmatprep.mubr.bf16.mxu0 0
      %3571 = vmatmul.mubr.bf16.gmra.mxu0 %v1024
      %v3572 = vpop.f32.mrf.mxu0
      %v3573 = vadd.f32 %v3533, %v3572
      %v3574 = vpop.f32.mrf.mxu0
      %v3575 = vpop.f32.mrf.mxu0
      %v3576 = vadd.f32 %v3533, %v3575
      %v3577 = vpop.f32.mrf.mxu0
      %3578 = vmatprep.mubr.bf16.mxu0 0
      %3579 = vmatmul.mubr.bf16.gmra.mxu0 %v1027
      %v3580 = vpop.f32.mrf.mxu0
      %v3581 = vadd.f32 %v3533, %v3580
      %v3582 = vpop.f32.mrf.mxu0
      %v3583 = vpop.f32.mrf.mxu0
      %v3584 = vadd.f32 %v3533, %v3583
      %v3585 = vpop.f32.mrf.mxu0
      %3586 = vmatprep.mubr.bf16.mxu0 0
      %3587 = vmatmul.mubr.bf16.gmra.mxu0 %v1030
      %v3588 = vpop.f32.mrf.mxu0
      %v3589 = vadd.f32 %v3533, %v3588
      %v3590 = vpop.f32.mrf.mxu0
      %v3591 = vpop.f32.mrf.mxu0
      %v3592 = vadd.f32 %v3533, %v3591
      %v3593 = vpop.f32.mrf.mxu0
      %3594 = vmatprep.mubr.bf16.mxu0 0
      %3595 = vmatmul.mubr.bf16.gmra.mxu0 %v1033
      %v3596 = vpop.f32.mrf.mxu0
      %v3597 = vadd.f32 %v3533, %v3596
      %v3598 = vpop.f32.mrf.mxu0
      %v3599 = vpop.f32.mrf.mxu0
      %v3600 = vadd.f32 %v3533, %v3599
      %v3601 = vpop.f32.mrf.mxu0
      %3602 = vdwg.mxu0
      %v3603 = vadd.f32 %v3519, %v3573
      %v3604 = vadd.f32 %v3520, %v3576
      %v3605 = vadd.f32 %v3521, %v3581
      %v3606 = vadd.f32 %v3522, %v3584
      %v3607 = vadd.f32 %v3523, %v3589
      %v3608 = vadd.f32 %v3524, %v3592
      %v3609 = vadd.f32 %v3525, %v3597
      %v3610 = vadd.f32 %v3526, %v3600
      %v3611 = vmax.f32 %v3603, 0.0
      %v3612 = vmax.f32 %v3604, 0.0
      %v3613 = vmax.f32 %v3605, 0.0
      %v3614 = vmax.f32 %v3606, 0.0
      %v3615 = vmax.f32 %v3607, 0.0
      %v3616 = vmax.f32 %v3608, 0.0
      %v3617 = vmax.f32 %v3609, 0.0
      %v3618 = vmax.f32 %v3610, 0.0
      %3619 = vst.msk [vmem:[%s419] sm:$0xff] %vm2156, %v3611
      %3620 = vst.msk [vmem:[%s419 + $0x8] sm:$0xff] %vm2156, %v3612
      %3621 = vst.msk [vmem:[%s419 + $0x10] sm:$0xff] %vm2156, %v3613
      %3622 = vst.msk [vmem:[%s419 + $0x18] sm:$0xff] %vm2156, %v3614
      %3623 = vst.msk [vmem:[%s419 + $0x20] sm:$0xff] %vm2156, %v3615
      %3624 = vst.msk [vmem:[%s419 + $0x28] sm:$0xff] %vm2156, %v3616
      %3625 = vst.msk [vmem:[%s419 + $0x30] sm:$0xff] %vm2156, %v3617
      %3626 = vst.msk [vmem:[%s419 + $0x38] sm:$0xff] %vm2156, %v3618
      %p3627 = scmp.lt.s32.totalorder %s21, 1
      %s3628 = scalar_select %p3627, %s21, 1
      %s3629 = smul.addr %s3628, 8
      %s3630 = smul.addr %s3629, 8
      %s3631 = scalar_lea.vmem %s10, %s3630
      // Predicated region
      $region61: #{simple_block_forward.1} parent=59 // pred_check
        %p3632 = pneg %p269
      $region62: #{simple_block_forward.1} parent=59 // pred_check_branch
        %3634 = sbr.rel (%p3632) target = $region64
      $region63: #{simple_block_forward.1} parent=59 // pred_region
        _
      $region64: #{simple_block_forward.1} parent=59 // pred_fallthru
        _
    $region60: #{simple_block_forward.1} parent=5 // pred_fallthru
      _
    %p3635 = scmp.le.s32.totalorder 2, %s16
    // Predicated region
    $region65: #{simple_block_forward.1} parent=5 // pred_check
      %p3636 = pneg %p3635
    $region66: #{simple_block_forward.1} parent=5 // pred_check_branch
      %3638 = sbr.rel (%p3636) target = $region68
    $region67: #{simple_block_forward.1} parent=5 // pred_region
      %s3639 = ssub.s32 %s16, 2
      // Predicated region
      $region69: #{simple_block_forward.1} parent=67 // pred_check
        %p3640 = pneg %p275
      $region70: #{simple_block_forward.1} parent=67 // pred_check_branch
        %3642 = sbr.rel (%p3640) target = $region72
      $region71: #{simple_block_forward.1} parent=67 // pred_region
        %p3643 = scmp.lt.s32.totalorder %s22, 1
        %s3644 = scalar_select %p3643, %s22, 1
        %s3645 = smul.addr %s3644, 8
        %s3646 = smul.addr %s3645, 8
        %s3647 = scalar_lea.vmem %s10, %s3646
      $region72: #{simple_block_forward.1} parent=67 // pred_fallthru
        _
    $region68: #{simple_block_forward.1} parent=5 // pred_fallthru
      _
  $region6: #{simple_block_forward.1} parent=0 // loop_footer
    %s20 = sadd.s32 1, %s16
  $region7: #{simple_block_forward.1} parent=0 // loop_footer_branch
    %15 = sbr.rel target = $region3
  $region8: #{simple_block_forward.1} parent=0 // loop_exit
    _

</llo_original>
